<compile_context>
chip_gen: v7x
topology: tpu7x:2x2x1
jax: 0.10.0
libtpu: 0.0.40
codegen_flags: <defaults>
</compile_context>

<pallas_src>
import functools

import jax
import jax.numpy as jnp
from jax import lax
from jax.experimental import pallas as pl
from jax.experimental.pallas import tpu as pltpu


# --------------------------------------------------------------------------- #
# Small helpers.
# --------------------------------------------------------------------------- #
def _round_up(x, m):
    return (x + m - 1) // m * m


def _sigmoid(x):
    # Exact identity; guarantees a single EUP transcendental per gate.
    return 0.5 * jnp.tanh(0.5 * x) + 0.5


def _vmem_capacity_bytes():
    try:
        return int(pltpu.get_tpu_info().vmem_capacity_bytes)
    except Exception:
        return 64 * 1024 * 1024  # conservative (v7x per-TensorCore)


def _layer_vmem_bytes(t_chunk, b_tile, din_p, h_p, dout_p,
                      x_bytes, y_bytes, w_bytes, fuse_out):
    """Approximate resident VMEM for one layer's pallas_call."""
    rows = t_chunk * b_tile
    total = 0
    total += 2 * rows * din_p * x_bytes            # x block (double-buffered)
    total += 2 * rows * dout_p * y_bytes           # y block (double-buffered)
    total += rows * 4 * h_p * 4                    # xg_s scratch (f32)
    total += 2 * (din_p + h_p) * 4 * h_p * w_bytes  # W_ih^T + W_hh^T (double-buffered)
    total += 2 * 4 * h_p * 4                       # gate bias
    if fuse_out:
        total += rows * h_p * w_bytes              # hbuf scratch
        total += 2 * h_p * dout_p * w_bytes        # W_out^T (double-buffered)
        total += 2 * dout_p * 4                    # out bias
    total += 4 * b_tile * h_p * 4                  # h0/c0 blocks
    total += 2 * b_tile * h_p * 4                  # h_s/c_s scratch
    total += 2 * b_tile * h_p * 4                  # hn/cn out blocks
    return total


def _pick_b_tile(bp):
    """Largest multiple-of-8 divisor of bp that is <= 32."""
    for cand in range(min(bp, 32), 7, -8):
        if bp % cand == 0 and cand % 8 == 0:
            return cand
    return 8


def _pick_t_chunk(seq_len, b_tile, din_p, h_p, dout_p,
                  x_bytes, y_bytes, w_bytes, budget):
    best = 1
    for c in range(1, min(seq_len, 256) + 1):
        if seq_len % c != 0:
            continue
        if _layer_vmem_bytes(c, b_tile, din_p, h_p, dout_p,
                             x_bytes, y_bytes, w_bytes, True) <= budget:
            best = c
    return best


def _pad_gate_cols(w, h, hp):
    """Pad the trailing 4*h gate axis to 4*hp, per gate (PyTorch [i,f,g,o] order)."""
    if hp == h:
        return w
    lead = w.shape[:-1]
    w4 = w.reshape(lead + (4, h))
    w4 = jnp.pad(w4, [(0, 0)] * (len(lead) + 1) + [(0, hp - h)])
    return w4.reshape(lead + (4 * hp,))


# --------------------------------------------------------------------------- #
# Chunked LSTM-layer kernel.
#   grid = (batch_tiles [parallel], seq_chunks [arbitrary / sequential]).
#   Gate order matches PyTorch: [i, f, g, o] along the 4*Hp axis.
#   If fuse_out: also applies the output Linear (W_out, b_out) to the chunk's hidden
#   states, producing y directly (lane-dense slab).
# --------------------------------------------------------------------------- #
def _lstm_chunk_kernel(*args, hidden_p, b_tile, t_chunk, din_p, dout_p,
                       fuse_out, unroll):
    if fuse_out:
        (x_ref, w_ih_ref, w_hh_ref, b_ref, w_out_ref, b_out_ref,
         h0_ref, c0_ref,
         y_ref, hn_ref, cn_ref,
         h_s, c_s, xg_s, hbuf_s) = args
    else:
        (x_ref, w_ih_ref, w_hh_ref, b_ref,
         h0_ref, c0_ref,
         y_ref, hn_ref, cn_ref,
         h_s, c_s, xg_s) = args
        w_out_ref = b_out_ref = hbuf_s = None

    Hp, B, T = hidden_p, b_tile, t_chunk
    j = pl.program_id(1)  # time-chunk index (sequential axis)

    @pl.when(j == 0)
    def _():
        h_s[...] = h0_ref[...].astype(jnp.float32)
        c_s[...] = c0_ref[...].astype(jnp.float32)

    # Chunk-level input projection: one (T*B, Din) x (Din, 4Hp) matmul, bias hoisted.
    x2d = x_ref[...].reshape(T * B, din_p)
    xg_s[...] = (jnp.dot(x2d, w_ih_ref[...], preferred_element_type=jnp.float32)
                 + b_ref[...])

    def step(k, carry):
        h, c = carry                                   # f32 (B, Hp)
        r0 = k * B
        if not isinstance(r0, int):
            r0 = pl.multiple_of(r0, B)
        gates = xg_s[pl.ds(r0, B), :] + jnp.dot(
            h.astype(w_hh_ref.dtype), w_hh_ref[...],
            preferred_element_type=jnp.float32)        # (B, 4Hp), lane-aligned gates

        i_g = _sigmoid(gates[:, 0 * Hp:1 * Hp])
        f_g = _sigmoid(gates[:, 1 * Hp:2 * Hp])
        g_g = jnp.tanh(gates[:, 2 * Hp:3 * Hp])
        o_g = _sigmoid(gates[:, 3 * Hp:4 * Hp])

        c = f_g * c + i_g * g_g
        h = o_g * jnp.tanh(c)

        if fuse_out:
            hbuf_s[pl.ds(r0, B), :] = h.astype(hbuf_s.dtype)
        else:
            y_ref[pl.ds(k, 1)] = h.astype(y_ref.dtype)[None]
        return h, c

    h, c = lax.fori_loop(0, T, step, (h_s[...], c_s[...]), unroll=unroll)
    h_s[...] = h
    c_s[...] = c

    if fuse_out:
        # Fused output Linear over the whole chunk: one (T*B, Hp) x (Hp, Doutp) matmul,
        # lane-dense (Doutp multiple of 128) output store.
        y2d = (jnp.dot(hbuf_s[...], w_out_ref[...],
                       preferred_element_type=jnp.float32) + b_out_ref[...])
        y_ref[...] = y2d.reshape(T, B, dout_p).astype(y_ref.dtype)

    @pl.when(j == pl.num_programs(1) - 1)
    def _():
        hn_ref[...] = h.astype(hn_ref.dtype)
        cn_ref[...] = c.astype(cn_ref.dtype)


def lstm_layer(x3d, w_ih_t, w_hh_t, b, h0, c0, *, t_chunk, b_tile, unroll=8,
               out_w_t=None, out_b=None, y_dtype=None):
    """One (padded) LSTM layer, optionally with the output Linear fused.

    x3d:    (S, Bp, Dinp) time-major, padded, matmul dtype.
    h0/c0:  (Bp, Hp) f32.
    Returns (y (S, Bp, Doutp), h_n (Bp, Hp) f32, c_n (Bp, Hp) f32).
    """
    S, Bp, Dinp = x3d.shape
    Hp = h0.shape[1]
    assert S % t_chunk == 0, "t_chunk must divide seq_len"
    assert Bp % b_tile == 0
    n_chunks = S // t_chunk
    n_btiles = Bp // b_tile

    fuse_out = out_w_t is not None
    Doutp = out_w_t.shape[1] if fuse_out else Hp
    if y_dtype is None:
        y_dtype = x3d.dtype
    mat_dtype = w_ih_t.dtype
    rows = t_chunk * b_tile

    kernel = functools.partial(
        _lstm_chunk_kernel, hidden_p=Hp, b_tile=b_tile, t_chunk=t_chunk,
        din_p=Dinp, dout_p=Doutp, fuse_out=fuse_out,
        unroll=int(min(unroll, t_chunk)))

    in_specs = [
        pl.BlockSpec((t_chunk, b_tile, Dinp), lambda i, j: (j, i, 0)),  # x chunk
        pl.BlockSpec((Dinp, 4 * Hp), lambda i, j: (0, 0)),              # W_ih^T
        pl.BlockSpec((Hp, 4 * Hp), lambda i, j: (0, 0)),                # W_hh^T
        pl.BlockSpec((1, 4 * Hp), lambda i, j: (0, 0)),                 # gate bias
    ]
    inputs = [x3d, w_ih_t, w_hh_t, b]
    if fuse_out:
        in_specs += [pl.BlockSpec((Hp, Doutp), lambda i, j: (0, 0)),    # W_out^T
                     pl.BlockSpec((1, Doutp), lambda i, j: (0, 0))]     # out bias
        inputs += [out_w_t, out_b]
    in_specs += [pl.BlockSpec((b_tile, Hp), lambda i, j: (i, 0)),       # h0
                 pl.BlockSpec((b_tile, Hp), lambda i, j: (i, 0))]       # c0
    inputs += [h0, c0]

    out_specs = [pl.BlockSpec((t_chunk, b_tile, Doutp), lambda i, j: (j, i, 0)),
                 pl.BlockSpec((b_tile, Hp), lambda i, j: (i, 0)),
                 pl.BlockSpec((b_tile, Hp), lambda i, j: (i, 0))]
    out_shape = [jax.ShapeDtypeStruct((S, Bp, Doutp), y_dtype),
                 jax.ShapeDtypeStruct((Bp, Hp), jnp.float32),
                 jax.ShapeDtypeStruct((Bp, Hp), jnp.float32)]

    scratch = [pltpu.VMEM((b_tile, Hp), jnp.float32),          # h carry
               pltpu.VMEM((b_tile, Hp), jnp.float32),          # c carry
               pltpu.VMEM((rows, 4 * Hp), jnp.float32)]        # chunk input gates
    if fuse_out:
        scratch.append(pltpu.VMEM((rows, Hp), mat_dtype))      # chunk hidden states

    cap = _vmem_capacity_bytes()
    need = _layer_vmem_bytes(t_chunk, b_tile, Dinp, Hp, Doutp,
                             jnp.dtype(x3d.dtype).itemsize,
                             jnp.dtype(y_dtype).itemsize,
                             jnp.dtype(mat_dtype).itemsize, fuse_out)
    vmem_limit = max(int(1.5 * need) + (4 << 20), 32 << 20)
    vmem_limit = int(min(vmem_limit, max(int(0.85 * cap), need + (4 << 20))))

    return pl.pallas_call(
        kernel,
        grid=(n_btiles, n_chunks),
        in_specs=in_specs,
        out_specs=out_specs,
        out_shape=out_shape,
        scratch_shapes=scratch,
        compiler_params=pltpu.CompilerParams(
            dimension_semantics=("parallel", "arbitrary"),
            vmem_limit_bytes=vmem_limit),
    )(*inputs)


# --------------------------------------------------------------------------- #
# Parameter init (deterministic, PyTorch-style, logical/unpadded) and forward.
# --------------------------------------------------------------------------- #
def init_params(key, input_size, hidden_units, layers_num):
    """uniform(-1/sqrt(H), 1/sqrt(H)) init; weights stored pre-transposed (logical)."""
    H = hidden_units
    scale = 1.0 / jnp.sqrt(jnp.float32(H))
    params = {"layers": []}
    for layer in range(layers_num):
        din = input_size if layer == 0 else H
        key, k1, k2, k3, k4 = jax.random.split(key, 5)
        w_ih = jax.random.uniform(k1, (4 * H, din), jnp.float32, -scale, scale)
        w_hh = jax.random.uniform(k2, (4 * H, H), jnp.float32, -scale, scale)
        b_ih = jax.random.uniform(k3, (4 * H,), jnp.float32, -scale, scale)
        b_hh = jax.random.uniform(k4, (4 * H,), jnp.float32, -scale, scale)
        params["layers"].append({
            "w_ih_t": w_ih.T,                          # (din, 4H)
            "w_hh_t": w_hh.T,                          # (H, 4H)
            "b": (b_ih + b_hh).reshape(1, 4 * H),      # (1, 4H)
        })
    key, k1, k2 = jax.random.split(key, 3)
    w_out = jax.random.uniform(k1, (input_size, H), jnp.float32, -scale, scale)
    b_out = jax.random.uniform(k2, (input_size,), jnp.float32, -scale, scale)
    params["out_w_t"] = w_out.T                        # (H, input_size)
    params["out_b"] = b_out.reshape(1, input_size)     # (1, input_size)
    return params


def network_forward(params, x, state=None, t_chunk=None,
                    matmul_dtype=jnp.bfloat16, unroll=8):
    """x: (batch, seq, input_size) [batch_first, like PyTorch].
    Returns (y (batch, seq, input_size), (h_n, c_n) each (layers, batch, hidden))."""
    B, S, Din = x.shape
    layers = params["layers"]
    L = len(layers)
    H = layers[0]["w_hh_t"].shape[0]
    Dout = params["out_w_t"].shape[1]

    # Padded, lane/sublane-aligned dims.
    Hp = _round_up(H, 128)
    Dinp = _round_up(Din, 128)
    Doutp = _round_up(Dout, 128)
    Bp = _round_up(B, 8)
    b_tile = _pick_b_tile(Bp)

    if t_chunk is None:
        budget = int(0.45 * _vmem_capacity_bytes())
        t_chunk = _pick_t_chunk(S, b_tile, max(Dinp, Hp), Hp, max(Hp, Doutp),
                                jnp.dtype(matmul_dtype).itemsize, 4,
                                jnp.dtype(matmul_dtype).itemsize, budget)

    if state is None:
        h0 = jnp.zeros((L, B, H), jnp.float32)
        c0 = jnp.zeros((L, B, H), jnp.float32)
    else:
        h0, c0 = state
    pad_bh = ((0, 0), (0, Bp - B), (0, Hp - H))
    h0p = jnp.pad(h0.astype(jnp.float32), pad_bh)
    c0p = jnp.pad(c0.astype(jnp.float32), pad_bh)

    # Single transpose in: (B,S,Din) -> time-major padded slab (S, Bp, Dinp).
    xt = jnp.transpose(x, (1, 0, 2)).astype(matmul_dtype)
    cur = jnp.pad(xt, ((0, 0), (0, Bp - B), (0, Dinp - Din)))

    # Padded output-Linear weights (zero rows/cols beyond H/Dout).
    out_w_tp = jnp.pad(params["out_w_t"],
                       ((0, Hp - H), (0, Doutp - Dout))).astype(matmul_dtype)
    out_b_p = jnp.pad(params["out_b"],
                      ((0, 0), (0, Doutp - Dout))).astype(jnp.float32)

    h_ns, c_ns = [], []
    for l, p in enumerate(layers):
        is_last = (l == L - 1)
        din_l = Din if l == 0 else H
        din_lp = Dinp if l == 0 else Hp
        # Per-gate padding of the 4H axis keeps gate slices lane-aligned; zero padding
        # of the K axis keeps padded input lanes inert.
        w_ih_tp = jnp.pad(_pad_gate_cols(p["w_ih_t"], H, Hp),
                          ((0, din_lp - din_l), (0, 0))).astype(matmul_dtype)
        w_hh_tp = jnp.pad(_pad_gate_cols(p["w_hh_t"], H, Hp),
                          ((0, Hp - H), (0, 0))).astype(matmul_dtype)
        b_p = _pad_gate_cols(p["b"], H, Hp).astype(jnp.float32)

        cur, h_n, c_n = lstm_layer(
            cur, w_ih_tp, w_hh_tp, b_p, h0p[l], c0p[l],
            t_chunk=t_chunk, b_tile=b_tile, unroll=unroll,
            out_w_t=out_w_tp if is_last else None,
            out_b=out_b_p if is_last else None,
            y_dtype=x.dtype if is_last else matmul_dtype,
        )
        h_ns.append(h_n[:B, :H])
        c_ns.append(c_n[:B, :H])

    # Slice off padding, single transpose out: (S, Bp, Doutp) -> (B, S, Dout).
    y = jnp.transpose(cur[:, :B, :Dout], (1, 0, 2)).astype(x.dtype)
    return y, (jnp.stack(h_ns, axis=0).astype(x.dtype),
               jnp.stack(c_ns, axis=0).astype(x.dtype))


# --------------------------------------------------------------------------- #
# Pure-JAX reference (for correctness checking).
# --------------------------------------------------------------------------- #
def network_ref(params, x):
    B, S, _ = x.shape
    layers = params["layers"]
    H = layers[0]["w_hh_t"].shape[0]
    cur = x
    h_ns, c_ns = [], []
    for p in layers:
        h = jnp.zeros((B, H), jnp.float32)
        c = jnp.zeros((B, H), jnp.float32)
        outs = []
        for t in range(S):
            gates = cur[:, t, :] @ p["w_ih_t"] + h @ p["w_hh_t"] + p["b"]
            i = jax.nn.sigmoid(gates[:, 0 * H:1 * H])
            f = jax.nn.sigmoid(gates[:, 1 * H:2 * H])
            g = jnp.tanh(gates[:, 2 * H:3 * H])
            o = jax.nn.sigmoid(gates[:, 3 * H:4 * H])
            c = f * c + i * g
            h = o * jnp.tanh(c)
            outs.append(h)
        cur = jnp.stack(outs, axis=1)
        h_ns.append(h)
        c_ns.append(c)
    y = cur @ params["out_w_t"] + params["out_b"]
    return y, (jnp.stack(h_ns, 0), jnp.stack(c_ns, 0))


if __name__ == "__main__":
    input_size = 16
    hidden_units = 32
    layers_num = 2
    batch = 2
    seq = 8

    key = jax.random.PRNGKey(0)
    kp, kx = jax.random.split(key)
    params = init_params(kp, input_size, hidden_units, layers_num)
    x = jax.random.normal(kx, (batch, seq, input_size), jnp.float32)

    y_ref, (h_ref, c_ref) = network_ref(params, x)

    # 1) f32-matmul path: tight check of the kernel structure / padding / recurrence.
    y32, (h32, c32) = network_forward(params, x, matmul_dtype=jnp.float32)
    jax.block_until_ready((y32, h32, c32))
    assert y32.shape == (batch, seq, input_size)
    assert h32.shape == (layers_num, batch, hidden_units)
    assert c32.shape == (layers_num, batch, hidden_units)
    assert jnp.allclose(y32, y_ref, atol=2e-3, rtol=2e-3)
    assert jnp.allclose(h32, h_ref, atol=2e-3, rtol=2e-3)
    assert jnp.allclose(c32, c_ref, atol=2e-3, rtol=2e-3)

    # 2) bf16-matmul (production) path: f32 accumulate, f32 cell state / nonlinearities.
    y, (h_n, c_n) = network_forward(params, x)  # default matmul_dtype=bfloat16
    jax.block_until_ready((y, h_n, c_n))
    assert y.shape == (batch, seq, input_size)
    assert jnp.allclose(y, y_ref, atol=5e-2, rtol=5e-2)
    assert jnp.allclose(h_n, h_ref, atol=5e-2, rtol=5e-2)
    assert jnp.allclose(c_n, c_ref, atol=5e-2, rtol=5e-2)

    print("KERNEL_OK")
</pallas_src>

<mosaic_0001>
module attributes {stable_mosaic.version = 11 : i64} {
  func.func @_lstm_chunk_kernel(%arg0: i32, %arg1: i32, %arg2: memref<8x8x128xf32, #tpu.memory_space<vmem>>, %arg3: memref<128x512xf32, #tpu.memory_space<vmem>>, %arg4: memref<128x512xf32, #tpu.memory_space<vmem>>, %arg5: memref<1x512xf32, #tpu.memory_space<vmem>>, %arg6: memref<8x128xf32, #tpu.memory_space<vmem>>, %arg7: memref<8x128xf32, #tpu.memory_space<vmem>>, %arg8: memref<8x8x128xf32, #tpu.memory_space<vmem>>, %arg9: memref<8x128xf32, #tpu.memory_space<vmem>>, %arg10: memref<8x128xf32, #tpu.memory_space<vmem>>, %arg11: memref<8x128xf32, #tpu.memory_space<vmem>>, %arg12: memref<8x128xf32, #tpu.memory_space<vmem>>, %arg13: memref<64x512xf32, #tpu.memory_space<vmem>>) attributes {dimension_semantics = [#tpu.dimension_semantics<parallel>, #tpu.dimension_semantics<arbitrary>], iteration_bounds = array<i64: 1, 1>, scalar_prefetch = 0 : i64, scratch_operands = 3 : i64, tpu.core_type = #tpu.core_type<tc>, window_params = [{transform_indices = @transform_0, window_bounds = array<i64: 8, 8, 128>}, {pipeline_mode = #tpu.pipeline_mode<synchronous>, transform_indices = @transform_1, window_bounds = array<i64: 128, 512>}, {pipeline_mode = #tpu.pipeline_mode<synchronous>, transform_indices = @transform_2, window_bounds = array<i64: 128, 512>}, {pipeline_mode = #tpu.pipeline_mode<synchronous>, transform_indices = @transform_3, window_bounds = array<i64: 1, 512>}, {transform_indices = @transform_4, window_bounds = array<i64: 8, 128>}, {transform_indices = @transform_5, window_bounds = array<i64: 8, 128>}, {transform_indices = @transform_6, window_bounds = array<i64: 8, 8, 128>}, {transform_indices = @transform_7, window_bounds = array<i64: 8, 128>}, {transform_indices = @transform_8, window_bounds = array<i64: 8, 128>}]} {
    %c0_i32 = arith.constant 0 : i32
    %0 = arith.cmpi eq, %arg1, %c0_i32 : i32
    %1 = arith.extui %0 : i1 to i32
    %c0_i32_0 = arith.constant 0 : i32
    %2 = arith.cmpi ne, %1, %c0_i32_0 : i32
    scf.if %2 {
      %c0_148 = arith.constant 0 : index
      %c0_149 = arith.constant 0 : index
      %346 = vector.load %arg6[%c0_148, %c0_149] : memref<8x128xf32, #tpu.memory_space<vmem>>, vector<8x128xf32>
      %c0_150 = arith.constant 0 : index
      %c0_151 = arith.constant 0 : index
      %347 = vector.load %arg11[%c0_150, %c0_151] : memref<8x128xf32, #tpu.memory_space<vmem>>, vector<8x128xf32>
      tpu.vector_store %arg11[%c0_150, %c0_151], %346 {strides = array<i32>} : memref<8x128xf32, #tpu.memory_space<vmem>>, vector<8x128xf32>,
      %c0_152 = arith.constant 0 : index
      %c0_153 = arith.constant 0 : index
      %348 = vector.load %arg7[%c0_152, %c0_153] : memref<8x128xf32, #tpu.memory_space<vmem>>, vector<8x128xf32>
      %c0_154 = arith.constant 0 : index
      %c0_155 = arith.constant 0 : index
      %349 = vector.load %arg12[%c0_154, %c0_155] : memref<8x128xf32, #tpu.memory_space<vmem>>, vector<8x128xf32>
      tpu.vector_store %arg12[%c0_154, %c0_155], %348 {strides = array<i32>} : memref<8x128xf32, #tpu.memory_space<vmem>>, vector<8x128xf32>,
    } else {
    }
    %c0 = arith.constant 0 : index
    %c0_1 = arith.constant 0 : index
    %c0_2 = arith.constant 0 : index
    %3 = vector.load %arg2[%c0, %c0_1, %c0_2] : memref<8x8x128xf32, #tpu.memory_space<vmem>>, vector<8x8x128xf32>
    %4 = vector.shape_cast %3 : vector<8x8x128xf32> to vector<64x128xf32>
    %c0_3 = arith.constant 0 : index
    %c0_4 = arith.constant 0 : index
    %5 = vector.load %arg3[%c0_3, %c0_4] : memref<128x512xf32, #tpu.memory_space<vmem>>, vector<128x512xf32>
    %cst = arith.constant dense<0.000000e+00> : vector<64x512xf32>
    %6 = tpu.matmul %4, %5, %cst {dimension_numbers = #tpu.dot_dimension_numbers<[1], [0], [0], [1], [0, 0, 1, 1], [], []>} : vector<64x128xf32>, vector<128x512xf32>, vector<64x512xf32> -> vector<64x512xf32>
    %c0_5 = arith.constant 0 : index
    %c0_6 = arith.constant 0 : index
    %7 = vector.load %arg5[%c0_5, %c0_6] : memref<1x512xf32, #tpu.memory_space<vmem>>, vector<1x512xf32>
    %8 = vector.broadcast %7 : vector<1x512xf32> to vector<64x512xf32>
    %9 = arith.addf %6, %8 : vector<64x512xf32>
    %c0_7 = arith.constant 0 : index
    %c0_8 = arith.constant 0 : index
    %10 = vector.load %arg13[%c0_7, %c0_8] : memref<64x512xf32, #tpu.memory_space<vmem>>, vector<64x512xf32>
    tpu.vector_store %arg13[%c0_7, %c0_8], %9 {strides = array<i32>} : memref<64x512xf32, #tpu.memory_space<vmem>>, vector<64x512xf32>,
    %c0_9 = arith.constant 0 : index
    %c0_10 = arith.constant 0 : index
    %11 = vector.load %arg11[%c0_9, %c0_10] : memref<8x128xf32, #tpu.memory_space<vmem>>, vector<8x128xf32>
    %c0_11 = arith.constant 0 : index
    %c0_12 = arith.constant 0 : index
    %12 = vector.load %arg12[%c0_11, %c0_12] : memref<8x128xf32, #tpu.memory_space<vmem>>, vector<8x128xf32>
    %c0_i32_13 = arith.constant 0 : i32
    %c8_i32 = arith.constant 8 : i32
    %13 = arith.muli %c0_i32_13, %c8_i32 : i32
    %14 = tpu.assume_multiple %13, 8 : i32
    %15 = arith.index_cast %14 : i32 to index
    %c0_14 = arith.constant 0 : index
    %16 = vector.load %arg13[%15, %c0_14] : memref<64x512xf32, #tpu.memory_space<vmem>>, vector<8x512xf32>
    %c0_15 = arith.constant 0 : index
    %c0_16 = arith.constant 0 : index
    %17 = vector.load %arg4[%c0_15, %c0_16] : memref<128x512xf32, #tpu.memory_space<vmem>>, vector<128x512xf32>
    %cst_17 = arith.constant dense<0.000000e+00> : vector<8x512xf32>
    %18 = tpu.matmul %11, %17, %cst_17 {dimension_numbers = #tpu.dot_dimension_numbers<[1], [0], [0], [1], [0, 0, 1, 1], [], []>} : vector<8x128xf32>, vector<128x512xf32>, vector<8x512xf32> -> vector<8x512xf32>
    %19 = arith.addf %16, %18 : vector<8x512xf32>
    %20 = vector.extract_strided_slice %19 {offsets = [0, 0], sizes = [8, 128], strides = [1, 1]} : vector<8x512xf32> to vector<8x128xf32>
    %cst_18 = arith.constant 5.000000e-01 : f32
    %21 = vector.broadcast %cst_18 : f32 to vector<8x128xf32>
    %22 = arith.mulf %21, %20 : vector<8x128xf32>
    %23 = math.tanh %22 : vector<8x128xf32>
    %cst_19 = arith.constant 5.000000e-01 : f32
    %24 = vector.broadcast %cst_19 : f32 to vector<8x128xf32>
    %25 = arith.mulf %24, %23 : vector<8x128xf32>
    %cst_20 = arith.constant 5.000000e-01 : f32
    %26 = vector.broadcast %cst_20 : f32 to vector<8x128xf32>
    %27 = arith.addf %25, %26 : vector<8x128xf32>
    %28 = vector.extract_strided_slice %19 {offsets = [0, 128], sizes = [8, 128], strides = [1, 1]} : vector<8x512xf32> to vector<8x128xf32>
    %cst_21 = arith.constant 5.000000e-01 : f32
    %29 = vector.broadcast %cst_21 : f32 to vector<8x128xf32>
    %30 = arith.mulf %29, %28 : vector<8x128xf32>
    %31 = math.tanh %30 : vector<8x128xf32>
    %cst_22 = arith.constant 5.000000e-01 : f32
    %32 = vector.broadcast %cst_22 : f32 to vector<8x128xf32>
    %33 = arith.mulf %32, %31 : vector<8x128xf32>
    %cst_23 = arith.constant 5.000000e-01 : f32
    %34 = vector.broadcast %cst_23 : f32 to vector<8x128xf32>
    %35 = arith.addf %33, %34 : vector<8x128xf32>
    %36 = vector.extract_strided_slice %19 {offsets = [0, 256], sizes = [8, 128], strides = [1, 1]} : vector<8x512xf32> to vector<8x128xf32>
    %37 = math.tanh %36 : vector<8x128xf32>
    %38 = vector.extract_strided_slice %19 {offsets = [0, 384], sizes = [8, 128], strides = [1, 1]} : vector<8x512xf32> to vector<8x128xf32>
    %cst_24 = arith.constant 5.000000e-01 : f32
    %39 = vector.broadcast %cst_24 : f32 to vector<8x128xf32>
    %40 = arith.mulf %39, %38 : vector<8x128xf32>
    %41 = math.tanh %40 : vector<8x128xf32>
    %cst_25 = arith.constant 5.000000e-01 : f32
    %42 = vector.broadcast %cst_25 : f32 to vector<8x128xf32>
    %43 = arith.mulf %42, %41 : vector<8x128xf32>
    %cst_26 = arith.constant 5.000000e-01 : f32
    %44 = vector.broadcast %cst_26 : f32 to vector<8x128xf32>
    %45 = arith.addf %43, %44 : vector<8x128xf32>
    %46 = arith.mulf %35, %12 : vector<8x128xf32>
    %47 = arith.mulf %27, %37 : vector<8x128xf32>
    %48 = arith.addf %46, %47 : vector<8x128xf32>
    %49 = math.tanh %48 : vector<8x128xf32>
    %50 = arith.mulf %45, %49 : vector<8x128xf32>
    %51 = vector.shape_cast %50 : vector<8x128xf32> to vector<1x8x128xf32>
    %52 = arith.index_cast %c0_i32_13 : i32 to index
    %c0_27 = arith.constant 0 : index
    %c0_28 = arith.constant 0 : index
    %53 = vector.load %arg8[%52, %c0_27, %c0_28] : memref<8x8x128xf32, #tpu.memory_space<vmem>>, vector<1x8x128xf32>
    tpu.vector_store %arg8[%52, %c0_27, %c0_28], %51 {strides = array<i32>} : memref<8x8x128xf32, #tpu.memory_space<vmem>>, vector<1x8x128xf32>,
    %c1_i32 = arith.constant 1 : i32
    %c8_i32_29 = arith.constant 8 : i32
    %54 = arith.muli %c1_i32, %c8_i32_29 : i32
    %55 = tpu.assume_multiple %54, 8 : i32
    %56 = arith.index_cast %55 : i32 to index
    %c0_30 = arith.constant 0 : index
    %57 = vector.load %arg13[%56, %c0_30] : memref<64x512xf32, #tpu.memory_space<vmem>>, vector<8x512xf32>
    %c0_31 = arith.constant 0 : index
    %c0_32 = arith.constant 0 : index
    %58 = vector.load %arg4[%c0_31, %c0_32] : memref<128x512xf32, #tpu.memory_space<vmem>>, vector<128x512xf32>
    %cst_33 = arith.constant dense<0.000000e+00> : vector<8x512xf32>
    %59 = tpu.matmul %50, %58, %cst_33 {dimension_numbers = #tpu.dot_dimension_numbers<[1], [0], [0], [1], [0, 0, 1, 1], [], []>} : vector<8x128xf32>, vector<128x512xf32>, vector<8x512xf32> -> vector<8x512xf32>
    %60 = arith.addf %57, %59 : vector<8x512xf32>
    %61 = vector.extract_strided_slice %60 {offsets = [0, 0], sizes = [8, 128], strides = [1, 1]} : vector<8x512xf32> to vector<8x128xf32>
    %cst_34 = arith.constant 5.000000e-01 : f32
    %62 = vector.broadcast %cst_34 : f32 to vector<8x128xf32>
    %63 = arith.mulf %62, %61 : vector<8x128xf32>
    %64 = math.tanh %63 : vector<8x128xf32>
    %cst_35 = arith.constant 5.000000e-01 : f32
    %65 = vector.broadcast %cst_35 : f32 to vector<8x128xf32>
    %66 = arith.mulf %65, %64 : vector<8x128xf32>
    %cst_36 = arith.constant 5.000000e-01 : f32
    %67 = vector.broadcast %cst_36 : f32 to vector<8x128xf32>
    %68 = arith.addf %66, %67 : vector<8x128xf32>
    %69 = vector.extract_strided_slice %60 {offsets = [0, 128], sizes = [8, 128], strides = [1, 1]} : vector<8x512xf32> to vector<8x128xf32>
    %cst_37 = arith.constant 5.000000e-01 : f32
    %70 = vector.broadcast %cst_37 : f32 to vector<8x128xf32>
    %71 = arith.mulf %70, %69 : vector<8x128xf32>
    %72 = math.tanh %71 : vector<8x128xf32>
    %cst_38 = arith.constant 5.000000e-01 : f32
    %73 = vector.broadcast %cst_38 : f32 to vector<8x128xf32>
    %74 = arith.mulf %73, %72 : vector<8x128xf32>
    %cst_39 = arith.constant 5.000000e-01 : f32
    %75 = vector.broadcast %cst_39 : f32 to vector<8x128xf32>
    %76 = arith.addf %74, %75 : vector<8x128xf32>
    %77 = vector.extract_strided_slice %60 {offsets = [0, 256], sizes = [8, 128], strides = [1, 1]} : vector<8x512xf32> to vector<8x128xf32>
    %78 = math.tanh %77 : vector<8x128xf32>
    %79 = vector.extract_strided_slice %60 {offsets = [0, 384], sizes = [8, 128], strides = [1, 1]} : vector<8x512xf32> to vector<8x128xf32>
    %cst_40 = arith.constant 5.000000e-01 : f32
    %80 = vector.broadcast %cst_40 : f32 to vector<8x128xf32>
    %81 = arith.mulf %80, %79 : vector<8x128xf32>
    %82 = math.tanh %81 : vector<8x128xf32>
    %cst_41 = arith.constant 5.000000e-01 : f32
    %83 = vector.broadcast %cst_41 : f32 to vector<8x128xf32>
    %84 = arith.mulf %83, %82 : vector<8x128xf32>
    %cst_42 = arith.constant 5.000000e-01 : f32
    %85 = vector.broadcast %cst_42 : f32 to vector<8x128xf32>
    %86 = arith.addf %84, %85 : vector<8x128xf32>
    %87 = arith.mulf %76, %48 : vector<8x128xf32>
    %88 = arith.mulf %68, %78 : vector<8x128xf32>
    %89 = arith.addf %87, %88 : vector<8x128xf32>
    %90 = math.tanh %89 : vector<8x128xf32>
    %91 = arith.mulf %86, %90 : vector<8x128xf32>
    %92 = vector.shape_cast %91 : vector<8x128xf32> to vector<1x8x128xf32>
    %93 = arith.index_cast %c1_i32 : i32 to index
    %c0_43 = arith.constant 0 : index
    %c0_44 = arith.constant 0 : index
    %94 = vector.load %arg8[%93, %c0_43, %c0_44] : memref<8x8x128xf32, #tpu.memory_space<vmem>>, vector<1x8x128xf32>
    tpu.vector_store %arg8[%93, %c0_43, %c0_44], %92 {strides = array<i32>} : memref<8x8x128xf32, #tpu.memory_space<vmem>>, vector<1x8x128xf32>,
    %c2_i32 = arith.constant 2 : i32
    %c8_i32_45 = arith.constant 8 : i32
    %95 = arith.muli %c2_i32, %c8_i32_45 : i32
    %96 = tpu.assume_multiple %95, 8 : i32
    %97 = arith.index_cast %96 : i32 to index
    %c0_46 = arith.constant 0 : index
    %98 = vector.load %arg13[%97, %c0_46] : memref<64x512xf32, #tpu.memory_space<vmem>>, vector<8x512xf32>
    %c0_47 = arith.constant 0 : index
    %c0_48 = arith.constant 0 : index
    %99 = vector.load %arg4[%c0_47, %c0_48] : memref<128x512xf32, #tpu.memory_space<vmem>>, vector<128x512xf32>
    %cst_49 = arith.constant dense<0.000000e+00> : vector<8x512xf32>
    %100 = tpu.matmul %91, %99, %cst_49 {dimension_numbers = #tpu.dot_dimension_numbers<[1], [0], [0], [1], [0, 0, 1, 1], [], []>} : vector<8x128xf32>, vector<128x512xf32>, vector<8x512xf32> -> vector<8x512xf32>
    %101 = arith.addf %98, %100 : vector<8x512xf32>
    %102 = vector.extract_strided_slice %101 {offsets = [0, 0], sizes = [8, 128], strides = [1, 1]} : vector<8x512xf32> to vector<8x128xf32>
    %cst_50 = arith.constant 5.000000e-01 : f32
    %103 = vector.broadcast %cst_50 : f32 to vector<8x128xf32>
    %104 = arith.mulf %103, %102 : vector<8x128xf32>
    %105 = math.tanh %104 : vector<8x128xf32>
    %cst_51 = arith.constant 5.000000e-01 : f32
    %106 = vector.broadcast %cst_51 : f32 to vector<8x128xf32>
    %107 = arith.mulf %106, %105 : vector<8x128xf32>
    %cst_52 = arith.constant 5.000000e-01 : f32
    %108 = vector.broadcast %cst_52 : f32 to vector<8x128xf32>
    %109 = arith.addf %107, %108 : vector<8x128xf32>
    %110 = vector.extract_strided_slice %101 {offsets = [0, 128], sizes = [8, 128], strides = [1, 1]} : vector<8x512xf32> to vector<8x128xf32>
    %cst_53 = arith.constant 5.000000e-01 : f32
    %111 = vector.broadcast %cst_53 : f32 to vector<8x128xf32>
    %112 = arith.mulf %111, %110 : vector<8x128xf32>
    %113 = math.tanh %112 : vector<8x128xf32>
    %cst_54 = arith.constant 5.000000e-01 : f32
    %114 = vector.broadcast %cst_54 : f32 to vector<8x128xf32>
    %115 = arith.mulf %114, %113 : vector<8x128xf32>
    %cst_55 = arith.constant 5.000000e-01 : f32
    %116 = vector.broadcast %cst_55 : f32 to vector<8x128xf32>
    %117 = arith.addf %115, %116 : vector<8x128xf32>
    %118 = vector.extract_strided_slice %101 {offsets = [0, 256], sizes = [8, 128], strides = [1, 1]} : vector<8x512xf32> to vector<8x128xf32>
    %119 = math.tanh %118 : vector<8x128xf32>
    %120 = vector.extract_strided_slice %101 {offsets = [0, 384], sizes = [8, 128], strides = [1, 1]} : vector<8x512xf32> to vector<8x128xf32>
    %cst_56 = arith.constant 5.000000e-01 : f32
    %121 = vector.broadcast %cst_56 : f32 to vector<8x128xf32>
    %122 = arith.mulf %121, %120 : vector<8x128xf32>
    %123 = math.tanh %122 : vector<8x128xf32>
    %cst_57 = arith.constant 5.000000e-01 : f32
    %124 = vector.broadcast %cst_57 : f32 to vector<8x128xf32>
    %125 = arith.mulf %124, %123 : vector<8x128xf32>
    %cst_58 = arith.constant 5.000000e-01 : f32
    %126 = vector.broadcast %cst_58 : f32 to vector<8x128xf32>
    %127 = arith.addf %125, %126 : vector<8x128xf32>
    %128 = arith.mulf %117, %89 : vector<8x128xf32>
    %129 = arith.mulf %109, %119 : vector<8x128xf32>
    %130 = arith.addf %128, %129 : vector<8x128xf32>
    %131 = math.tanh %130 : vector<8x128xf32>
    %132 = arith.mulf %127, %131 : vector<8x128xf32>
    %133 = vector.shape_cast %132 : vector<8x128xf32> to vector<1x8x128xf32>
    %134 = arith.index_cast %c2_i32 : i32 to index
    %c0_59 = arith.constant 0 : index
    %c0_60 = arith.constant 0 : index
    %135 = vector.load %arg8[%134, %c0_59, %c0_60] : memref<8x8x128xf32, #tpu.memory_space<vmem>>, vector<1x8x128xf32>
    tpu.vector_store %arg8[%134, %c0_59, %c0_60], %133 {strides = array<i32>} : memref<8x8x128xf32, #tpu.memory_space<vmem>>, vector<1x8x128xf32>,
    %c3_i32 = arith.constant 3 : i32
    %c8_i32_61 = arith.constant 8 : i32
    %136 = arith.muli %c3_i32, %c8_i32_61 : i32
    %137 = tpu.assume_multiple %136, 8 : i32
    %138 = arith.index_cast %137 : i32 to index
    %c0_62 = arith.constant 0 : index
    %139 = vector.load %arg13[%138, %c0_62] : memref<64x512xf32, #tpu.memory_space<vmem>>, vector<8x512xf32>
    %c0_63 = arith.constant 0 : index
    %c0_64 = arith.constant 0 : index
    %140 = vector.load %arg4[%c0_63, %c0_64] : memref<128x512xf32, #tpu.memory_space<vmem>>, vector<128x512xf32>
    %cst_65 = arith.constant dense<0.000000e+00> : vector<8x512xf32>
    %141 = tpu.matmul %132, %140, %cst_65 {dimension_numbers = #tpu.dot_dimension_numbers<[1], [0], [0], [1], [0, 0, 1, 1], [], []>} : vector<8x128xf32>, vector<128x512xf32>, vector<8x512xf32> -> vector<8x512xf32>
    %142 = arith.addf %139, %141 : vector<8x512xf32>
    %143 = vector.extract_strided_slice %142 {offsets = [0, 0], sizes = [8, 128], strides = [1, 1]} : vector<8x512xf32> to vector<8x128xf32>
    %cst_66 = arith.constant 5.000000e-01 : f32
    %144 = vector.broadcast %cst_66 : f32 to vector<8x128xf32>
    %145 = arith.mulf %144, %143 : vector<8x128xf32>
    %146 = math.tanh %145 : vector<8x128xf32>
    %cst_67 = arith.constant 5.000000e-01 : f32
    %147 = vector.broadcast %cst_67 : f32 to vector<8x128xf32>
    %148 = arith.mulf %147, %146 : vector<8x128xf32>
    %cst_68 = arith.constant 5.000000e-01 : f32
    %149 = vector.broadcast %cst_68 : f32 to vector<8x128xf32>
    %150 = arith.addf %148, %149 : vector<8x128xf32>
    %151 = vector.extract_strided_slice %142 {offsets = [0, 128], sizes = [8, 128], strides = [1, 1]} : vector<8x512xf32> to vector<8x128xf32>
    %cst_69 = arith.constant 5.000000e-01 : f32
    %152 = vector.broadcast %cst_69 : f32 to vector<8x128xf32>
    %153 = arith.mulf %152, %151 : vector<8x128xf32>
    %154 = math.tanh %153 : vector<8x128xf32>
    %cst_70 = arith.constant 5.000000e-01 : f32
    %155 = vector.broadcast %cst_70 : f32 to vector<8x128xf32>
    %156 = arith.mulf %155, %154 : vector<8x128xf32>
    %cst_71 = arith.constant 5.000000e-01 : f32
    %157 = vector.broadcast %cst_71 : f32 to vector<8x128xf32>
    %158 = arith.addf %156, %157 : vector<8x128xf32>
    %159 = vector.extract_strided_slice %142 {offsets = [0, 256], sizes = [8, 128], strides = [1, 1]} : vector<8x512xf32> to vector<8x128xf32>
    %160 = math.tanh %159 : vector<8x128xf32>
    %161 = vector.extract_strided_slice %142 {offsets = [0, 384], sizes = [8, 128], strides = [1, 1]} : vector<8x512xf32> to vector<8x128xf32>
    %cst_72 = arith.constant 5.000000e-01 : f32
    %162 = vector.broadcast %cst_72 : f32 to vector<8x128xf32>
    %163 = arith.mulf %162, %161 : vector<8x128xf32>
    %164 = math.tanh %163 : vector<8x128xf32>
    %cst_73 = arith.constant 5.000000e-01 : f32
    %165 = vector.broadcast %cst_73 : f32 to vector<8x128xf32>
    %166 = arith.mulf %165, %164 : vector<8x128xf32>
    %cst_74 = arith.constant 5.000000e-01 : f32
    %167 = vector.broadcast %cst_74 : f32 to vector<8x128xf32>
    %168 = arith.addf %166, %167 : vector<8x128xf32>
    %169 = arith.mulf %158, %130 : vector<8x128xf32>
    %170 = arith.mulf %150, %160 : vector<8x128xf32>
    %171 = arith.addf %169, %170 : vector<8x128xf32>
    %172 = math.tanh %171 : vector<8x128xf32>
    %173 = arith.mulf %168, %172 : vector<8x128xf32>
    %174 = vector.shape_cast %173 : vector<8x128xf32> to vector<1x8x128xf32>
    %175 = arith.index_cast %c3_i32 : i32 to index
    %c0_75 = arith.constant 0 : index
    %c0_76 = arith.constant 0 : index
    %176 = vector.load %arg8[%175, %c0_75, %c0_76] : memref<8x8x128xf32, #tpu.memory_space<vmem>>, vector<1x8x128xf32>
    tpu.vector_store %arg8[%175, %c0_75, %c0_76], %174 {strides = array<i32>} : memref<8x8x128xf32, #tpu.memory_space<vmem>>, vector<1x8x128xf32>,
    %c4_i32 = arith.constant 4 : i32
    %c8_i32_77 = arith.constant 8 : i32
    %177 = arith.muli %c4_i32, %c8_i32_77 : i32
    %178 = tpu.assume_multiple %177, 8 : i32
    %179 = arith.index_cast %178 : i32 to index
    %c0_78 = arith.constant 0 : index
    %180 = vector.load %arg13[%179, %c0_78] : memref<64x512xf32, #tpu.memory_space<vmem>>, vector<8x512xf32>
    %c0_79 = arith.constant 0 : index
    %c0_80 = arith.constant 0 : index
    %181 = vector.load %arg4[%c0_79, %c0_80] : memref<128x512xf32, #tpu.memory_space<vmem>>, vector<128x512xf32>
    %cst_81 = arith.constant dense<0.000000e+00> : vector<8x512xf32>
    %182 = tpu.matmul %173, %181, %cst_81 {dimension_numbers = #tpu.dot_dimension_numbers<[1], [0], [0], [1], [0, 0, 1, 1], [], []>} : vector<8x128xf32>, vector<128x512xf32>, vector<8x512xf32> -> vector<8x512xf32>
    %183 = arith.addf %180, %182 : vector<8x512xf32>
    %184 = vector.extract_strided_slice %183 {offsets = [0, 0], sizes = [8, 128], strides = [1, 1]} : vector<8x512xf32> to vector<8x128xf32>
    %cst_82 = arith.constant 5.000000e-01 : f32
    %185 = vector.broadcast %cst_82 : f32 to vector<8x128xf32>
    %186 = arith.mulf %185, %184 : vector<8x128xf32>
    %187 = math.tanh %186 : vector<8x128xf32>
    %cst_83 = arith.constant 5.000000e-01 : f32
    %188 = vector.broadcast %cst_83 : f32 to vector<8x128xf32>
    %189 = arith.mulf %188, %187 : vector<8x128xf32>
    %cst_84 = arith.constant 5.000000e-01 : f32
    %190 = vector.broadcast %cst_84 : f32 to vector<8x128xf32>
    %191 = arith.addf %189, %190 : vector<8x128xf32>
    %192 = vector.extract_strided_slice %183 {offsets = [0, 128], sizes = [8, 128], strides = [1, 1]} : vector<8x512xf32> to vector<8x128xf32>
    %cst_85 = arith.constant 5.000000e-01 : f32
    %193 = vector.broadcast %cst_85 : f32 to vector<8x128xf32>
    %194 = arith.mulf %193, %192 : vector<8x128xf32>
    %195 = math.tanh %194 : vector<8x128xf32>
    %cst_86 = arith.constant 5.000000e-01 : f32
    %196 = vector.broadcast %cst_86 : f32 to vector<8x128xf32>
    %197 = arith.mulf %196, %195 : vector<8x128xf32>
    %cst_87 = arith.constant 5.000000e-01 : f32
    %198 = vector.broadcast %cst_87 : f32 to vector<8x128xf32>
    %199 = arith.addf %197, %198 : vector<8x128xf32>
    %200 = vector.extract_strided_slice %183 {offsets = [0, 256], sizes = [8, 128], strides = [1, 1]} : vector<8x512xf32> to vector<8x128xf32>
    %201 = math.tanh %200 : vector<8x128xf32>
    %202 = vector.extract_strided_slice %183 {offsets = [0, 384], sizes = [8, 128], strides = [1, 1]} : vector<8x512xf32> to vector<8x128xf32>
    %cst_88 = arith.constant 5.000000e-01 : f32
    %203 = vector.broadcast %cst_88 : f32 to vector<8x128xf32>
    %204 = arith.mulf %203, %202 : vector<8x128xf32>
    %205 = math.tanh %204 : vector<8x128xf32>
    %cst_89 = arith.constant 5.000000e-01 : f32
    %206 = vector.broadcast %cst_89 : f32 to vector<8x128xf32>
    %207 = arith.mulf %206, %205 : vector<8x128xf32>
    %cst_90 = arith.constant 5.000000e-01 : f32
    %208 = vector.broadcast %cst_90 : f32 to vector<8x128xf32>
    %209 = arith.addf %207, %208 : vector<8x128xf32>
    %210 = arith.mulf %199, %171 : vector<8x128xf32>
    %211 = arith.mulf %191, %201 : vector<8x128xf32>
    %212 = arith.addf %210, %211 : vector<8x128xf32>
    %213 = math.tanh %212 : vector<8x128xf32>
    %214 = arith.mulf %209, %213 : vector<8x128xf32>
    %215 = vector.shape_cast %214 : vector<8x128xf32> to vector<1x8x128xf32>
    %216 = arith.index_cast %c4_i32 : i32 to index
    %c0_91 = arith.constant 0 : index
    %c0_92 = arith.constant 0 : index
    %217 = vector.load %arg8[%216, %c0_91, %c0_92] : memref<8x8x128xf32, #tpu.memory_space<vmem>>, vector<1x8x128xf32>
    tpu.vector_store %arg8[%216, %c0_91, %c0_92], %215 {strides = array<i32>} : memref<8x8x128xf32, #tpu.memory_space<vmem>>, vector<1x8x128xf32>,
    %c5_i32 = arith.constant 5 : i32
    %c8_i32_93 = arith.constant 8 : i32
    %218 = arith.muli %c5_i32, %c8_i32_93 : i32
    %219 = tpu.assume_multiple %218, 8 : i32
    %220 = arith.index_cast %219 : i32 to index
    %c0_94 = arith.constant 0 : index
    %221 = vector.load %arg13[%220, %c0_94] : memref<64x512xf32, #tpu.memory_space<vmem>>, vector<8x512xf32>
    %c0_95 = arith.constant 0 : index
    %c0_96 = arith.constant 0 : index
    %222 = vector.load %arg4[%c0_95, %c0_96] : memref<128x512xf32, #tpu.memory_space<vmem>>, vector<128x512xf32>
    %cst_97 = arith.constant dense<0.000000e+00> : vector<8x512xf32>
    %223 = tpu.matmul %214, %222, %cst_97 {dimension_numbers = #tpu.dot_dimension_numbers<[1], [0], [0], [1], [0, 0, 1, 1], [], []>} : vector<8x128xf32>, vector<128x512xf32>, vector<8x512xf32> -> vector<8x512xf32>
    %224 = arith.addf %221, %223 : vector<8x512xf32>
    %225 = vector.extract_strided_slice %224 {offsets = [0, 0], sizes = [8, 128], strides = [1, 1]} : vector<8x512xf32> to vector<8x128xf32>
    %cst_98 = arith.constant 5.000000e-01 : f32
    %226 = vector.broadcast %cst_98 : f32 to vector<8x128xf32>
    %227 = arith.mulf %226, %225 : vector<8x128xf32>
    %228 = math.tanh %227 : vector<8x128xf32>
    %cst_99 = arith.constant 5.000000e-01 : f32
    %229 = vector.broadcast %cst_99 : f32 to vector<8x128xf32>
    %230 = arith.mulf %229, %228 : vector<8x128xf32>
    %cst_100 = arith.constant 5.000000e-01 : f32
    %231 = vector.broadcast %cst_100 : f32 to vector<8x128xf32>
    %232 = arith.addf %230, %231 : vector<8x128xf32>
    %233 = vector.extract_strided_slice %224 {offsets = [0, 128], sizes = [8, 128], strides = [1, 1]} : vector<8x512xf32> to vector<8x128xf32>
    %cst_101 = arith.constant 5.000000e-01 : f32
    %234 = vector.broadcast %cst_101 : f32 to vector<8x128xf32>
    %235 = arith.mulf %234, %233 : vector<8x128xf32>
    %236 = math.tanh %235 : vector<8x128xf32>
    %cst_102 = arith.constant 5.000000e-01 : f32
    %237 = vector.broadcast %cst_102 : f32 to vector<8x128xf32>
    %238 = arith.mulf %237, %236 : vector<8x128xf32>
    %cst_103 = arith.constant 5.000000e-01 : f32
    %239 = vector.broadcast %cst_103 : f32 to vector<8x128xf32>
    %240 = arith.addf %238, %239 : vector<8x128xf32>
    %241 = vector.extract_strided_slice %224 {offsets = [0, 256], sizes = [8, 128], strides = [1, 1]} : vector<8x512xf32> to vector<8x128xf32>
    %242 = math.tanh %241 : vector<8x128xf32>
    %243 = vector.extract_strided_slice %224 {offsets = [0, 384], sizes = [8, 128], strides = [1, 1]} : vector<8x512xf32> to vector<8x128xf32>
    %cst_104 = arith.constant 5.000000e-01 : f32
    %244 = vector.broadcast %cst_104 : f32 to vector<8x128xf32>
    %245 = arith.mulf %244, %243 : vector<8x128xf32>
    %246 = math.tanh %245 : vector<8x128xf32>
    %cst_105 = arith.constant 5.000000e-01 : f32
    %247 = vector.broadcast %cst_105 : f32 to vector<8x128xf32>
    %248 = arith.mulf %247, %246 : vector<8x128xf32>
    %cst_106 = arith.constant 5.000000e-01 : f32
    %249 = vector.broadcast %cst_106 : f32 to vector<8x128xf32>
    %250 = arith.addf %248, %249 : vector<8x128xf32>
    %251 = arith.mulf %240, %212 : vector<8x128xf32>
    %252 = arith.mulf %232, %242 : vector<8x128xf32>
    %253 = arith.addf %251, %252 : vector<8x128xf32>
    %254 = math.tanh %253 : vector<8x128xf32>
    %255 = arith.mulf %250, %254 : vector<8x128xf32>
    %256 = vector.shape_cast %255 : vector<8x128xf32> to vector<1x8x128xf32>
    %257 = arith.index_cast %c5_i32 : i32 to index
    %c0_107 = arith.constant 0 : index
    %c0_108 = arith.constant 0 : index
    %258 = vector.load %arg8[%257, %c0_107, %c0_108] : memref<8x8x128xf32, #tpu.memory_space<vmem>>, vector<1x8x128xf32>
    tpu.vector_store %arg8[%257, %c0_107, %c0_108], %256 {strides = array<i32>} : memref<8x8x128xf32, #tpu.memory_space<vmem>>, vector<1x8x128xf32>,
    %c6_i32 = arith.constant 6 : i32
    %c8_i32_109 = arith.constant 8 : i32
    %259 = arith.muli %c6_i32, %c8_i32_109 : i32
    %260 = tpu.assume_multiple %259, 8 : i32
    %261 = arith.index_cast %260 : i32 to index
    %c0_110 = arith.constant 0 : index
    %262 = vector.load %arg13[%261, %c0_110] : memref<64x512xf32, #tpu.memory_space<vmem>>, vector<8x512xf32>
    %c0_111 = arith.constant 0 : index
    %c0_112 = arith.constant 0 : index
    %263 = vector.load %arg4[%c0_111, %c0_112] : memref<128x512xf32, #tpu.memory_space<vmem>>, vector<128x512xf32>
    %cst_113 = arith.constant dense<0.000000e+00> : vector<8x512xf32>
    %264 = tpu.matmul %255, %263, %cst_113 {dimension_numbers = #tpu.dot_dimension_numbers<[1], [0], [0], [1], [0, 0, 1, 1], [], []>} : vector<8x128xf32>, vector<128x512xf32>, vector<8x512xf32> -> vector<8x512xf32>
    %265 = arith.addf %262, %264 : vector<8x512xf32>
    %266 = vector.extract_strided_slice %265 {offsets = [0, 0], sizes = [8, 128], strides = [1, 1]} : vector<8x512xf32> to vector<8x128xf32>
    %cst_114 = arith.constant 5.000000e-01 : f32
    %267 = vector.broadcast %cst_114 : f32 to vector<8x128xf32>
    %268 = arith.mulf %267, %266 : vector<8x128xf32>
    %269 = math.tanh %268 : vector<8x128xf32>
    %cst_115 = arith.constant 5.000000e-01 : f32
    %270 = vector.broadcast %cst_115 : f32 to vector<8x128xf32>
    %271 = arith.mulf %270, %269 : vector<8x128xf32>
    %cst_116 = arith.constant 5.000000e-01 : f32
    %272 = vector.broadcast %cst_116 : f32 to vector<8x128xf32>
    %273 = arith.addf %271, %272 : vector<8x128xf32>
    %274 = vector.extract_strided_slice %265 {offsets = [0, 128], sizes = [8, 128], strides = [1, 1]} : vector<8x512xf32> to vector<8x128xf32>
    %cst_117 = arith.constant 5.000000e-01 : f32
    %275 = vector.broadcast %cst_117 : f32 to vector<8x128xf32>
    %276 = arith.mulf %275, %274 : vector<8x128xf32>
    %277 = math.tanh %276 : vector<8x128xf32>
    %cst_118 = arith.constant 5.000000e-01 : f32
    %278 = vector.broadcast %cst_118 : f32 to vector<8x128xf32>
    %279 = arith.mulf %278, %277 : vector<8x128xf32>
    %cst_119 = arith.constant 5.000000e-01 : f32
    %280 = vector.broadcast %cst_119 : f32 to vector<8x128xf32>
    %281 = arith.addf %279, %280 : vector<8x128xf32>
    %282 = vector.extract_strided_slice %265 {offsets = [0, 256], sizes = [8, 128], strides = [1, 1]} : vector<8x512xf32> to vector<8x128xf32>
    %283 = math.tanh %282 : vector<8x128xf32>
    %284 = vector.extract_strided_slice %265 {offsets = [0, 384], sizes = [8, 128], strides = [1, 1]} : vector<8x512xf32> to vector<8x128xf32>
    %cst_120 = arith.constant 5.000000e-01 : f32
    %285 = vector.broadcast %cst_120 : f32 to vector<8x128xf32>
    %286 = arith.mulf %285, %284 : vector<8x128xf32>
    %287 = math.tanh %286 : vector<8x128xf32>
    %cst_121 = arith.constant 5.000000e-01 : f32
    %288 = vector.broadcast %cst_121 : f32 to vector<8x128xf32>
    %289 = arith.mulf %288, %287 : vector<8x128xf32>
    %cst_122 = arith.constant 5.000000e-01 : f32
    %290 = vector.broadcast %cst_122 : f32 to vector<8x128xf32>
    %291 = arith.addf %289, %290 : vector<8x128xf32>
    %292 = arith.mulf %281, %253 : vector<8x128xf32>
    %293 = arith.mulf %273, %283 : vector<8x128xf32>
    %294 = arith.addf %292, %293 : vector<8x128xf32>
    %295 = math.tanh %294 : vector<8x128xf32>
    %296 = arith.mulf %291, %295 : vector<8x128xf32>
    %297 = vector.shape_cast %296 : vector<8x128xf32> to vector<1x8x128xf32>
    %298 = arith.index_cast %c6_i32 : i32 to index
    %c0_123 = arith.constant 0 : index
    %c0_124 = arith.constant 0 : index
    %299 = vector.load %arg8[%298, %c0_123, %c0_124] : memref<8x8x128xf32, #tpu.memory_space<vmem>>, vector<1x8x128xf32>
    tpu.vector_store %arg8[%298, %c0_123, %c0_124], %297 {strides = array<i32>} : memref<8x8x128xf32, #tpu.memory_space<vmem>>, vector<1x8x128xf32>,
    %c7_i32 = arith.constant 7 : i32
    %c8_i32_125 = arith.constant 8 : i32
    %300 = arith.muli %c7_i32, %c8_i32_125 : i32
    %301 = tpu.assume_multiple %300, 8 : i32
    %302 = arith.index_cast %301 : i32 to index
    %c0_126 = arith.constant 0 : index
    %303 = vector.load %arg13[%302, %c0_126] : memref<64x512xf32, #tpu.memory_space<vmem>>, vector<8x512xf32>
    %c0_127 = arith.constant 0 : index
    %c0_128 = arith.constant 0 : index
    %304 = vector.load %arg4[%c0_127, %c0_128] : memref<128x512xf32, #tpu.memory_space<vmem>>, vector<128x512xf32>
    %cst_129 = arith.constant dense<0.000000e+00> : vector<8x512xf32>
    %305 = tpu.matmul %296, %304, %cst_129 {dimension_numbers = #tpu.dot_dimension_numbers<[1], [0], [0], [1], [0, 0, 1, 1], [], []>} : vector<8x128xf32>, vector<128x512xf32>, vector<8x512xf32> -> vector<8x512xf32>
    %306 = arith.addf %303, %305 : vector<8x512xf32>
    %307 = vector.extract_strided_slice %306 {offsets = [0, 0], sizes = [8, 128], strides = [1, 1]} : vector<8x512xf32> to vector<8x128xf32>
    %cst_130 = arith.constant 5.000000e-01 : f32
    %308 = vector.broadcast %cst_130 : f32 to vector<8x128xf32>
    %309 = arith.mulf %308, %307 : vector<8x128xf32>
    %310 = math.tanh %309 : vector<8x128xf32>
    %cst_131 = arith.constant 5.000000e-01 : f32
    %311 = vector.broadcast %cst_131 : f32 to vector<8x128xf32>
    %312 = arith.mulf %311, %310 : vector<8x128xf32>
    %cst_132 = arith.constant 5.000000e-01 : f32
    %313 = vector.broadcast %cst_132 : f32 to vector<8x128xf32>
    %314 = arith.addf %312, %313 : vector<8x128xf32>
    %315 = vector.extract_strided_slice %306 {offsets = [0, 128], sizes = [8, 128], strides = [1, 1]} : vector<8x512xf32> to vector<8x128xf32>
    %cst_133 = arith.constant 5.000000e-01 : f32
    %316 = vector.broadcast %cst_133 : f32 to vector<8x128xf32>
    %317 = arith.mulf %316, %315 : vector<8x128xf32>
    %318 = math.tanh %317 : vector<8x128xf32>
    %cst_134 = arith.constant 5.000000e-01 : f32
    %319 = vector.broadcast %cst_134 : f32 to vector<8x128xf32>
    %320 = arith.mulf %319, %318 : vector<8x128xf32>
    %cst_135 = arith.constant 5.000000e-01 : f32
    %321 = vector.broadcast %cst_135 : f32 to vector<8x128xf32>
    %322 = arith.addf %320, %321 : vector<8x128xf32>
    %323 = vector.extract_strided_slice %306 {offsets = [0, 256], sizes = [8, 128], strides = [1, 1]} : vector<8x512xf32> to vector<8x128xf32>
    %324 = math.tanh %323 : vector<8x128xf32>
    %325 = vector.extract_strided_slice %306 {offsets = [0, 384], sizes = [8, 128], strides = [1, 1]} : vector<8x512xf32> to vector<8x128xf32>
    %cst_136 = arith.constant 5.000000e-01 : f32
    %326 = vector.broadcast %cst_136 : f32 to vector<8x128xf32>
    %327 = arith.mulf %326, %325 : vector<8x128xf32>
    %328 = math.tanh %327 : vector<8x128xf32>
    %cst_137 = arith.constant 5.000000e-01 : f32
    %329 = vector.broadcast %cst_137 : f32 to vector<8x128xf32>
    %330 = arith.mulf %329, %328 : vector<8x128xf32>
    %cst_138 = arith.constant 5.000000e-01 : f32
    %331 = vector.broadcast %cst_138 : f32 to vector<8x128xf32>
    %332 = arith.addf %330, %331 : vector<8x128xf32>
    %333 = arith.mulf %322, %294 : vector<8x128xf32>
    %334 = arith.mulf %314, %324 : vector<8x128xf32>
    %335 = arith.addf %333, %334 : vector<8x128xf32>
    %336 = math.tanh %335 : vector<8x128xf32>
    %337 = arith.mulf %332, %336 : vector<8x128xf32>
    %338 = vector.shape_cast %337 : vector<8x128xf32> to vector<1x8x128xf32>
    %339 = arith.index_cast %c7_i32 : i32 to index
    %c0_139 = arith.constant 0 : index
    %c0_140 = arith.constant 0 : index
    %340 = vector.load %arg8[%339, %c0_139, %c0_140] : memref<8x8x128xf32, #tpu.memory_space<vmem>>, vector<1x8x128xf32>
    tpu.vector_store %arg8[%339, %c0_139, %c0_140], %338 {strides = array<i32>} : memref<8x8x128xf32, #tpu.memory_space<vmem>>, vector<1x8x128xf32>,
    %c8_i32_141 = arith.constant 8 : i32
    %c0_142 = arith.constant 0 : index
    %c0_143 = arith.constant 0 : index
    %341 = vector.load %arg11[%c0_142, %c0_143] : memref<8x128xf32, #tpu.memory_space<vmem>>, vector<8x128xf32>
    tpu.vector_store %arg11[%c0_142, %c0_143], %337 {strides = array<i32>} : memref<8x128xf32, #tpu.memory_space<vmem>>, vector<8x128xf32>,
    %c0_144 = arith.constant 0 : index
    %c0_145 = arith.constant 0 : index
    %342 = vector.load %arg12[%c0_144, %c0_145] : memref<8x128xf32, #tpu.memory_space<vmem>>, vector<8x128xf32>
    tpu.vector_store %arg12[%c0_144, %c0_145], %335 {strides = array<i32>} : memref<8x128xf32, #tpu.memory_space<vmem>>, vector<8x128xf32>,
    %c0_i32_146 = arith.constant 0 : i32
    %343 = arith.cmpi eq, %arg1, %c0_i32_146 : i32
    %344 = arith.extui %343 : i1 to i32
    %c0_i32_147 = arith.constant 0 : i32
    %345 = arith.cmpi ne, %344, %c0_i32_147 : i32
    scf.if %345 {
      %c0_148 = arith.constant 0 : index
      %c0_149 = arith.constant 0 : index
      %346 = vector.load %arg9[%c0_148, %c0_149] : memref<8x128xf32, #tpu.memory_space<vmem>>, vector<8x128xf32>
      tpu.vector_store %arg9[%c0_148, %c0_149], %337 {strides = array<i32>} : memref<8x128xf32, #tpu.memory_space<vmem>>, vector<8x128xf32>,
      %c0_150 = arith.constant 0 : index
      %c0_151 = arith.constant 0 : index
      %347 = vector.load %arg10[%c0_150, %c0_151] : memref<8x128xf32, #tpu.memory_space<vmem>>, vector<8x128xf32>
      tpu.vector_store %arg10[%c0_150, %c0_151], %335 {strides = array<i32>} : memref<8x128xf32, #tpu.memory_space<vmem>>, vector<8x128xf32>,
    } else {
    }
    return
  }
  func.func @transform_0(%arg0: i32, %arg1: i32) -> (i32, i32, i32) {
    %c0_i32 = arith.constant 0 : i32
    %c0_i32_0 = arith.constant 0 : i32
    return %arg1, %arg0, %c0_i32 : i32, i32, i32
  }
  func.func @transform_1(%arg0: i32, %arg1: i32) -> (i32, i32) {
    %c0_i32 = arith.constant 0 : i32
    %c0_i32_0 = arith.constant 0 : i32
    %c0_i32_1 = arith.constant 0 : i32
    return %c0_i32, %c0_i32_0 : i32, i32
  }
  func.func @transform_2(%arg0: i32, %arg1: i32) -> (i32, i32) {
    %c0_i32 = arith.constant 0 : i32
    %c0_i32_0 = arith.constant 0 : i32
    %c0_i32_1 = arith.constant 0 : i32
    return %c0_i32, %c0_i32_0 : i32, i32
  }
  func.func @transform_3(%arg0: i32, %arg1: i32) -> (i32, i32) {
    %c0_i32 = arith.constant 0 : i32
    %c0_i32_0 = arith.constant 0 : i32
    %c0_i32_1 = arith.constant 0 : i32
    return %c0_i32, %c0_i32_0 : i32, i32
  }
  func.func @transform_4(%arg0: i32, %arg1: i32) -> (i32, i32) {
    %c0_i32 = arith.constant 0 : i32
    %c0_i32_0 = arith.constant 0 : i32
    return %arg0, %c0_i32 : i32, i32
  }
  func.func @transform_5(%arg0: i32, %arg1: i32) -> (i32, i32) {
    %c0_i32 = arith.constant 0 : i32
    %c0_i32_0 = arith.constant 0 : i32
    return %arg0, %c0_i32 : i32, i32
  }
  func.func @transform_6(%arg0: i32, %arg1: i32) -> (i32, i32, i32) {
    %c0_i32 = arith.constant 0 : i32
    %c0_i32_0 = arith.constant 0 : i32
    return %arg1, %arg0, %c0_i32 : i32, i32, i32
  }
  func.func @transform_7(%arg0: i32, %arg1: i32) -> (i32, i32) {
    %c0_i32 = arith.constant 0 : i32
    %c0_i32_0 = arith.constant 0 : i32
    return %arg0, %c0_i32 : i32, i32
  }
  func.func @transform_8(%arg0: i32, %arg1: i32) -> (i32, i32) {
    %c0_i32 = arith.constant 0 : i32
    %c0_i32_0 = arith.constant 0 : i32
    return %arg0, %c0_i32 : i32, i32
  }
}

</mosaic_0001>

<llo_original>
// kernel: tpu_custom_call.1
$region0: #{tpu_custom_call.1}
  #allocation0 [shape = 'u32[]', space=smem, size = 0x4, offset = 0x4, fixed_abs, tag = 'smem constant byte address 0x4 - core index']
  #allocation1 [shape = 'u32[144,128]{1,0:T(1,128)}', space=vmem, size = 0x12000, scoped, tag = 'internal scratch']
  #allocation2 [shape = 'f32[8,128]{1,0:T(8,128)}', space=vmem, size = 0x1000, scoped, tag = 'scratch operand']
  #allocation3 [shape = 'f32[8,128]{1,0:T(8,128)}', space=vmem, size = 0x1000, scoped, tag = 'scratch operand']
  #allocation4 [shape = 'f32[64,512]{1,0:T(8,128)}', space=vmem, size = 0x20000, scoped, tag = 'scratch operand']
  %s0 = inlined_call_operand.hbm [shape: f32[8,8,128], index: 0, kind: input, shape index: {}]
  %s1 = inlined_call_operand.hbm [shape: f32[128,512], index: 1, kind: input, shape index: {}]
  %s2 = inlined_call_operand.hbm [shape: f32[128,512], index: 2, kind: input, shape index: {}]
  %s3 = inlined_call_operand.hbm [shape: f32[1,512], index: 3, kind: input, shape index: {}]
  %s4 = inlined_call_operand.vmem [shape: f32[8,128], index: 4, kind: input, shape index: {}]
  %s5 = inlined_call_operand.vmem [shape: f32[8,128], index: 5, kind: input, shape index: {}]
  %s6 = inlined_call_operand.hbm [shape: f32[8,8,128], index: 6, kind: output, shape index: {0}]
  %s7 = inlined_call_operand.hbm [shape: f32[8,128], index: 7, kind: output, shape index: {1}]
  %s8 = inlined_call_operand.hbm [shape: f32[8,128], index: 8, kind: output, shape index: {2}]
  %9 = xla_tuple %s6, %s7, %s8
  %s10 = sld [smem:[#allocation0]]
  $region74: #{tpu_custom_call.1} parent=0
    _
  %s12 = ssub.s32 1, %s10
  %s13 = scalar_select 0, %s12, %s10
  $region1: #{tpu_custom_call.1} parent=0
    #allocation5 [shape = 'u8[32768]{0}', space=vmem, size = 0x8000, scoped, tag = 'input window, operand 0, single buffered']
    #allocation6 [shape = 's32[1]{0}', space=sflag, size = 0x4, scoped, tag = 'scoped memory for tpu_custom_call.1']
    #allocation7 [shape = 's32[1]{0}', space=sflag, size = 0x4, scoped, tag = 'scoped memory for tpu_custom_call.1']
    #allocation8 [shape = 'u8[262144]{0}', space=vmem, size = 0x40000, scoped, tag = 'input window, operand 1, single buffered']
    #allocation9 [shape = 's32[1]{0}', space=sflag, size = 0x4, scoped, tag = 'scoped memory for tpu_custom_call.1']
    #allocation10 [shape = 'u8[262144]{0}', space=vmem, size = 0x40000, scoped, tag = 'input window, operand 2, single buffered']
    #allocation11 [shape = 'u8[2048]{0}', space=vmem, size = 0x800, scoped, tag = 'input window, operand 3, single buffered']
    #allocation12 [shape = 's32[1]{0}', space=sflag, size = 0x4, scoped, tag = 'scoped memory for tpu_custom_call.1']
    #allocation13 [shape = 'u8[32768]{0}', space=vmem, size = 0x8000, scoped, tag = 'output window, operand 0, single buffered']
    #allocation14 [shape = 'u8[4096]{0}', space=vmem, size = 0x1000, scoped, tag = 'output window, operand 1, single buffered']
    #allocation15 [shape = 's32[1]{0}', space=sflag, size = 0x4, scoped, tag = 'scoped memory for tpu_custom_call.1']
    #allocation16 [shape = 'u8[4096]{0}', space=vmem, size = 0x1000, scoped, tag = 'output window, operand 2, single buffered']
    %14 = vsyncpa [#allocation6], 0
    %15 = vsyncpa [#allocation9], 0
    %16 = vsyncpa [#allocation12], 0
    %17 = vsyncpa [#allocation7], 0
    %18 = vsyncpa [#allocation15], 0
    // Predicated region
    $region2: #{tpu_custom_call.1} parent=1 // pred_check
      _
    $region3: #{tpu_custom_call.1} parent=1 // pred_check_branch
      %20 = sbr.rel (0) target = $region5
    $region4: #{tpu_custom_call.1} parent=1 // pred_region
      %s22 = ssub.s32 1024, 1024
      %23 = vsyncadd [#allocation6], %s22
      %s24 = sshll.u32 [#allocation5], 4
      %s25 = int_to_ptr.vmem [resolvable:$true] %s24
      %30 = dma.hbm_to_vmem [thread:$0]  %s0, 1024, %s25, [#allocation6], 128, 128, 8
    $region5: #{tpu_custom_call.1} parent=1 // pred_fallthru
      _
    // Predicated region
    $region6: #{tpu_custom_call.1} parent=1 // pred_check
      _
    $region7: #{tpu_custom_call.1} parent=1 // pred_check_branch
      %32 = sbr.rel (0) target = $region9
    $region8: #{tpu_custom_call.1} parent=1 // pred_region
      %s34 = ssub.s32 8192, 8192
      %35 = vsyncadd [#allocation9], %s34
      %s36 = sshll.u32 [#allocation8], 4
      %s37 = int_to_ptr.vmem [resolvable:$true] %s36
      %42 = dma.hbm_to_vmem [thread:$0]  %s1, 8192, %s37, [#allocation9], 512, 512, 32
    $region9: #{tpu_custom_call.1} parent=1 // pred_fallthru
      _
    // Predicated region
    $region10: #{tpu_custom_call.1} parent=1 // pred_check
      _
    $region11: #{tpu_custom_call.1} parent=1 // pred_check_branch
      %44 = sbr.rel (0) target = $region13
    $region12: #{tpu_custom_call.1} parent=1 // pred_region
      %s46 = ssub.s32 8192, 8192
      %47 = vsyncadd [#allocation9], %s46
      %s48 = sshll.u32 [#allocation10], 4
      %s49 = int_to_ptr.vmem [resolvable:$true] %s48
      %54 = dma.hbm_to_vmem [thread:$0]  %s2, 8192, %s49, [#allocation9], 512, 512, 32
    $region13: #{tpu_custom_call.1} parent=1 // pred_fallthru
      _
    // Predicated region
    $region14: #{tpu_custom_call.1} parent=1 // pred_check
      _
    $region15: #{tpu_custom_call.1} parent=1 // pred_check_branch
      %56 = sbr.rel (0) target = $region17
    $region16: #{tpu_custom_call.1} parent=1 // pred_region
      %s58 = ssub.s32 64, 64
      %59 = vsyncadd [#allocation12], %s58
      %s61 = sshll.u32 [#allocation11], 4
      %s62 = int_to_ptr.vmem [resolvable:$true] %s61
      %64 = dma.hbm_to_vmem [thread:$0]  %s3, 64, %s62, [#allocation12]
    $region17: #{tpu_custom_call.1} parent=1 // pred_fallthru
      _
    // Predicated region
    $region18: #{tpu_custom_call.1} parent=1 // pred_check
      _
    $region19: #{tpu_custom_call.1} parent=1 // pred_check_branch
      %66 = sbr.rel (0) target = $region21
    $region20: #{tpu_custom_call.1} parent=1 // pred_region
      _
    $region21: #{tpu_custom_call.1} parent=1 // pred_fallthru
      _
    // Predicated region
    $region22: #{tpu_custom_call.1} parent=1 // pred_check
      _
    $region23: #{tpu_custom_call.1} parent=1 // pred_check_branch
      %68 = sbr.rel (0) target = $region25
    $region24: #{tpu_custom_call.1} parent=1 // pred_region
      _
    $region25: #{tpu_custom_call.1} parent=1 // pred_fallthru
      _
    // Predicated region
    $region26: #{tpu_custom_call.1} parent=1 // pred_check
      _
    $region27: #{tpu_custom_call.1} parent=1 // pred_check_branch
      %70 = sbr.rel (0) target = $region29
    $region28: #{tpu_custom_call.1} parent=1 // pred_region
      %71 = dma.done [#allocation6], 1024
    $region29: #{tpu_custom_call.1} parent=1 // pred_fallthru
      _
    // Predicated region
    $region30: #{tpu_custom_call.1} parent=1 // pred_check
      _
    $region31: #{tpu_custom_call.1} parent=1 // pred_check_branch
      %73 = sbr.rel (0) target = $region33
    $region32: #{tpu_custom_call.1} parent=1 // pred_region
      %74 = dma.done [#allocation9], 8192
    $region33: #{tpu_custom_call.1} parent=1 // pred_fallthru
      _
    // Predicated region
    $region34: #{tpu_custom_call.1} parent=1 // pred_check
      _
    $region35: #{tpu_custom_call.1} parent=1 // pred_check_branch
      %76 = sbr.rel (0) target = $region37
    $region36: #{tpu_custom_call.1} parent=1 // pred_region
      %77 = dma.done [#allocation9], 8192
    $region37: #{tpu_custom_call.1} parent=1 // pred_fallthru
      _
    // Predicated region
    $region38: #{tpu_custom_call.1} parent=1 // pred_check
      _
    $region39: #{tpu_custom_call.1} parent=1 // pred_check_branch
      %79 = sbr.rel (0) target = $region41
    $region40: #{tpu_custom_call.1} parent=1 // pred_region
      %80 = dma.done [#allocation12], 64
    $region41: #{tpu_custom_call.1} parent=1 // pred_fallthru
      _
    %p81 = scmp.eq.s32.totalorder 0, 0
    // Predicated region
    $region42: #{tpu_custom_call.1} parent=1 // pred_check
      %p82 = pneg %p81
    $region43: #{tpu_custom_call.1} parent=1 // pred_check_branch
      %84 = sbr.rel (%p82) target = $region45
    $region44: #{tpu_custom_call.1} parent=1 // pred_region
      %v85 = vld [vmem:[%s4] sm:$0xff]
      %86 = vst [vmem:[#allocation2] sm:$0xff] %v85
      %v87 = vld [vmem:[%s5] sm:$0xff]
      %88 = vst [vmem:[#allocation3] sm:$0xff] %v87
    $region45: #{tpu_custom_call.1} parent=1 // pred_fallthru
      _
    %v89 = vld [vmem:[#allocation5] sm:$0xff]
    %v90 = vld [vmem:[#allocation5 + $0x8] sm:$0xff]
    %v91 = vld [vmem:[#allocation5 + $0x10] sm:$0xff]
    %v92 = vld [vmem:[#allocation5 + $0x18] sm:$0xff]
    %v93 = vld [vmem:[#allocation5 + $0x20] sm:$0xff]
    %v94 = vld [vmem:[#allocation5 + $0x28] sm:$0xff]
    %v95 = vld [vmem:[#allocation5 + $0x30] sm:$0xff]
    %v96 = vld [vmem:[#allocation5 + $0x38] sm:$0xff]
    %v97 = vld [vmem:[#allocation8] sm:$0xff]
    %v98 = vld [vmem:[#allocation8 + $0x8] sm:$0xff]
    %v99 = vld [vmem:[#allocation8 + $0x10] sm:$0xff]
    %v100 = vld [vmem:[#allocation8 + $0x18] sm:$0xff]
    %v101 = vld [vmem:[#allocation8 + $0x20] sm:$0xff]
    %v102 = vld [vmem:[#allocation8 + $0x28] sm:$0xff]
    %v103 = vld [vmem:[#allocation8 + $0x30] sm:$0xff]
    %v104 = vld [vmem:[#allocation8 + $0x38] sm:$0xff]
    %v105 = vld [vmem:[#allocation8 + $0x40] sm:$0xff]
    %v106 = vld [vmem:[#allocation8 + $0x48] sm:$0xff]
    %v107 = vld [vmem:[#allocation8 + $0x50] sm:$0xff]
    %v108 = vld [vmem:[#allocation8 + $0x58] sm:$0xff]
    %v109 = vld [vmem:[#allocation8 + $0x60] sm:$0xff]
    %v110 = vld [vmem:[#allocation8 + $0x68] sm:$0xff]
    %v111 = vld [vmem:[#allocation8 + $0x70] sm:$0xff]
    %v112 = vld [vmem:[#allocation8 + $0x78] sm:$0xff]
    %v113 = vld [vmem:[#allocation8 + $0x80] sm:$0xff]
    %v114 = vld [vmem:[#allocation8 + $0x88] sm:$0xff]
    %v115 = vld [vmem:[#allocation8 + $0x90] sm:$0xff]
    %v116 = vld [vmem:[#allocation8 + $0x98] sm:$0xff]
    %v117 = vld [vmem:[#allocation8 + $0xa0] sm:$0xff]
    %v118 = vld [vmem:[#allocation8 + $0xa8] sm:$0xff]
    %v119 = vld [vmem:[#allocation8 + $0xb0] sm:$0xff]
    %v120 = vld [vmem:[#allocation8 + $0xb8] sm:$0xff]
    %v121 = vld [vmem:[#allocation8 + $0xc0] sm:$0xff]
    %v122 = vld [vmem:[#allocation8 + $0xc8] sm:$0xff]
    %v123 = vld [vmem:[#allocation8 + $0xd0] sm:$0xff]
    %v124 = vld [vmem:[#allocation8 + $0xd8] sm:$0xff]
    %v125 = vld [vmem:[#allocation8 + $0xe0] sm:$0xff]
    %v126 = vld [vmem:[#allocation8 + $0xe8] sm:$0xff]
    %v127 = vld [vmem:[#allocation8 + $0xf0] sm:$0xff]
    %v128 = vld [vmem:[#allocation8 + $0xf8] sm:$0xff]
    %v129 = vld [vmem:[#allocation8 + $0x100] sm:$0xff]
    %v130 = vld [vmem:[#allocation8 + $0x108] sm:$0xff]
    %v131 = vld [vmem:[#allocation8 + $0x110] sm:$0xff]
    %v132 = vld [vmem:[#allocation8 + $0x118] sm:$0xff]
    %v133 = vld [vmem:[#allocation8 + $0x120] sm:$0xff]
    %v134 = vld [vmem:[#allocation8 + $0x128] sm:$0xff]
    %v135 = vld [vmem:[#allocation8 + $0x130] sm:$0xff]
    %v136 = vld [vmem:[#allocation8 + $0x138] sm:$0xff]
    %v137 = vld [vmem:[#allocation8 + $0x140] sm:$0xff]
    %v138 = vld [vmem:[#allocation8 + $0x148] sm:$0xff]
    %v139 = vld [vmem:[#allocation8 + $0x150] sm:$0xff]
    %v140 = vld [vmem:[#allocation8 + $0x158] sm:$0xff]
    %v141 = vld [vmem:[#allocation8 + $0x160] sm:$0xff]
    %v142 = vld [vmem:[#allocation8 + $0x168] sm:$0xff]
    %v143 = vld [vmem:[#allocation8 + $0x170] sm:$0xff]
    %v144 = vld [vmem:[#allocation8 + $0x178] sm:$0xff]
    %v145 = vld [vmem:[#allocation8 + $0x180] sm:$0xff]
    %v146 = vld [vmem:[#allocation8 + $0x188] sm:$0xff]
    %v147 = vld [vmem:[#allocation8 + $0x190] sm:$0xff]
    %v148 = vld [vmem:[#allocation8 + $0x198] sm:$0xff]
    %v149 = vld [vmem:[#allocation8 + $0x1a0] sm:$0xff]
    %v150 = vld [vmem:[#allocation8 + $0x1a8] sm:$0xff]
    %v151 = vld [vmem:[#allocation8 + $0x1b0] sm:$0xff]
    %v152 = vld [vmem:[#allocation8 + $0x1b8] sm:$0xff]
    %v153 = vld [vmem:[#allocation8 + $0x1c0] sm:$0xff]
    %v154 = vld [vmem:[#allocation8 + $0x1c8] sm:$0xff]
    %v155 = vld [vmem:[#allocation8 + $0x1d0] sm:$0xff]
    %v156 = vld [vmem:[#allocation8 + $0x1d8] sm:$0xff]
    %v157 = vld [vmem:[#allocation8 + $0x1e0] sm:$0xff]
    %v158 = vld [vmem:[#allocation8 + $0x1e8] sm:$0xff]
    %v159 = vld [vmem:[#allocation8 + $0x1f0] sm:$0xff]
    %v160 = vld [vmem:[#allocation8 + $0x1f8] sm:$0xff]
    %v161 = vld [vmem:[#allocation11] sm:$0xf]
    %v163 = vlaneseq
    %v164 = vshrl.u32 %v163, 7
    %v165 = vsub.s32 0, %v164
    %v166 = vrot.slane %v161, %v165
    %v167 = vlaneseq
    %v168 = vshrl.u32 %v167, 7
    %v169 = vsub.s32 1, %v168
    %v170 = vrot.slane %v161, %v169
    %v171 = vlaneseq
    %v172 = vshrl.u32 %v171, 7
    %v173 = vsub.s32 2, %v172
    %v174 = vrot.slane %v161, %v173
    %v175 = vlaneseq
    %v176 = vshrl.u32 %v175, 7
    %v177 = vsub.s32 3, %v176
    %v178 = vrot.slane %v161, %v177
    %183 = vmatprep.subr.mxu0 %v98
    %184 = vmatpush1.msra.mxu0 %v97
    %185 = vmatprep.subr.mxu0 %v102
    %186 = vmatpush1.msra.mxu0 %v101
    %187 = vmatprep.subr.mxu0 %v106
    %188 = vmatpush1.msra.mxu0 %v105
    %189 = vmatprep.subr.mxu0 %v110
    %190 = vmatpush1.msra.mxu0 %v109
    %191 = vmatprep.subr.mxu0 %v114
    %192 = vmatpush1.msra.mxu0 %v113
    %193 = vmatprep.subr.mxu0 %v118
    %194 = vmatpush1.msra.mxu0 %v117
    %195 = vmatprep.subr.mxu0 %v122
    %196 = vmatpush1.msra.mxu0 %v121
    %197 = vmatprep.subr.mxu0 %v126
    %198 = vmatpush1.msra.mxu0 %v125
    %199 = vmatprep.subr.mxu0 %v130
    %200 = vmatpush1.msra.mxu0 %v129
    %201 = vmatprep.subr.mxu0 %v134
    %202 = vmatpush1.msra.mxu0 %v133
    %203 = vmatprep.subr.mxu0 %v138
    %204 = vmatpush1.msra.mxu0 %v137
    %205 = vmatprep.subr.mxu0 %v142
    %206 = vmatpush1.msra.mxu0 %v141
    %207 = vmatprep.subr.mxu0 %v146
    %208 = vmatpush1.msra.mxu0 %v145
    %209 = vmatprep.subr.mxu0 %v150
    %210 = vmatpush1.msra.mxu0 %v149
    %211 = vmatprep.subr.mxu0 %v154
    %212 = vmatpush1.msra.mxu0 %v153
    %213 = vmatprep.subr.mxu0 %v158
    %214 = vmatpush1.msra.mxu0 %v157
    %215 = vmatprep.subr.mxu0 0.0
    %216 = vmatpush1.msra.mxu0 0.0
    %217 = vmatprep.subr.mxu0 0.0
    %218 = vmatpush1.msra.mxu0 0.0
    %219 = vmatprep.subr.mxu0 0.0
    %220 = vmatpush1.msra.mxu0 0.0
    %221 = vmatprep.subr.mxu0 0.0
    %222 = vmatpush1.msra.mxu0 0.0
    %223 = vmatprep.subr.mxu0 0.0
    %224 = vmatpush1.msra.mxu0 0.0
    %225 = vmatprep.subr.mxu0 0.0
    %226 = vmatpush1.msra.mxu0 0.0
    %227 = vmatprep.subr.mxu0 0.0
    %228 = vmatpush1.msra.mxu0 0.0
    %229 = vmatprep.subr.mxu0 0.0
    %230 = vmatpush1.msra.mxu0 0.0
    %231 = vmatprep.subr.mxu0 0.0
    %232 = vmatpush1.msra.mxu0 0.0
    %233 = vmatprep.subr.mxu0 0.0
    %234 = vmatpush1.msra.mxu0 0.0
    %235 = vmatprep.subr.mxu0 0.0
    %236 = vmatpush1.msra.mxu0 0.0
    %237 = vmatprep.subr.mxu0 0.0
    %238 = vmatpush1.msra.mxu0 0.0
    %239 = vmatprep.subr.mxu0 0.0
    %240 = vmatpush1.msra.mxu0 0.0
    %241 = vmatprep.subr.mxu0 0.0
    %242 = vmatpush1.msra.mxu0 0.0
    %243 = vmatprep.subr.mxu0 0.0
    %244 = vmatpush1.msra.mxu0 0.0
    %245 = vmatprep.subr.mxu0 0.0
    %246 = vmatpush1.msra.mxu0 0.0
    %247 = vmatprep.mubr.f32.mxu0 0.0
    %248 = vmatmul.mubr.f32.gmra.mrb[0].mxu0 %v89
    %v249 = vpop.f32.mrb[0].mxu0
    %v250 = vadd.f32 %v166, %v249
    %v251 = vpop.f32.mrb[0].mxu0
    %v252 = vadd.f32 %v170, %v251
    %253 = vmatprep.mubr.f32.mxu0 0.0
    %254 = vmatmul.mubr.f32.gmra.mrb[0].mxu0 %v90
    %v255 = vpop.f32.mrb[0].mxu0
    %v256 = vadd.f32 %v166, %v255
    %v257 = vpop.f32.mrb[0].mxu0
    %v258 = vadd.f32 %v170, %v257
    %259 = vmatprep.mubr.f32.mxu0 0.0
    %260 = vmatmul.mubr.f32.gmra.mrb[0].mxu0 %v91
    %v261 = vpop.f32.mrb[0].mxu0
    %v262 = vadd.f32 %v166, %v261
    %v263 = vpop.f32.mrb[0].mxu0
    %v264 = vadd.f32 %v170, %v263
    %265 = vmatprep.mubr.f32.mxu0 0.0
    %266 = vmatmul.mubr.f32.gmra.mrb[0].mxu0 %v92
    %v267 = vpop.f32.mrb[0].mxu0
    %v268 = vadd.f32 %v166, %v267
    %v269 = vpop.f32.mrb[0].mxu0
    %v270 = vadd.f32 %v170, %v269
    %271 = vmatprep.mubr.f32.mxu0 0.0
    %272 = vmatmul.mubr.f32.gmra.mrb[0].mxu0 %v93
    %v273 = vpop.f32.mrb[0].mxu0
    %v274 = vadd.f32 %v166, %v273
    %v275 = vpop.f32.mrb[0].mxu0
    %v276 = vadd.f32 %v170, %v275
    %277 = vmatprep.mubr.f32.mxu0 0.0
    %278 = vmatmul.mubr.f32.gmra.mrb[0].mxu0 %v94
    %v279 = vpop.f32.mrb[0].mxu0
    %v280 = vadd.f32 %v166, %v279
    %v281 = vpop.f32.mrb[0].mxu0
    %v282 = vadd.f32 %v170, %v281
    %283 = vmatprep.mubr.f32.mxu0 0.0
    %284 = vmatmul.mubr.f32.gmra.mrb[0].mxu0 %v95
    %v285 = vpop.f32.mrb[0].mxu0
    %v286 = vadd.f32 %v166, %v285
    %v287 = vpop.f32.mrb[0].mxu0
    %v288 = vadd.f32 %v170, %v287
    %289 = vmatprep.mubr.f32.mxu0 0.0
    %290 = vmatmul.mubr.f32.gmra.mrb[0].mxu0 %v96
    %v291 = vpop.f32.mrb[0].mxu0
    %v292 = vadd.f32 %v166, %v291
    %v293 = vpop.f32.mrb[0].mxu0
    %v294 = vadd.f32 %v170, %v293
    %295 = vdwg.mxu0
    %296 = vmatprep.subr.mxu0 %v100
    %297 = vmatpush1.msra.mxu0 %v99
    %298 = vmatprep.subr.mxu0 %v104
    %299 = vmatpush1.msra.mxu0 %v103
    %300 = vmatprep.subr.mxu0 %v108
    %301 = vmatpush1.msra.mxu0 %v107
    %302 = vmatprep.subr.mxu0 %v112
    %303 = vmatpush1.msra.mxu0 %v111
    %304 = vmatprep.subr.mxu0 %v116
    %305 = vmatpush1.msra.mxu0 %v115
    %306 = vmatprep.subr.mxu0 %v120
    %307 = vmatpush1.msra.mxu0 %v119
    %308 = vmatprep.subr.mxu0 %v124
    %309 = vmatpush1.msra.mxu0 %v123
    %310 = vmatprep.subr.mxu0 %v128
    %311 = vmatpush1.msra.mxu0 %v127
    %312 = vmatprep.subr.mxu0 %v132
    %313 = vmatpush1.msra.mxu0 %v131
    %314 = vmatprep.subr.mxu0 %v136
    %315 = vmatpush1.msra.mxu0 %v135
    %316 = vmatprep.subr.mxu0 %v140
    %317 = vmatpush1.msra.mxu0 %v139
    %318 = vmatprep.subr.mxu0 %v144
    %319 = vmatpush1.msra.mxu0 %v143
    %320 = vmatprep.subr.mxu0 %v148
    %321 = vmatpush1.msra.mxu0 %v147
    %322 = vmatprep.subr.mxu0 %v152
    %323 = vmatpush1.msra.mxu0 %v151
    %324 = vmatprep.subr.mxu0 %v156
    %325 = vmatpush1.msra.mxu0 %v155
    %326 = vmatprep.subr.mxu0 %v160
    %327 = vmatpush1.msra.mxu0 %v159
    %328 = vmatprep.subr.mxu0 0.0
    %329 = vmatpush1.msra.mxu0 0.0
    %330 = vmatprep.subr.mxu0 0.0
    %331 = vmatpush1.msra.mxu0 0.0
    %332 = vmatprep.subr.mxu0 0.0
    %333 = vmatpush1.msra.mxu0 0.0
    %334 = vmatprep.subr.mxu0 0.0
    %335 = vmatpush1.msra.mxu0 0.0
    %336 = vmatprep.subr.mxu0 0.0
    %337 = vmatpush1.msra.mxu0 0.0
    %338 = vmatprep.subr.mxu0 0.0
    %339 = vmatpush1.msra.mxu0 0.0
    %340 = vmatprep.subr.mxu0 0.0
    %341 = vmatpush1.msra.mxu0 0.0
    %342 = vmatprep.subr.mxu0 0.0
    %343 = vmatpush1.msra.mxu0 0.0
    %344 = vmatprep.subr.mxu0 0.0
    %345 = vmatpush1.msra.mxu0 0.0
    %346 = vmatprep.subr.mxu0 0.0
    %347 = vmatpush1.msra.mxu0 0.0
    %348 = vmatprep.subr.mxu0 0.0
    %349 = vmatpush1.msra.mxu0 0.0
    %350 = vmatprep.subr.mxu0 0.0
    %351 = vmatpush1.msra.mxu0 0.0
    %352 = vmatprep.subr.mxu0 0.0
    %353 = vmatpush1.msra.mxu0 0.0
    %354 = vmatprep.subr.mxu0 0.0
    %355 = vmatpush1.msra.mxu0 0.0
    %356 = vmatprep.subr.mxu0 0.0
    %357 = vmatpush1.msra.mxu0 0.0
    %358 = vmatprep.subr.mxu0 0.0
    %359 = vmatpush1.msra.mxu0 0.0
    %360 = vmatprep.mubr.f32.mxu0 0.0
    %361 = vmatmul.mubr.f32.gmra.mrb[0].mxu0 %v89
    %v362 = vpop.f32.mrb[0].mxu0
    %v363 = vadd.f32 %v174, %v362
    %v364 = vpop.f32.mrb[0].mxu0
    %v365 = vadd.f32 %v178, %v364
    %366 = vmatprep.mubr.f32.mxu0 0.0
    %367 = vmatmul.mubr.f32.gmra.mrb[0].mxu0 %v90
    %v368 = vpop.f32.mrb[0].mxu0
    %v369 = vadd.f32 %v174, %v368
    %v370 = vpop.f32.mrb[0].mxu0
    %v371 = vadd.f32 %v178, %v370
    %372 = vmatprep.mubr.f32.mxu0 0.0
    %373 = vmatmul.mubr.f32.gmra.mrb[0].mxu0 %v91
    %v374 = vpop.f32.mrb[0].mxu0
    %v375 = vadd.f32 %v174, %v374
    %v376 = vpop.f32.mrb[0].mxu0
    %v377 = vadd.f32 %v178, %v376
    %378 = vmatprep.mubr.f32.mxu0 0.0
    %379 = vmatmul.mubr.f32.gmra.mrb[0].mxu0 %v92
    %v380 = vpop.f32.mrb[0].mxu0
    %v381 = vadd.f32 %v174, %v380
    %v382 = vpop.f32.mrb[0].mxu0
    %v383 = vadd.f32 %v178, %v382
    %384 = vmatprep.mubr.f32.mxu0 0.0
    %385 = vmatmul.mubr.f32.gmra.mrb[0].mxu0 %v93
    %v386 = vpop.f32.mrb[0].mxu0
    %v387 = vadd.f32 %v174, %v386
    %v388 = vpop.f32.mrb[0].mxu0
    %v389 = vadd.f32 %v178, %v388
    %390 = vmatprep.mubr.f32.mxu0 0.0
    %391 = vmatmul.mubr.f32.gmra.mrb[0].mxu0 %v94
    %v392 = vpop.f32.mrb[0].mxu0
    %v393 = vadd.f32 %v174, %v392
    %v394 = vpop.f32.mrb[0].mxu0
    %v395 = vadd.f32 %v178, %v394
    %396 = vmatprep.mubr.f32.mxu0 0.0
    %397 = vmatmul.mubr.f32.gmra.mrb[0].mxu0 %v95
    %v398 = vpop.f32.mrb[0].mxu0
    %v399 = vadd.f32 %v174, %v398
    %v400 = vpop.f32.mrb[0].mxu0
    %v401 = vadd.f32 %v178, %v400
    %402 = vmatprep.mubr.f32.mxu0 0.0
    %403 = vmatmul.mubr.f32.gmra.mrb[0].mxu0 %v96
    %v404 = vpop.f32.mrb[0].mxu0
    %v405 = vadd.f32 %v174, %v404
    %v406 = vpop.f32.mrb[0].mxu0
    %v407 = vadd.f32 %v178, %v406
    %408 = vdwg.mxu0
    %409 = vst [vmem:[#allocation4] sm:$0xff] %v250
    %410 = vst [vmem:[#allocation4 + $0x8] sm:$0xff] %v252
    %411 = vst [vmem:[#allocation4 + $0x10] sm:$0xff] %v363
    %412 = vst [vmem:[#allocation4 + $0x18] sm:$0xff] %v365
    %413 = vst [vmem:[#allocation4 + $0x20] sm:$0xff] %v256
    %414 = vst [vmem:[#allocation4 + $0x28] sm:$0xff] %v258
    %415 = vst [vmem:[#allocation4 + $0x30] sm:$0xff] %v369
    %416 = vst [vmem:[#allocation4 + $0x38] sm:$0xff] %v371
    %417 = vst [vmem:[#allocation4 + $0x40] sm:$0xff] %v262
    %418 = vst [vmem:[#allocation4 + $0x48] sm:$0xff] %v264
    %419 = vst [vmem:[#allocation4 + $0x50] sm:$0xff] %v375
    %420 = vst [vmem:[#allocation4 + $0x58] sm:$0xff] %v377
    %421 = vst [vmem:[#allocation4 + $0x60] sm:$0xff] %v268
    %422 = vst [vmem:[#allocation4 + $0x68] sm:$0xff] %v270
    %423 = vst [vmem:[#allocation4 + $0x70] sm:$0xff] %v381
    %424 = vst [vmem:[#allocation4 + $0x78] sm:$0xff] %v383
    %425 = vst [vmem:[#allocation4 + $0x80] sm:$0xff] %v274
    %426 = vst [vmem:[#allocation4 + $0x88] sm:$0xff] %v276
    %427 = vst [vmem:[#allocation4 + $0x90] sm:$0xff] %v387
    %428 = vst [vmem:[#allocation4 + $0x98] sm:$0xff] %v389
    %429 = vst [vmem:[#allocation4 + $0xa0] sm:$0xff] %v280
    %430 = vst [vmem:[#allocation4 + $0xa8] sm:$0xff] %v282
    %431 = vst [vmem:[#allocation4 + $0xb0] sm:$0xff] %v393
    %432 = vst [vmem:[#allocation4 + $0xb8] sm:$0xff] %v395
    %433 = vst [vmem:[#allocation4 + $0xc0] sm:$0xff] %v286
    %434 = vst [vmem:[#allocation4 + $0xc8] sm:$0xff] %v288
    %435 = vst [vmem:[#allocation4 + $0xd0] sm:$0xff] %v399
    %436 = vst [vmem:[#allocation4 + $0xd8] sm:$0xff] %v401
    %437 = vst [vmem:[#allocation4 + $0xe0] sm:$0xff] %v292
    %438 = vst [vmem:[#allocation4 + $0xe8] sm:$0xff] %v294
    %439 = vst [vmem:[#allocation4 + $0xf0] sm:$0xff] %v405
    %440 = vst [vmem:[#allocation4 + $0xf8] sm:$0xff] %v407
    %v441 = vld [vmem:[#allocation2] sm:$0xff]
    %v442 = vld [vmem:[#allocation3] sm:$0xff]
    %s443 = smul.u32 0, 4
    %s444 = smul.addr %s443, 8
    %s445 = scalar_lea.vmem [#allocation4], %s444
    %v446 = vld [vmem:[%s445] sm:$0xff]
    %v447 = vld [vmem:[%s445 + $0x8] sm:$0xff]
    %v448 = vld [vmem:[%s445 + $0x10] sm:$0xff]
    %v449 = vld [vmem:[%s445 + $0x18] sm:$0xff]
    %v450 = vld [vmem:[#allocation10] sm:$0xff]
    %v451 = vld [vmem:[#allocation10 + $0x8] sm:$0xff]
    %v452 = vld [vmem:[#allocation10 + $0x10] sm:$0xff]
    %v453 = vld [vmem:[#allocation10 + $0x18] sm:$0xff]
    %v454 = vld [vmem:[#allocation10 + $0x20] sm:$0xff]
    %v455 = vld [vmem:[#allocation10 + $0x28] sm:$0xff]
    %v456 = vld [vmem:[#allocation10 + $0x30] sm:$0xff]
    %v457 = vld [vmem:[#allocation10 + $0x38] sm:$0xff]
    %v458 = vld [vmem:[#allocation10 + $0x40] sm:$0xff]
    %v459 = vld [vmem:[#allocation10 + $0x48] sm:$0xff]
    %v460 = vld [vmem:[#allocation10 + $0x50] sm:$0xff]
    %v461 = vld [vmem:[#allocation10 + $0x58] sm:$0xff]
    %v462 = vld [vmem:[#allocation10 + $0x60] sm:$0xff]
    %v463 = vld [vmem:[#allocation10 + $0x68] sm:$0xff]
    %v464 = vld [vmem:[#allocation10 + $0x70] sm:$0xff]
    %v465 = vld [vmem:[#allocation10 + $0x78] sm:$0xff]
    %v466 = vld [vmem:[#allocation10 + $0x80] sm:$0xff]
    %v467 = vld [vmem:[#allocation10 + $0x88] sm:$0xff]
    %v468 = vld [vmem:[#allocation10 + $0x90] sm:$0xff]
    %v469 = vld [vmem:[#allocation10 + $0x98] sm:$0xff]
    %v470 = vld [vmem:[#allocation10 + $0xa0] sm:$0xff]
    %v471 = vld [vmem:[#allocation10 + $0xa8] sm:$0xff]
    %v472 = vld [vmem:[#allocation10 + $0xb0] sm:$0xff]
    %v473 = vld [vmem:[#allocation10 + $0xb8] sm:$0xff]
    %v474 = vld [vmem:[#allocation10 + $0xc0] sm:$0xff]
    %v475 = vld [vmem:[#allocation10 + $0xc8] sm:$0xff]
    %v476 = vld [vmem:[#allocation10 + $0xd0] sm:$0xff]
    %v477 = vld [vmem:[#allocation10 + $0xd8] sm:$0xff]
    %v478 = vld [vmem:[#allocation10 + $0xe0] sm:$0xff]
    %v479 = vld [vmem:[#allocation10 + $0xe8] sm:$0xff]
    %v480 = vld [vmem:[#allocation10 + $0xf0] sm:$0xff]
    %v481 = vld [vmem:[#allocation10 + $0xf8] sm:$0xff]
    %v482 = vld [vmem:[#allocation10 + $0x100] sm:$0xff]
    %v483 = vld [vmem:[#allocation10 + $0x108] sm:$0xff]
    %v484 = vld [vmem:[#allocation10 + $0x110] sm:$0xff]
    %v485 = vld [vmem:[#allocation10 + $0x118] sm:$0xff]
    %v486 = vld [vmem:[#allocation10 + $0x120] sm:$0xff]
    %v487 = vld [vmem:[#allocation10 + $0x128] sm:$0xff]
    %v488 = vld [vmem:[#allocation10 + $0x130] sm:$0xff]
    %v489 = vld [vmem:[#allocation10 + $0x138] sm:$0xff]
    %v490 = vld [vmem:[#allocation10 + $0x140] sm:$0xff]
    %v491 = vld [vmem:[#allocation10 + $0x148] sm:$0xff]
    %v492 = vld [vmem:[#allocation10 + $0x150] sm:$0xff]
    %v493 = vld [vmem:[#allocation10 + $0x158] sm:$0xff]
    %v494 = vld [vmem:[#allocation10 + $0x160] sm:$0xff]
    %v495 = vld [vmem:[#allocation10 + $0x168] sm:$0xff]
    %v496 = vld [vmem:[#allocation10 + $0x170] sm:$0xff]
    %v497 = vld [vmem:[#allocation10 + $0x178] sm:$0xff]
    %v498 = vld [vmem:[#allocation10 + $0x180] sm:$0xff]
    %v499 = vld [vmem:[#allocation10 + $0x188] sm:$0xff]
    %v500 = vld [vmem:[#allocation10 + $0x190] sm:$0xff]
    %v501 = vld [vmem:[#allocation10 + $0x198] sm:$0xff]
    %v502 = vld [vmem:[#allocation10 + $0x1a0] sm:$0xff]
    %v503 = vld [vmem:[#allocation10 + $0x1a8] sm:$0xff]
    %v504 = vld [vmem:[#allocation10 + $0x1b0] sm:$0xff]
    %v505 = vld [vmem:[#allocation10 + $0x1b8] sm:$0xff]
    %v506 = vld [vmem:[#allocation10 + $0x1c0] sm:$0xff]
    %v507 = vld [vmem:[#allocation10 + $0x1c8] sm:$0xff]
    %v508 = vld [vmem:[#allocation10 + $0x1d0] sm:$0xff]
    %v509 = vld [vmem:[#allocation10 + $0x1d8] sm:$0xff]
    %v510 = vld [vmem:[#allocation10 + $0x1e0] sm:$0xff]
    %v511 = vld [vmem:[#allocation10 + $0x1e8] sm:$0xff]
    %v512 = vld [vmem:[#allocation10 + $0x1f0] sm:$0xff]
    %v513 = vld [vmem:[#allocation10 + $0x1f8] sm:$0xff]
    %514 = vmatprep.subr.mxu0 %v451
    %515 = vmatpush1.msra.mxu0 %v450
    %516 = vmatprep.subr.mxu0 %v455
    %517 = vmatpush1.msra.mxu0 %v454
    %518 = vmatprep.subr.mxu0 %v459
    %519 = vmatpush1.msra.mxu0 %v458
    %520 = vmatprep.subr.mxu0 %v463
    %521 = vmatpush1.msra.mxu0 %v462
    %522 = vmatprep.subr.mxu0 %v467
    %523 = vmatpush1.msra.mxu0 %v466
    %524 = vmatprep.subr.mxu0 %v471
    %525 = vmatpush1.msra.mxu0 %v470
    %526 = vmatprep.subr.mxu0 %v475
    %527 = vmatpush1.msra.mxu0 %v474
    %528 = vmatprep.subr.mxu0 %v479
    %529 = vmatpush1.msra.mxu0 %v478
    %530 = vmatprep.subr.mxu0 %v483
    %531 = vmatpush1.msra.mxu0 %v482
    %532 = vmatprep.subr.mxu0 %v487
    %533 = vmatpush1.msra.mxu0 %v486
    %534 = vmatprep.subr.mxu0 %v491
    %535 = vmatpush1.msra.mxu0 %v490
    %536 = vmatprep.subr.mxu0 %v495
    %537 = vmatpush1.msra.mxu0 %v494
    %538 = vmatprep.subr.mxu0 %v499
    %539 = vmatpush1.msra.mxu0 %v498
    %540 = vmatprep.subr.mxu0 %v503
    %541 = vmatpush1.msra.mxu0 %v502
    %542 = vmatprep.subr.mxu0 %v507
    %543 = vmatpush1.msra.mxu0 %v506
    %544 = vmatprep.subr.mxu0 %v511
    %545 = vmatpush1.msra.mxu0 %v510
    %546 = vmatprep.subr.mxu0 0.0
    %547 = vmatpush1.msra.mxu0 0.0
    %548 = vmatprep.subr.mxu0 0.0
    %549 = vmatpush1.msra.mxu0 0.0
    %550 = vmatprep.subr.mxu0 0.0
    %551 = vmatpush1.msra.mxu0 0.0
    %552 = vmatprep.subr.mxu0 0.0
    %553 = vmatpush1.msra.mxu0 0.0
    %554 = vmatprep.subr.mxu0 0.0
    %555 = vmatpush1.msra.mxu0 0.0
    %556 = vmatprep.subr.mxu0 0.0
    %557 = vmatpush1.msra.mxu0 0.0
    %558 = vmatprep.subr.mxu0 0.0
    %559 = vmatpush1.msra.mxu0 0.0
    %560 = vmatprep.subr.mxu0 0.0
    %561 = vmatpush1.msra.mxu0 0.0
    %562 = vmatprep.subr.mxu0 0.0
    %563 = vmatpush1.msra.mxu0 0.0
    %564 = vmatprep.subr.mxu0 0.0
    %565 = vmatpush1.msra.mxu0 0.0
    %566 = vmatprep.subr.mxu0 0.0
    %567 = vmatpush1.msra.mxu0 0.0
    %568 = vmatprep.subr.mxu0 0.0
    %569 = vmatpush1.msra.mxu0 0.0
    %570 = vmatprep.subr.mxu0 0.0
    %571 = vmatpush1.msra.mxu0 0.0
    %572 = vmatprep.subr.mxu0 0.0
    %573 = vmatpush1.msra.mxu0 0.0
    %574 = vmatprep.subr.mxu0 0.0
    %575 = vmatpush1.msra.mxu0 0.0
    %576 = vmatprep.subr.mxu0 0.0
    %577 = vmatpush1.msra.mxu0 0.0
    %578 = vmatprep.mubr.f32.mxu0 0.0
    %579 = vmatmul.mubr.f32.gmra.mrb[0].mxu0 %v441
    %v580 = vpop.f32.mrb[0].mxu0
    %v581 = vadd.f32 0.0, %v580
    %v582 = vpop.f32.mrb[0].mxu0
    %v583 = vadd.f32 0.0, %v582
    %584 = vdwg.mxu0
    %585 = vmatprep.subr.mxu0 %v453
    %586 = vmatpush1.msra.mxu0 %v452
    %587 = vmatprep.subr.mxu0 %v457
    %588 = vmatpush1.msra.mxu0 %v456
    %589 = vmatprep.subr.mxu0 %v461
    %590 = vmatpush1.msra.mxu0 %v460
    %591 = vmatprep.subr.mxu0 %v465
    %592 = vmatpush1.msra.mxu0 %v464
    %593 = vmatprep.subr.mxu0 %v469
    %594 = vmatpush1.msra.mxu0 %v468
    %595 = vmatprep.subr.mxu0 %v473
    %596 = vmatpush1.msra.mxu0 %v472
    %597 = vmatprep.subr.mxu0 %v477
    %598 = vmatpush1.msra.mxu0 %v476
    %599 = vmatprep.subr.mxu0 %v481
    %600 = vmatpush1.msra.mxu0 %v480
    %601 = vmatprep.subr.mxu0 %v485
    %602 = vmatpush1.msra.mxu0 %v484
    %603 = vmatprep.subr.mxu0 %v489
    %604 = vmatpush1.msra.mxu0 %v488
    %605 = vmatprep.subr.mxu0 %v493
    %606 = vmatpush1.msra.mxu0 %v492
    %607 = vmatprep.subr.mxu0 %v497
    %608 = vmatpush1.msra.mxu0 %v496
    %609 = vmatprep.subr.mxu0 %v501
    %610 = vmatpush1.msra.mxu0 %v500
    %611 = vmatprep.subr.mxu0 %v505
    %612 = vmatpush1.msra.mxu0 %v504
    %613 = vmatprep.subr.mxu0 %v509
    %614 = vmatpush1.msra.mxu0 %v508
    %615 = vmatprep.subr.mxu0 %v513
    %616 = vmatpush1.msra.mxu0 %v512
    %617 = vmatprep.subr.mxu0 0.0
    %618 = vmatpush1.msra.mxu0 0.0
    %619 = vmatprep.subr.mxu0 0.0
    %620 = vmatpush1.msra.mxu0 0.0
    %621 = vmatprep.subr.mxu0 0.0
    %622 = vmatpush1.msra.mxu0 0.0
    %623 = vmatprep.subr.mxu0 0.0
    %624 = vmatpush1.msra.mxu0 0.0
    %625 = vmatprep.subr.mxu0 0.0
    %626 = vmatpush1.msra.mxu0 0.0
    %627 = vmatprep.subr.mxu0 0.0
    %628 = vmatpush1.msra.mxu0 0.0
    %629 = vmatprep.subr.mxu0 0.0
    %630 = vmatpush1.msra.mxu0 0.0
    %631 = vmatprep.subr.mxu0 0.0
    %632 = vmatpush1.msra.mxu0 0.0
    %633 = vmatprep.subr.mxu0 0.0
    %634 = vmatpush1.msra.mxu0 0.0
    %635 = vmatprep.subr.mxu0 0.0
    %636 = vmatpush1.msra.mxu0 0.0
    %637 = vmatprep.subr.mxu0 0.0
    %638 = vmatpush1.msra.mxu0 0.0
    %639 = vmatprep.subr.mxu0 0.0
    %640 = vmatpush1.msra.mxu0 0.0
    %641 = vmatprep.subr.mxu0 0.0
    %642 = vmatpush1.msra.mxu0 0.0
    %643 = vmatprep.subr.mxu0 0.0
    %644 = vmatpush1.msra.mxu0 0.0
    %645 = vmatprep.subr.mxu0 0.0
    %646 = vmatpush1.msra.mxu0 0.0
    %647 = vmatprep.subr.mxu0 0.0
    %648 = vmatpush1.msra.mxu0 0.0
    %649 = vmatprep.mubr.f32.mxu0 0.0
    %650 = vmatmul.mubr.f32.gmra.mrb[0].mxu0 %v441
    %v651 = vpop.f32.mrb[0].mxu0
    %v652 = vadd.f32 0.0, %v651
    %v653 = vpop.f32.mrb[0].mxu0
    %v654 = vadd.f32 0.0, %v653
    %655 = vdwg.mxu0
    %v656 = vadd.f32 %v446, %v581
    %v657 = vadd.f32 %v447, %v583
    %v658 = vadd.f32 %v448, %v652
    %v659 = vadd.f32 %v449, %v654
    %v660 = vmul.f32 %v656, 0.5
    %v661 = vtanh.pop %v660
    %v662 = vmul.f32 %v661, 0.5
    %v663 = vadd.f32 %v662, 0.5
    %v664 = vmul.f32 %v657, 0.5
    %v665 = vtanh.pop %v664
    %v666 = vmul.f32 %v665, 0.5
    %v667 = vadd.f32 %v666, 0.5
    %v668 = vtanh.pop %v658
    %v669 = vmul.f32 %v659, 0.5
    %v670 = vtanh.pop %v669
    %v671 = vmul.f32 %v670, 0.5
    %v672 = vadd.f32 %v671, 0.5
    %v673 = vmul.f32 %v667, %v442
    %v674 = vmul.f32 %v663, %v668
    %v675 = vadd.f32 %v673, %v674
    %v676 = vtanh.pop %v675
    %v677 = vmul.f32 %v672, %v676
    %678 = vst [vmem:[#allocation13] sm:$0xff] %v677
    %s679 = smul.u32 1, 4
    %s680 = smul.addr %s679, 8
    %s681 = scalar_lea.vmem [#allocation4], %s680
    %v682 = vld [vmem:[%s681] sm:$0xff]
    %v683 = vld [vmem:[%s681 + $0x8] sm:$0xff]
    %v684 = vld [vmem:[%s681 + $0x10] sm:$0xff]
    %v685 = vld [vmem:[%s681 + $0x18] sm:$0xff]
    %v686 = vld [vmem:[#allocation10] sm:$0xff]
    %v687 = vld [vmem:[#allocation10 + $0x8] sm:$0xff]
    %v688 = vld [vmem:[#allocation10 + $0x10] sm:$0xff]
    %v689 = vld [vmem:[#allocation10 + $0x18] sm:$0xff]
    %v690 = vld [vmem:[#allocation10 + $0x20] sm:$0xff]
    %v691 = vld [vmem:[#allocation10 + $0x28] sm:$0xff]
    %v692 = vld [vmem:[#allocation10 + $0x30] sm:$0xff]
    %v693 = vld [vmem:[#allocation10 + $0x38] sm:$0xff]
    %v694 = vld [vmem:[#allocation10 + $0x40] sm:$0xff]
    %v695 = vld [vmem:[#allocation10 + $0x48] sm:$0xff]
    %v696 = vld [vmem:[#allocation10 + $0x50] sm:$0xff]
    %v697 = vld [vmem:[#allocation10 + $0x58] sm:$0xff]
    %v698 = vld [vmem:[#allocation10 + $0x60] sm:$0xff]
    %v699 = vld [vmem:[#allocation10 + $0x68] sm:$0xff]
    %v700 = vld [vmem:[#allocation10 + $0x70] sm:$0xff]
    %v701 = vld [vmem:[#allocation10 + $0x78] sm:$0xff]
    %v702 = vld [vmem:[#allocation10 + $0x80] sm:$0xff]
    %v703 = vld [vmem:[#allocation10 + $0x88] sm:$0xff]
    %v704 = vld [vmem:[#allocation10 + $0x90] sm:$0xff]
    %v705 = vld [vmem:[#allocation10 + $0x98] sm:$0xff]
    %v706 = vld [vmem:[#allocation10 + $0xa0] sm:$0xff]
    %v707 = vld [vmem:[#allocation10 + $0xa8] sm:$0xff]
    %v708 = vld [vmem:[#allocation10 + $0xb0] sm:$0xff]
    %v709 = vld [vmem:[#allocation10 + $0xb8] sm:$0xff]
    %v710 = vld [vmem:[#allocation10 + $0xc0] sm:$0xff]
    %v711 = vld [vmem:[#allocation10 + $0xc8] sm:$0xff]
    %v712 = vld [vmem:[#allocation10 + $0xd0] sm:$0xff]
    %v713 = vld [vmem:[#allocation10 + $0xd8] sm:$0xff]
    %v714 = vld [vmem:[#allocation10 + $0xe0] sm:$0xff]
    %v715 = vld [vmem:[#allocation10 + $0xe8] sm:$0xff]
    %v716 = vld [vmem:[#allocation10 + $0xf0] sm:$0xff]
    %v717 = vld [vmem:[#allocation10 + $0xf8] sm:$0xff]
    %v718 = vld [vmem:[#allocation10 + $0x100] sm:$0xff]
    %v719 = vld [vmem:[#allocation10 + $0x108] sm:$0xff]
    %v720 = vld [vmem:[#allocation10 + $0x110] sm:$0xff]
    %v721 = vld [vmem:[#allocation10 + $0x118] sm:$0xff]
    %v722 = vld [vmem:[#allocation10 + $0x120] sm:$0xff]
    %v723 = vld [vmem:[#allocation10 + $0x128] sm:$0xff]
    %v724 = vld [vmem:[#allocation10 + $0x130] sm:$0xff]
    %v725 = vld [vmem:[#allocation10 + $0x138] sm:$0xff]
    %v726 = vld [vmem:[#allocation10 + $0x140] sm:$0xff]
    %v727 = vld [vmem:[#allocation10 + $0x148] sm:$0xff]
    %v728 = vld [vmem:[#allocation10 + $0x150] sm:$0xff]
    %v729 = vld [vmem:[#allocation10 + $0x158] sm:$0xff]
    %v730 = vld [vmem:[#allocation10 + $0x160] sm:$0xff]
    %v731 = vld [vmem:[#allocation10 + $0x168] sm:$0xff]
    %v732 = vld [vmem:[#allocation10 + $0x170] sm:$0xff]
    %v733 = vld [vmem:[#allocation10 + $0x178] sm:$0xff]
    %v734 = vld [vmem:[#allocation10 + $0x180] sm:$0xff]
    %v735 = vld [vmem:[#allocation10 + $0x188] sm:$0xff]
    %v736 = vld [vmem:[#allocation10 + $0x190] sm:$0xff]
    %v737 = vld [vmem:[#allocation10 + $0x198] sm:$0xff]
    %v738 = vld [vmem:[#allocation10 + $0x1a0] sm:$0xff]
    %v739 = vld [vmem:[#allocation10 + $0x1a8] sm:$0xff]
    %v740 = vld [vmem:[#allocation10 + $0x1b0] sm:$0xff]
    %v741 = vld [vmem:[#allocation10 + $0x1b8] sm:$0xff]
    %v742 = vld [vmem:[#allocation10 + $0x1c0] sm:$0xff]
    %v743 = vld [vmem:[#allocation10 + $0x1c8] sm:$0xff]
    %v744 = vld [vmem:[#allocation10 + $0x1d0] sm:$0xff]
    %v745 = vld [vmem:[#allocation10 + $0x1d8] sm:$0xff]
    %v746 = vld [vmem:[#allocation10 + $0x1e0] sm:$0xff]
    %v747 = vld [vmem:[#allocation10 + $0x1e8] sm:$0xff]
    %v748 = vld [vmem:[#allocation10 + $0x1f0] sm:$0xff]
    %v749 = vld [vmem:[#allocation10 + $0x1f8] sm:$0xff]
    %750 = vmatprep.subr.mxu0 %v687
    %751 = vmatpush1.msra.mxu0 %v686
    %752 = vmatprep.subr.mxu0 %v691
    %753 = vmatpush1.msra.mxu0 %v690
    %754 = vmatprep.subr.mxu0 %v695
    %755 = vmatpush1.msra.mxu0 %v694
    %756 = vmatprep.subr.mxu0 %v699
    %757 = vmatpush1.msra.mxu0 %v698
    %758 = vmatprep.subr.mxu0 %v703
    %759 = vmatpush1.msra.mxu0 %v702
    %760 = vmatprep.subr.mxu0 %v707
    %761 = vmatpush1.msra.mxu0 %v706
    %762 = vmatprep.subr.mxu0 %v711
    %763 = vmatpush1.msra.mxu0 %v710
    %764 = vmatprep.subr.mxu0 %v715
    %765 = vmatpush1.msra.mxu0 %v714
    %766 = vmatprep.subr.mxu0 %v719
    %767 = vmatpush1.msra.mxu0 %v718
    %768 = vmatprep.subr.mxu0 %v723
    %769 = vmatpush1.msra.mxu0 %v722
    %770 = vmatprep.subr.mxu0 %v727
    %771 = vmatpush1.msra.mxu0 %v726
    %772 = vmatprep.subr.mxu0 %v731
    %773 = vmatpush1.msra.mxu0 %v730
    %774 = vmatprep.subr.mxu0 %v735
    %775 = vmatpush1.msra.mxu0 %v734
    %776 = vmatprep.subr.mxu0 %v739
    %777 = vmatpush1.msra.mxu0 %v738
    %778 = vmatprep.subr.mxu0 %v743
    %779 = vmatpush1.msra.mxu0 %v742
    %780 = vmatprep.subr.mxu0 %v747
    %781 = vmatpush1.msra.mxu0 %v746
    %782 = vmatprep.subr.mxu0 0.0
    %783 = vmatpush1.msra.mxu0 0.0
    %784 = vmatprep.subr.mxu0 0.0
    %785 = vmatpush1.msra.mxu0 0.0
    %786 = vmatprep.subr.mxu0 0.0
    %787 = vmatpush1.msra.mxu0 0.0
    %788 = vmatprep.subr.mxu0 0.0
    %789 = vmatpush1.msra.mxu0 0.0
    %790 = vmatprep.subr.mxu0 0.0
    %791 = vmatpush1.msra.mxu0 0.0
    %792 = vmatprep.subr.mxu0 0.0
    %793 = vmatpush1.msra.mxu0 0.0
    %794 = vmatprep.subr.mxu0 0.0
    %795 = vmatpush1.msra.mxu0 0.0
    %796 = vmatprep.subr.mxu0 0.0
    %797 = vmatpush1.msra.mxu0 0.0
    %798 = vmatprep.subr.mxu0 0.0
    %799 = vmatpush1.msra.mxu0 0.0
    %800 = vmatprep.subr.mxu0 0.0
    %801 = vmatpush1.msra.mxu0 0.0
    %802 = vmatprep.subr.mxu0 0.0
    %803 = vmatpush1.msra.mxu0 0.0
    %804 = vmatprep.subr.mxu0 0.0
    %805 = vmatpush1.msra.mxu0 0.0
    %806 = vmatprep.subr.mxu0 0.0
    %807 = vmatpush1.msra.mxu0 0.0
    %808 = vmatprep.subr.mxu0 0.0
    %809 = vmatpush1.msra.mxu0 0.0
    %810 = vmatprep.subr.mxu0 0.0
    %811 = vmatpush1.msra.mxu0 0.0
    %812 = vmatprep.subr.mxu0 0.0
    %813 = vmatpush1.msra.mxu0 0.0
    %814 = vmatprep.mubr.f32.mxu0 0.0
    %815 = vmatmul.mubr.f32.gmra.mrb[0].mxu0 %v677
    %v816 = vpop.f32.mrb[0].mxu0
    %v817 = vadd.f32 0.0, %v816
    %v818 = vpop.f32.mrb[0].mxu0
    %v819 = vadd.f32 0.0, %v818
    %820 = vdwg.mxu0
    %821 = vmatprep.subr.mxu0 %v689
    %822 = vmatpush1.msra.mxu0 %v688
    %823 = vmatprep.subr.mxu0 %v693
    %824 = vmatpush1.msra.mxu0 %v692
    %825 = vmatprep.subr.mxu0 %v697
    %826 = vmatpush1.msra.mxu0 %v696
    %827 = vmatprep.subr.mxu0 %v701
    %828 = vmatpush1.msra.mxu0 %v700
    %829 = vmatprep.subr.mxu0 %v705
    %830 = vmatpush1.msra.mxu0 %v704
    %831 = vmatprep.subr.mxu0 %v709
    %832 = vmatpush1.msra.mxu0 %v708
    %833 = vmatprep.subr.mxu0 %v713
    %834 = vmatpush1.msra.mxu0 %v712
    %835 = vmatprep.subr.mxu0 %v717
    %836 = vmatpush1.msra.mxu0 %v716
    %837 = vmatprep.subr.mxu0 %v721
    %838 = vmatpush1.msra.mxu0 %v720
    %839 = vmatprep.subr.mxu0 %v725
    %840 = vmatpush1.msra.mxu0 %v724
    %841 = vmatprep.subr.mxu0 %v729
    %842 = vmatpush1.msra.mxu0 %v728
    %843 = vmatprep.subr.mxu0 %v733
    %844 = vmatpush1.msra.mxu0 %v732
    %845 = vmatprep.subr.mxu0 %v737
    %846 = vmatpush1.msra.mxu0 %v736
    %847 = vmatprep.subr.mxu0 %v741
    %848 = vmatpush1.msra.mxu0 %v740
    %849 = vmatprep.subr.mxu0 %v745
    %850 = vmatpush1.msra.mxu0 %v744
    %851 = vmatprep.subr.mxu0 %v749
    %852 = vmatpush1.msra.mxu0 %v748
    %853 = vmatprep.subr.mxu0 0.0
    %854 = vmatpush1.msra.mxu0 0.0
    %855 = vmatprep.subr.mxu0 0.0
    %856 = vmatpush1.msra.mxu0 0.0
    %857 = vmatprep.subr.mxu0 0.0
    %858 = vmatpush1.msra.mxu0 0.0
    %859 = vmatprep.subr.mxu0 0.0
    %860 = vmatpush1.msra.mxu0 0.0
    %861 = vmatprep.subr.mxu0 0.0
    %862 = vmatpush1.msra.mxu0 0.0
    %863 = vmatprep.subr.mxu0 0.0
    %864 = vmatpush1.msra.mxu0 0.0
    %865 = vmatprep.subr.mxu0 0.0
    %866 = vmatpush1.msra.mxu0 0.0
    %867 = vmatprep.subr.mxu0 0.0
    %868 = vmatpush1.msra.mxu0 0.0
    %869 = vmatprep.subr.mxu0 0.0
    %870 = vmatpush1.msra.mxu0 0.0
    %871 = vmatprep.subr.mxu0 0.0
    %872 = vmatpush1.msra.mxu0 0.0
    %873 = vmatprep.subr.mxu0 0.0
    %874 = vmatpush1.msra.mxu0 0.0
    %875 = vmatprep.subr.mxu0 0.0
    %876 = vmatpush1.msra.mxu0 0.0
    %877 = vmatprep.subr.mxu0 0.0
    %878 = vmatpush1.msra.mxu0 0.0
    %879 = vmatprep.subr.mxu0 0.0
    %880 = vmatpush1.msra.mxu0 0.0
    %881 = vmatprep.subr.mxu0 0.0
    %882 = vmatpush1.msra.mxu0 0.0
    %883 = vmatprep.subr.mxu0 0.0
    %884 = vmatpush1.msra.mxu0 0.0
    %885 = vmatprep.mubr.f32.mxu0 0.0
    %886 = vmatmul.mubr.f32.gmra.mrb[0].mxu0 %v677
    %v887 = vpop.f32.mrb[0].mxu0
    %v888 = vadd.f32 0.0, %v887
    %v889 = vpop.f32.mrb[0].mxu0
    %v890 = vadd.f32 0.0, %v889
    %891 = vdwg.mxu0
    %v892 = vadd.f32 %v682, %v817
    %v893 = vadd.f32 %v683, %v819
    %v894 = vadd.f32 %v684, %v888
    %v895 = vadd.f32 %v685, %v890
    %v896 = vmul.f32 %v892, 0.5
    %v897 = vtanh.pop %v896
    %v898 = vmul.f32 %v897, 0.5
    %v899 = vadd.f32 %v898, 0.5
    %v900 = vmul.f32 %v893, 0.5
    %v901 = vtanh.pop %v900
    %v902 = vmul.f32 %v901, 0.5
    %v903 = vadd.f32 %v902, 0.5
    %v904 = vtanh.pop %v894
    %v905 = vmul.f32 %v895, 0.5
    %v906 = vtanh.pop %v905
    %v907 = vmul.f32 %v906, 0.5
    %v908 = vadd.f32 %v907, 0.5
    %v909 = vmul.f32 %v903, %v675
    %v910 = vmul.f32 %v899, %v904
    %v911 = vadd.f32 %v909, %v910
    %v912 = vtanh.pop %v911
    %v913 = vmul.f32 %v908, %v912
    %s914 = scalar_lea.vmem [#allocation13], 8
    %915 = vst [vmem:[%s914] sm:$0xff] %v913
    %s916 = smul.u32 2, 4
    %s917 = smul.addr %s916, 8
    %s918 = scalar_lea.vmem [#allocation4], %s917
    %v919 = vld [vmem:[%s918] sm:$0xff]
    %v920 = vld [vmem:[%s918 + $0x8] sm:$0xff]
    %v921 = vld [vmem:[%s918 + $0x10] sm:$0xff]
    %v922 = vld [vmem:[%s918 + $0x18] sm:$0xff]
    %v923 = vld [vmem:[#allocation10] sm:$0xff]
    %v924 = vld [vmem:[#allocation10 + $0x8] sm:$0xff]
    %v925 = vld [vmem:[#allocation10 + $0x10] sm:$0xff]
    %v926 = vld [vmem:[#allocation10 + $0x18] sm:$0xff]
    %v927 = vld [vmem:[#allocation10 + $0x20] sm:$0xff]
    %v928 = vld [vmem:[#allocation10 + $0x28] sm:$0xff]
    %v929 = vld [vmem:[#allocation10 + $0x30] sm:$0xff]
    %v930 = vld [vmem:[#allocation10 + $0x38] sm:$0xff]
    %v931 = vld [vmem:[#allocation10 + $0x40] sm:$0xff]
    %v932 = vld [vmem:[#allocation10 + $0x48] sm:$0xff]
    %v933 = vld [vmem:[#allocation10 + $0x50] sm:$0xff]
    %v934 = vld [vmem:[#allocation10 + $0x58] sm:$0xff]
    %v935 = vld [vmem:[#allocation10 + $0x60] sm:$0xff]
    %v936 = vld [vmem:[#allocation10 + $0x68] sm:$0xff]
    %v937 = vld [vmem:[#allocation10 + $0x70] sm:$0xff]
    %v938 = vld [vmem:[#allocation10 + $0x78] sm:$0xff]
    %v939 = vld [vmem:[#allocation10 + $0x80] sm:$0xff]
    %v940 = vld [vmem:[#allocation10 + $0x88] sm:$0xff]
    %v941 = vld [vmem:[#allocation10 + $0x90] sm:$0xff]
    %v942 = vld [vmem:[#allocation10 + $0x98] sm:$0xff]
    %v943 = vld [vmem:[#allocation10 + $0xa0] sm:$0xff]
    %v944 = vld [vmem:[#allocation10 + $0xa8] sm:$0xff]
    %v945 = vld [vmem:[#allocation10 + $0xb0] sm:$0xff]
    %v946 = vld [vmem:[#allocation10 + $0xb8] sm:$0xff]
    %v947 = vld [vmem:[#allocation10 + $0xc0] sm:$0xff]
    %v948 = vld [vmem:[#allocation10 + $0xc8] sm:$0xff]
    %v949 = vld [vmem:[#allocation10 + $0xd0] sm:$0xff]
    %v950 = vld [vmem:[#allocation10 + $0xd8] sm:$0xff]
    %v951 = vld [vmem:[#allocation10 + $0xe0] sm:$0xff]
    %v952 = vld [vmem:[#allocation10 + $0xe8] sm:$0xff]
    %v953 = vld [vmem:[#allocation10 + $0xf0] sm:$0xff]
    %v954 = vld [vmem:[#allocation10 + $0xf8] sm:$0xff]
    %v955 = vld [vmem:[#allocation10 + $0x100] sm:$0xff]
    %v956 = vld [vmem:[#allocation10 + $0x108] sm:$0xff]
    %v957 = vld [vmem:[#allocation10 + $0x110] sm:$0xff]
    %v958 = vld [vmem:[#allocation10 + $0x118] sm:$0xff]
    %v959 = vld [vmem:[#allocation10 + $0x120] sm:$0xff]
    %v960 = vld [vmem:[#allocation10 + $0x128] sm:$0xff]
    %v961 = vld [vmem:[#allocation10 + $0x130] sm:$0xff]
    %v962 = vld [vmem:[#allocation10 + $0x138] sm:$0xff]
    %v963 = vld [vmem:[#allocation10 + $0x140] sm:$0xff]
    %v964 = vld [vmem:[#allocation10 + $0x148] sm:$0xff]
    %v965 = vld [vmem:[#allocation10 + $0x150] sm:$0xff]
    %v966 = vld [vmem:[#allocation10 + $0x158] sm:$0xff]
    %v967 = vld [vmem:[#allocation10 + $0x160] sm:$0xff]
    %v968 = vld [vmem:[#allocation10 + $0x168] sm:$0xff]
    %v969 = vld [vmem:[#allocation10 + $0x170] sm:$0xff]
    %v970 = vld [vmem:[#allocation10 + $0x178] sm:$0xff]
    %v971 = vld [vmem:[#allocation10 + $0x180] sm:$0xff]
    %v972 = vld [vmem:[#allocation10 + $0x188] sm:$0xff]
    %v973 = vld [vmem:[#allocation10 + $0x190] sm:$0xff]
    %v974 = vld [vmem:[#allocation10 + $0x198] sm:$0xff]
    %v975 = vld [vmem:[#allocation10 + $0x1a0] sm:$0xff]
    %v976 = vld [vmem:[#allocation10 + $0x1a8] sm:$0xff]
    %v977 = vld [vmem:[#allocation10 + $0x1b0] sm:$0xff]
    %v978 = vld [vmem:[#allocation10 + $0x1b8] sm:$0xff]
    %v979 = vld [vmem:[#allocation10 + $0x1c0] sm:$0xff]
    %v980 = vld [vmem:[#allocation10 + $0x1c8] sm:$0xff]
    %v981 = vld [vmem:[#allocation10 + $0x1d0] sm:$0xff]
    %v982 = vld [vmem:[#allocation10 + $0x1d8] sm:$0xff]
    %v983 = vld [vmem:[#allocation10 + $0x1e0] sm:$0xff]
    %v984 = vld [vmem:[#allocation10 + $0x1e8] sm:$0xff]
    %v985 = vld [vmem:[#allocation10 + $0x1f0] sm:$0xff]
    %v986 = vld [vmem:[#allocation10 + $0x1f8] sm:$0xff]
    %987 = vmatprep.subr.mxu0 %v924
    %988 = vmatpush1.msra.mxu0 %v923
    %989 = vmatprep.subr.mxu0 %v928
    %990 = vmatpush1.msra.mxu0 %v927
    %991 = vmatprep.subr.mxu0 %v932
    %992 = vmatpush1.msra.mxu0 %v931
    %993 = vmatprep.subr.mxu0 %v936
    %994 = vmatpush1.msra.mxu0 %v935
    %995 = vmatprep.subr.mxu0 %v940
    %996 = vmatpush1.msra.mxu0 %v939
    %997 = vmatprep.subr.mxu0 %v944
    %998 = vmatpush1.msra.mxu0 %v943
    %999 = vmatprep.subr.mxu0 %v948
    %1000 = vmatpush1.msra.mxu0 %v947
    %1001 = vmatprep.subr.mxu0 %v952
    %1002 = vmatpush1.msra.mxu0 %v951
    %1003 = vmatprep.subr.mxu0 %v956
    %1004 = vmatpush1.msra.mxu0 %v955
    %1005 = vmatprep.subr.mxu0 %v960
    %1006 = vmatpush1.msra.mxu0 %v959
    %1007 = vmatprep.subr.mxu0 %v964
    %1008 = vmatpush1.msra.mxu0 %v963
    %1009 = vmatprep.subr.mxu0 %v968
    %1010 = vmatpush1.msra.mxu0 %v967
    %1011 = vmatprep.subr.mxu0 %v972
    %1012 = vmatpush1.msra.mxu0 %v971
    %1013 = vmatprep.subr.mxu0 %v976
    %1014 = vmatpush1.msra.mxu0 %v975
    %1015 = vmatprep.subr.mxu0 %v980
    %1016 = vmatpush1.msra.mxu0 %v979
    %1017 = vmatprep.subr.mxu0 %v984
    %1018 = vmatpush1.msra.mxu0 %v983
    %1019 = vmatprep.subr.mxu0 0.0
    %1020 = vmatpush1.msra.mxu0 0.0
    %1021 = vmatprep.subr.mxu0 0.0
    %1022 = vmatpush1.msra.mxu0 0.0
    %1023 = vmatprep.subr.mxu0 0.0
    %1024 = vmatpush1.msra.mxu0 0.0
    %1025 = vmatprep.subr.mxu0 0.0
    %1026 = vmatpush1.msra.mxu0 0.0
    %1027 = vmatprep.subr.mxu0 0.0
    %1028 = vmatpush1.msra.mxu0 0.0
    %1029 = vmatprep.subr.mxu0 0.0
    %1030 = vmatpush1.msra.mxu0 0.0
    %1031 = vmatprep.subr.mxu0 0.0
    %1032 = vmatpush1.msra.mxu0 0.0
    %1033 = vmatprep.subr.mxu0 0.0
    %1034 = vmatpush1.msra.mxu0 0.0
    %1035 = vmatprep.subr.mxu0 0.0
    %1036 = vmatpush1.msra.mxu0 0.0
    %1037 = vmatprep.subr.mxu0 0.0
    %1038 = vmatpush1.msra.mxu0 0.0
    %1039 = vmatprep.subr.mxu0 0.0
    %1040 = vmatpush1.msra.mxu0 0.0
    %1041 = vmatprep.subr.mxu0 0.0
    %1042 = vmatpush1.msra.mxu0 0.0
    %1043 = vmatprep.subr.mxu0 0.0
    %1044 = vmatpush1.msra.mxu0 0.0
    %1045 = vmatprep.subr.mxu0 0.0
    %1046 = vmatpush1.msra.mxu0 0.0
    %1047 = vmatprep.subr.mxu0 0.0
    %1048 = vmatpush1.msra.mxu0 0.0
    %1049 = vmatprep.subr.mxu0 0.0
    %1050 = vmatpush1.msra.mxu0 0.0
    %1051 = vmatprep.mubr.f32.mxu0 0.0
    %1052 = vmatmul.mubr.f32.gmra.mrb[0].mxu0 %v913
    %v1053 = vpop.f32.mrb[0].mxu0
    %v1054 = vadd.f32 0.0, %v1053
    %v1055 = vpop.f32.mrb[0].mxu0
    %v1056 = vadd.f32 0.0, %v1055
    %1057 = vdwg.mxu0
    %1058 = vmatprep.subr.mxu0 %v926
    %1059 = vmatpush1.msra.mxu0 %v925
    %1060 = vmatprep.subr.mxu0 %v930
    %1061 = vmatpush1.msra.mxu0 %v929
    %1062 = vmatprep.subr.mxu0 %v934
    %1063 = vmatpush1.msra.mxu0 %v933
    %1064 = vmatprep.subr.mxu0 %v938
    %1065 = vmatpush1.msra.mxu0 %v937
    %1066 = vmatprep.subr.mxu0 %v942
    %1067 = vmatpush1.msra.mxu0 %v941
    %1068 = vmatprep.subr.mxu0 %v946
    %1069 = vmatpush1.msra.mxu0 %v945
    %1070 = vmatprep.subr.mxu0 %v950
    %1071 = vmatpush1.msra.mxu0 %v949
    %1072 = vmatprep.subr.mxu0 %v954
    %1073 = vmatpush1.msra.mxu0 %v953
    %1074 = vmatprep.subr.mxu0 %v958
    %1075 = vmatpush1.msra.mxu0 %v957
    %1076 = vmatprep.subr.mxu0 %v962
    %1077 = vmatpush1.msra.mxu0 %v961
    %1078 = vmatprep.subr.mxu0 %v966
    %1079 = vmatpush1.msra.mxu0 %v965
    %1080 = vmatprep.subr.mxu0 %v970
    %1081 = vmatpush1.msra.mxu0 %v969
    %1082 = vmatprep.subr.mxu0 %v974
    %1083 = vmatpush1.msra.mxu0 %v973
    %1084 = vmatprep.subr.mxu0 %v978
    %1085 = vmatpush1.msra.mxu0 %v977
    %1086 = vmatprep.subr.mxu0 %v982
    %1087 = vmatpush1.msra.mxu0 %v981
    %1088 = vmatprep.subr.mxu0 %v986
    %1089 = vmatpush1.msra.mxu0 %v985
    %1090 = vmatprep.subr.mxu0 0.0
    %1091 = vmatpush1.msra.mxu0 0.0
    %1092 = vmatprep.subr.mxu0 0.0
    %1093 = vmatpush1.msra.mxu0 0.0
    %1094 = vmatprep.subr.mxu0 0.0
    %1095 = vmatpush1.msra.mxu0 0.0
    %1096 = vmatprep.subr.mxu0 0.0
    %1097 = vmatpush1.msra.mxu0 0.0
    %1098 = vmatprep.subr.mxu0 0.0
    %1099 = vmatpush1.msra.mxu0 0.0
    %1100 = vmatprep.subr.mxu0 0.0
    %1101 = vmatpush1.msra.mxu0 0.0
    %1102 = vmatprep.subr.mxu0 0.0
    %1103 = vmatpush1.msra.mxu0 0.0
    %1104 = vmatprep.subr.mxu0 0.0
    %1105 = vmatpush1.msra.mxu0 0.0
    %1106 = vmatprep.subr.mxu0 0.0
    %1107 = vmatpush1.msra.mxu0 0.0
    %1108 = vmatprep.subr.mxu0 0.0
    %1109 = vmatpush1.msra.mxu0 0.0
    %1110 = vmatprep.subr.mxu0 0.0
    %1111 = vmatpush1.msra.mxu0 0.0
    %1112 = vmatprep.subr.mxu0 0.0
    %1113 = vmatpush1.msra.mxu0 0.0
    %1114 = vmatprep.subr.mxu0 0.0
    %1115 = vmatpush1.msra.mxu0 0.0
    %1116 = vmatprep.subr.mxu0 0.0
    %1117 = vmatpush1.msra.mxu0 0.0
    %1118 = vmatprep.subr.mxu0 0.0
    %1119 = vmatpush1.msra.mxu0 0.0
    %1120 = vmatprep.subr.mxu0 0.0
    %1121 = vmatpush1.msra.mxu0 0.0
    %1122 = vmatprep.mubr.f32.mxu0 0.0
    %1123 = vmatmul.mubr.f32.gmra.mrb[0].mxu0 %v913
    %v1124 = vpop.f32.mrb[0].mxu0
    %v1125 = vadd.f32 0.0, %v1124
    %v1126 = vpop.f32.mrb[0].mxu0
    %v1127 = vadd.f32 0.0, %v1126
    %1128 = vdwg.mxu0
    %v1129 = vadd.f32 %v919, %v1054
    %v1130 = vadd.f32 %v920, %v1056
    %v1131 = vadd.f32 %v921, %v1125
    %v1132 = vadd.f32 %v922, %v1127
    %v1133 = vmul.f32 %v1129, 0.5
    %v1134 = vtanh.pop %v1133
    %v1135 = vmul.f32 %v1134, 0.5
    %v1136 = vadd.f32 %v1135, 0.5
    %v1137 = vmul.f32 %v1130, 0.5
    %v1138 = vtanh.pop %v1137
    %v1139 = vmul.f32 %v1138, 0.5
    %v1140 = vadd.f32 %v1139, 0.5
    %v1141 = vtanh.pop %v1131
    %v1142 = vmul.f32 %v1132, 0.5
    %v1143 = vtanh.pop %v1142
    %v1144 = vmul.f32 %v1143, 0.5
    %v1145 = vadd.f32 %v1144, 0.5
    %v1146 = vmul.f32 %v1140, %v911
    %v1147 = vmul.f32 %v1136, %v1141
    %v1148 = vadd.f32 %v1146, %v1147
    %v1149 = vtanh.pop %v1148
    %v1150 = vmul.f32 %v1145, %v1149
    %s1151 = scalar_lea.vmem [#allocation13], 16
    %1152 = vst [vmem:[%s1151] sm:$0xff] %v1150
    %s1153 = smul.u32 3, 4
    %s1154 = smul.addr %s1153, 8
    %s1155 = scalar_lea.vmem [#allocation4], %s1154
    %v1156 = vld [vmem:[%s1155] sm:$0xff]
    %v1157 = vld [vmem:[%s1155 + $0x8] sm:$0xff]
    %v1158 = vld [vmem:[%s1155 + $0x10] sm:$0xff]
    %v1159 = vld [vmem:[%s1155 + $0x18] sm:$0xff]
    %v1160 = vld [vmem:[#allocation10] sm:$0xff]
    %v1161 = vld [vmem:[#allocation10 + $0x8] sm:$0xff]
    %v1162 = vld [vmem:[#allocation10 + $0x10] sm:$0xff]
    %v1163 = vld [vmem:[#allocation10 + $0x18] sm:$0xff]
    %v1164 = vld [vmem:[#allocation10 + $0x20] sm:$0xff]
    %v1165 = vld [vmem:[#allocation10 + $0x28] sm:$0xff]
    %v1166 = vld [vmem:[#allocation10 + $0x30] sm:$0xff]
    %v1167 = vld [vmem:[#allocation10 + $0x38] sm:$0xff]
    %v1168 = vld [vmem:[#allocation10 + $0x40] sm:$0xff]
    %v1169 = vld [vmem:[#allocation10 + $0x48] sm:$0xff]
    %v1170 = vld [vmem:[#allocation10 + $0x50] sm:$0xff]
    %v1171 = vld [vmem:[#allocation10 + $0x58] sm:$0xff]
    %v1172 = vld [vmem:[#allocation10 + $0x60] sm:$0xff]
    %v1173 = vld [vmem:[#allocation10 + $0x68] sm:$0xff]
    %v1174 = vld [vmem:[#allocation10 + $0x70] sm:$0xff]
    %v1175 = vld [vmem:[#allocation10 + $0x78] sm:$0xff]
    %v1176 = vld [vmem:[#allocation10 + $0x80] sm:$0xff]
    %v1177 = vld [vmem:[#allocation10 + $0x88] sm:$0xff]
    %v1178 = vld [vmem:[#allocation10 + $0x90] sm:$0xff]
    %v1179 = vld [vmem:[#allocation10 + $0x98] sm:$0xff]
    %v1180 = vld [vmem:[#allocation10 + $0xa0] sm:$0xff]
    %v1181 = vld [vmem:[#allocation10 + $0xa8] sm:$0xff]
    %v1182 = vld [vmem:[#allocation10 + $0xb0] sm:$0xff]
    %v1183 = vld [vmem:[#allocation10 + $0xb8] sm:$0xff]
    %v1184 = vld [vmem:[#allocation10 + $0xc0] sm:$0xff]
    %v1185 = vld [vmem:[#allocation10 + $0xc8] sm:$0xff]
    %v1186 = vld [vmem:[#allocation10 + $0xd0] sm:$0xff]
    %v1187 = vld [vmem:[#allocation10 + $0xd8] sm:$0xff]
    %v1188 = vld [vmem:[#allocation10 + $0xe0] sm:$0xff]
    %v1189 = vld [vmem:[#allocation10 + $0xe8] sm:$0xff]
    %v1190 = vld [vmem:[#allocation10 + $0xf0] sm:$0xff]
    %v1191 = vld [vmem:[#allocation10 + $0xf8] sm:$0xff]
    %v1192 = vld [vmem:[#allocation10 + $0x100] sm:$0xff]
    %v1193 = vld [vmem:[#allocation10 + $0x108] sm:$0xff]
    %v1194 = vld [vmem:[#allocation10 + $0x110] sm:$0xff]
    %v1195 = vld [vmem:[#allocation10 + $0x118] sm:$0xff]
    %v1196 = vld [vmem:[#allocation10 + $0x120] sm:$0xff]
    %v1197 = vld [vmem:[#allocation10 + $0x128] sm:$0xff]
    %v1198 = vld [vmem:[#allocation10 + $0x130] sm:$0xff]
    %v1199 = vld [vmem:[#allocation10 + $0x138] sm:$0xff]
    %v1200 = vld [vmem:[#allocation10 + $0x140] sm:$0xff]
    %v1201 = vld [vmem:[#allocation10 + $0x148] sm:$0xff]
    %v1202 = vld [vmem:[#allocation10 + $0x150] sm:$0xff]
    %v1203 = vld [vmem:[#allocation10 + $0x158] sm:$0xff]
    %v1204 = vld [vmem:[#allocation10 + $0x160] sm:$0xff]
    %v1205 = vld [vmem:[#allocation10 + $0x168] sm:$0xff]
    %v1206 = vld [vmem:[#allocation10 + $0x170] sm:$0xff]
    %v1207 = vld [vmem:[#allocation10 + $0x178] sm:$0xff]
    %v1208 = vld [vmem:[#allocation10 + $0x180] sm:$0xff]
    %v1209 = vld [vmem:[#allocation10 + $0x188] sm:$0xff]
    %v1210 = vld [vmem:[#allocation10 + $0x190] sm:$0xff]
    %v1211 = vld [vmem:[#allocation10 + $0x198] sm:$0xff]
    %v1212 = vld [vmem:[#allocation10 + $0x1a0] sm:$0xff]
    %v1213 = vld [vmem:[#allocation10 + $0x1a8] sm:$0xff]
    %v1214 = vld [vmem:[#allocation10 + $0x1b0] sm:$0xff]
    %v1215 = vld [vmem:[#allocation10 + $0x1b8] sm:$0xff]
    %v1216 = vld [vmem:[#allocation10 + $0x1c0] sm:$0xff]
    %v1217 = vld [vmem:[#allocation10 + $0x1c8] sm:$0xff]
    %v1218 = vld [vmem:[#allocation10 + $0x1d0] sm:$0xff]
    %v1219 = vld [vmem:[#allocation10 + $0x1d8] sm:$0xff]
    %v1220 = vld [vmem:[#allocation10 + $0x1e0] sm:$0xff]
    %v1221 = vld [vmem:[#allocation10 + $0x1e8] sm:$0xff]
    %v1222 = vld [vmem:[#allocation10 + $0x1f0] sm:$0xff]
    %v1223 = vld [vmem:[#allocation10 + $0x1f8] sm:$0xff]
    %1224 = vmatprep.subr.mxu0 %v1161
    %1225 = vmatpush1.msra.mxu0 %v1160
    %1226 = vmatprep.subr.mxu0 %v1165
    %1227 = vmatpush1.msra.mxu0 %v1164
    %1228 = vmatprep.subr.mxu0 %v1169
    %1229 = vmatpush1.msra.mxu0 %v1168
    %1230 = vmatprep.subr.mxu0 %v1173
    %1231 = vmatpush1.msra.mxu0 %v1172
    %1232 = vmatprep.subr.mxu0 %v1177
    %1233 = vmatpush1.msra.mxu0 %v1176
    %1234 = vmatprep.subr.mxu0 %v1181
    %1235 = vmatpush1.msra.mxu0 %v1180
    %1236 = vmatprep.subr.mxu0 %v1185
    %1237 = vmatpush1.msra.mxu0 %v1184
    %1238 = vmatprep.subr.mxu0 %v1189
    %1239 = vmatpush1.msra.mxu0 %v1188
    %1240 = vmatprep.subr.mxu0 %v1193
    %1241 = vmatpush1.msra.mxu0 %v1192
    %1242 = vmatprep.subr.mxu0 %v1197
    %1243 = vmatpush1.msra.mxu0 %v1196
    %1244 = vmatprep.subr.mxu0 %v1201
    %1245 = vmatpush1.msra.mxu0 %v1200
    %1246 = vmatprep.subr.mxu0 %v1205
    %1247 = vmatpush1.msra.mxu0 %v1204
    %1248 = vmatprep.subr.mxu0 %v1209
    %1249 = vmatpush1.msra.mxu0 %v1208
    %1250 = vmatprep.subr.mxu0 %v1213
    %1251 = vmatpush1.msra.mxu0 %v1212
    %1252 = vmatprep.subr.mxu0 %v1217
    %1253 = vmatpush1.msra.mxu0 %v1216
    %1254 = vmatprep.subr.mxu0 %v1221
    %1255 = vmatpush1.msra.mxu0 %v1220
    %1256 = vmatprep.subr.mxu0 0.0
    %1257 = vmatpush1.msra.mxu0 0.0
    %1258 = vmatprep.subr.mxu0 0.0
    %1259 = vmatpush1.msra.mxu0 0.0
    %1260 = vmatprep.subr.mxu0 0.0
    %1261 = vmatpush1.msra.mxu0 0.0
    %1262 = vmatprep.subr.mxu0 0.0
    %1263 = vmatpush1.msra.mxu0 0.0
    %1264 = vmatprep.subr.mxu0 0.0
    %1265 = vmatpush1.msra.mxu0 0.0
    %1266 = vmatprep.subr.mxu0 0.0
    %1267 = vmatpush1.msra.mxu0 0.0
    %1268 = vmatprep.subr.mxu0 0.0
    %1269 = vmatpush1.msra.mxu0 0.0
    %1270 = vmatprep.subr.mxu0 0.0
    %1271 = vmatpush1.msra.mxu0 0.0
    %1272 = vmatprep.subr.mxu0 0.0
    %1273 = vmatpush1.msra.mxu0 0.0
    %1274 = vmatprep.subr.mxu0 0.0
    %1275 = vmatpush1.msra.mxu0 0.0
    %1276 = vmatprep.subr.mxu0 0.0
    %1277 = vmatpush1.msra.mxu0 0.0
    %1278 = vmatprep.subr.mxu0 0.0
    %1279 = vmatpush1.msra.mxu0 0.0
    %1280 = vmatprep.subr.mxu0 0.0
    %1281 = vmatpush1.msra.mxu0 0.0
    %1282 = vmatprep.subr.mxu0 0.0
    %1283 = vmatpush1.msra.mxu0 0.0
    %1284 = vmatprep.subr.mxu0 0.0
    %1285 = vmatpush1.msra.mxu0 0.0
    %1286 = vmatprep.subr.mxu0 0.0
    %1287 = vmatpush1.msra.mxu0 0.0
    %1288 = vmatprep.mubr.f32.mxu0 0.0
    %1289 = vmatmul.mubr.f32.gmra.mrb[0].mxu0 %v1150
    %v1290 = vpop.f32.mrb[0].mxu0
    %v1291 = vadd.f32 0.0, %v1290
    %v1292 = vpop.f32.mrb[0].mxu0
    %v1293 = vadd.f32 0.0, %v1292
    %1294 = vdwg.mxu0
    %1295 = vmatprep.subr.mxu0 %v1163
    %1296 = vmatpush1.msra.mxu0 %v1162
    %1297 = vmatprep.subr.mxu0 %v1167
    %1298 = vmatpush1.msra.mxu0 %v1166
    %1299 = vmatprep.subr.mxu0 %v1171
    %1300 = vmatpush1.msra.mxu0 %v1170
    %1301 = vmatprep.subr.mxu0 %v1175
    %1302 = vmatpush1.msra.mxu0 %v1174
    %1303 = vmatprep.subr.mxu0 %v1179
    %1304 = vmatpush1.msra.mxu0 %v1178
    %1305 = vmatprep.subr.mxu0 %v1183
    %1306 = vmatpush1.msra.mxu0 %v1182
    %1307 = vmatprep.subr.mxu0 %v1187
    %1308 = vmatpush1.msra.mxu0 %v1186
    %1309 = vmatprep.subr.mxu0 %v1191
    %1310 = vmatpush1.msra.mxu0 %v1190
    %1311 = vmatprep.subr.mxu0 %v1195
    %1312 = vmatpush1.msra.mxu0 %v1194
    %1313 = vmatprep.subr.mxu0 %v1199
    %1314 = vmatpush1.msra.mxu0 %v1198
    %1315 = vmatprep.subr.mxu0 %v1203
    %1316 = vmatpush1.msra.mxu0 %v1202
    %1317 = vmatprep.subr.mxu0 %v1207
    %1318 = vmatpush1.msra.mxu0 %v1206
    %1319 = vmatprep.subr.mxu0 %v1211
    %1320 = vmatpush1.msra.mxu0 %v1210
    %1321 = vmatprep.subr.mxu0 %v1215
    %1322 = vmatpush1.msra.mxu0 %v1214
    %1323 = vmatprep.subr.mxu0 %v1219
    %1324 = vmatpush1.msra.mxu0 %v1218
    %1325 = vmatprep.subr.mxu0 %v1223
    %1326 = vmatpush1.msra.mxu0 %v1222
    %1327 = vmatprep.subr.mxu0 0.0
    %1328 = vmatpush1.msra.mxu0 0.0
    %1329 = vmatprep.subr.mxu0 0.0
    %1330 = vmatpush1.msra.mxu0 0.0
    %1331 = vmatprep.subr.mxu0 0.0
    %1332 = vmatpush1.msra.mxu0 0.0
    %1333 = vmatprep.subr.mxu0 0.0
    %1334 = vmatpush1.msra.mxu0 0.0
    %1335 = vmatprep.subr.mxu0 0.0
    %1336 = vmatpush1.msra.mxu0 0.0
    %1337 = vmatprep.subr.mxu0 0.0
    %1338 = vmatpush1.msra.mxu0 0.0
    %1339 = vmatprep.subr.mxu0 0.0
    %1340 = vmatpush1.msra.mxu0 0.0
    %1341 = vmatprep.subr.mxu0 0.0
    %1342 = vmatpush1.msra.mxu0 0.0
    %1343 = vmatprep.subr.mxu0 0.0
    %1344 = vmatpush1.msra.mxu0 0.0
    %1345 = vmatprep.subr.mxu0 0.0
    %1346 = vmatpush1.msra.mxu0 0.0
    %1347 = vmatprep.subr.mxu0 0.0
    %1348 = vmatpush1.msra.mxu0 0.0
    %1349 = vmatprep.subr.mxu0 0.0
    %1350 = vmatpush1.msra.mxu0 0.0
    %1351 = vmatprep.subr.mxu0 0.0
    %1352 = vmatpush1.msra.mxu0 0.0
    %1353 = vmatprep.subr.mxu0 0.0
    %1354 = vmatpush1.msra.mxu0 0.0
    %1355 = vmatprep.subr.mxu0 0.0
    %1356 = vmatpush1.msra.mxu0 0.0
    %1357 = vmatprep.subr.mxu0 0.0
    %1358 = vmatpush1.msra.mxu0 0.0
    %1359 = vmatprep.mubr.f32.mxu0 0.0
    %1360 = vmatmul.mubr.f32.gmra.mrb[0].mxu0 %v1150
    %v1361 = vpop.f32.mrb[0].mxu0
    %v1362 = vadd.f32 0.0, %v1361
    %v1363 = vpop.f32.mrb[0].mxu0
    %v1364 = vadd.f32 0.0, %v1363
    %1365 = vdwg.mxu0
    %v1366 = vadd.f32 %v1156, %v1291
    %v1367 = vadd.f32 %v1157, %v1293
    %v1368 = vadd.f32 %v1158, %v1362
    %v1369 = vadd.f32 %v1159, %v1364
    %v1370 = vmul.f32 %v1366, 0.5
    %v1371 = vtanh.pop %v1370
    %v1372 = vmul.f32 %v1371, 0.5
    %v1373 = vadd.f32 %v1372, 0.5
    %v1374 = vmul.f32 %v1367, 0.5
    %v1375 = vtanh.pop %v1374
    %v1376 = vmul.f32 %v1375, 0.5
    %v1377 = vadd.f32 %v1376, 0.5
    %v1378 = vtanh.pop %v1368
    %v1379 = vmul.f32 %v1369, 0.5
    %v1380 = vtanh.pop %v1379
    %v1381 = vmul.f32 %v1380, 0.5
    %v1382 = vadd.f32 %v1381, 0.5
    %v1383 = vmul.f32 %v1377, %v1148
    %v1384 = vmul.f32 %v1373, %v1378
    %v1385 = vadd.f32 %v1383, %v1384
    %v1386 = vtanh.pop %v1385
    %v1387 = vmul.f32 %v1382, %v1386
    %s1388 = scalar_lea.vmem [#allocation13], 24
    %1389 = vst [vmem:[%s1388] sm:$0xff] %v1387
    %s1390 = smul.u32 4, 4
    %s1391 = smul.addr %s1390, 8
    %s1392 = scalar_lea.vmem [#allocation4], %s1391
    %v1393 = vld [vmem:[%s1392] sm:$0xff]
    %v1394 = vld [vmem:[%s1392 + $0x8] sm:$0xff]
    %v1395 = vld [vmem:[%s1392 + $0x10] sm:$0xff]
    %v1396 = vld [vmem:[%s1392 + $0x18] sm:$0xff]
    %v1397 = vld [vmem:[#allocation10] sm:$0xff]
    %v1398 = vld [vmem:[#allocation10 + $0x8] sm:$0xff]
    %v1399 = vld [vmem:[#allocation10 + $0x10] sm:$0xff]
    %v1400 = vld [vmem:[#allocation10 + $0x18] sm:$0xff]
    %v1401 = vld [vmem:[#allocation10 + $0x20] sm:$0xff]
    %v1402 = vld [vmem:[#allocation10 + $0x28] sm:$0xff]
    %v1403 = vld [vmem:[#allocation10 + $0x30] sm:$0xff]
    %v1404 = vld [vmem:[#allocation10 + $0x38] sm:$0xff]
    %v1405 = vld [vmem:[#allocation10 + $0x40] sm:$0xff]
    %v1406 = vld [vmem:[#allocation10 + $0x48] sm:$0xff]
    %v1407 = vld [vmem:[#allocation10 + $0x50] sm:$0xff]
    %v1408 = vld [vmem:[#allocation10 + $0x58] sm:$0xff]
    %v1409 = vld [vmem:[#allocation10 + $0x60] sm:$0xff]
    %v1410 = vld [vmem:[#allocation10 + $0x68] sm:$0xff]
    %v1411 = vld [vmem:[#allocation10 + $0x70] sm:$0xff]
    %v1412 = vld [vmem:[#allocation10 + $0x78] sm:$0xff]
    %v1413 = vld [vmem:[#allocation10 + $0x80] sm:$0xff]
    %v1414 = vld [vmem:[#allocation10 + $0x88] sm:$0xff]
    %v1415 = vld [vmem:[#allocation10 + $0x90] sm:$0xff]
    %v1416 = vld [vmem:[#allocation10 + $0x98] sm:$0xff]
    %v1417 = vld [vmem:[#allocation10 + $0xa0] sm:$0xff]
    %v1418 = vld [vmem:[#allocation10 + $0xa8] sm:$0xff]
    %v1419 = vld [vmem:[#allocation10 + $0xb0] sm:$0xff]
    %v1420 = vld [vmem:[#allocation10 + $0xb8] sm:$0xff]
    %v1421 = vld [vmem:[#allocation10 + $0xc0] sm:$0xff]
    %v1422 = vld [vmem:[#allocation10 + $0xc8] sm:$0xff]
    %v1423 = vld [vmem:[#allocation10 + $0xd0] sm:$0xff]
    %v1424 = vld [vmem:[#allocation10 + $0xd8] sm:$0xff]
    %v1425 = vld [vmem:[#allocation10 + $0xe0] sm:$0xff]
    %v1426 = vld [vmem:[#allocation10 + $0xe8] sm:$0xff]
    %v1427 = vld [vmem:[#allocation10 + $0xf0] sm:$0xff]
    %v1428 = vld [vmem:[#allocation10 + $0xf8] sm:$0xff]
    %v1429 = vld [vmem:[#allocation10 + $0x100] sm:$0xff]
    %v1430 = vld [vmem:[#allocation10 + $0x108] sm:$0xff]
    %v1431 = vld [vmem:[#allocation10 + $0x110] sm:$0xff]
    %v1432 = vld [vmem:[#allocation10 + $0x118] sm:$0xff]
    %v1433 = vld [vmem:[#allocation10 + $0x120] sm:$0xff]
    %v1434 = vld [vmem:[#allocation10 + $0x128] sm:$0xff]
    %v1435 = vld [vmem:[#allocation10 + $0x130] sm:$0xff]
    %v1436 = vld [vmem:[#allocation10 + $0x138] sm:$0xff]
    %v1437 = vld [vmem:[#allocation10 + $0x140] sm:$0xff]
    %v1438 = vld [vmem:[#allocation10 + $0x148] sm:$0xff]
    %v1439 = vld [vmem:[#allocation10 + $0x150] sm:$0xff]
    %v1440 = vld [vmem:[#allocation10 + $0x158] sm:$0xff]
    %v1441 = vld [vmem:[#allocation10 + $0x160] sm:$0xff]
    %v1442 = vld [vmem:[#allocation10 + $0x168] sm:$0xff]
    %v1443 = vld [vmem:[#allocation10 + $0x170] sm:$0xff]
    %v1444 = vld [vmem:[#allocation10 + $0x178] sm:$0xff]
    %v1445 = vld [vmem:[#allocation10 + $0x180] sm:$0xff]
    %v1446 = vld [vmem:[#allocation10 + $0x188] sm:$0xff]
    %v1447 = vld [vmem:[#allocation10 + $0x190] sm:$0xff]
    %v1448 = vld [vmem:[#allocation10 + $0x198] sm:$0xff]
    %v1449 = vld [vmem:[#allocation10 + $0x1a0] sm:$0xff]
    %v1450 = vld [vmem:[#allocation10 + $0x1a8] sm:$0xff]
    %v1451 = vld [vmem:[#allocation10 + $0x1b0] sm:$0xff]
    %v1452 = vld [vmem:[#allocation10 + $0x1b8] sm:$0xff]
    %v1453 = vld [vmem:[#allocation10 + $0x1c0] sm:$0xff]
    %v1454 = vld [vmem:[#allocation10 + $0x1c8] sm:$0xff]
    %v1455 = vld [vmem:[#allocation10 + $0x1d0] sm:$0xff]
    %v1456 = vld [vmem:[#allocation10 + $0x1d8] sm:$0xff]
    %v1457 = vld [vmem:[#allocation10 + $0x1e0] sm:$0xff]
    %v1458 = vld [vmem:[#allocation10 + $0x1e8] sm:$0xff]
    %v1459 = vld [vmem:[#allocation10 + $0x1f0] sm:$0xff]
    %v1460 = vld [vmem:[#allocation10 + $0x1f8] sm:$0xff]
    %1461 = vmatprep.subr.mxu0 %v1398
    %1462 = vmatpush1.msra.mxu0 %v1397
    %1463 = vmatprep.subr.mxu0 %v1402
    %1464 = vmatpush1.msra.mxu0 %v1401
    %1465 = vmatprep.subr.mxu0 %v1406
    %1466 = vmatpush1.msra.mxu0 %v1405
    %1467 = vmatprep.subr.mxu0 %v1410
    %1468 = vmatpush1.msra.mxu0 %v1409
    %1469 = vmatprep.subr.mxu0 %v1414
    %1470 = vmatpush1.msra.mxu0 %v1413
    %1471 = vmatprep.subr.mxu0 %v1418
    %1472 = vmatpush1.msra.mxu0 %v1417
    %1473 = vmatprep.subr.mxu0 %v1422
    %1474 = vmatpush1.msra.mxu0 %v1421
    %1475 = vmatprep.subr.mxu0 %v1426
    %1476 = vmatpush1.msra.mxu0 %v1425
    %1477 = vmatprep.subr.mxu0 %v1430
    %1478 = vmatpush1.msra.mxu0 %v1429
    %1479 = vmatprep.subr.mxu0 %v1434
    %1480 = vmatpush1.msra.mxu0 %v1433
    %1481 = vmatprep.subr.mxu0 %v1438
    %1482 = vmatpush1.msra.mxu0 %v1437
    %1483 = vmatprep.subr.mxu0 %v1442
    %1484 = vmatpush1.msra.mxu0 %v1441
    %1485 = vmatprep.subr.mxu0 %v1446
    %1486 = vmatpush1.msra.mxu0 %v1445
    %1487 = vmatprep.subr.mxu0 %v1450
    %1488 = vmatpush1.msra.mxu0 %v1449
    %1489 = vmatprep.subr.mxu0 %v1454
    %1490 = vmatpush1.msra.mxu0 %v1453
    %1491 = vmatprep.subr.mxu0 %v1458
    %1492 = vmatpush1.msra.mxu0 %v1457
    %1493 = vmatprep.subr.mxu0 0.0
    %1494 = vmatpush1.msra.mxu0 0.0
    %1495 = vmatprep.subr.mxu0 0.0
    %1496 = vmatpush1.msra.mxu0 0.0
    %1497 = vmatprep.subr.mxu0 0.0
    %1498 = vmatpush1.msra.mxu0 0.0
    %1499 = vmatprep.subr.mxu0 0.0
    %1500 = vmatpush1.msra.mxu0 0.0
    %1501 = vmatprep.subr.mxu0 0.0
    %1502 = vmatpush1.msra.mxu0 0.0
    %1503 = vmatprep.subr.mxu0 0.0
    %1504 = vmatpush1.msra.mxu0 0.0
    %1505 = vmatprep.subr.mxu0 0.0
    %1506 = vmatpush1.msra.mxu0 0.0
    %1507 = vmatprep.subr.mxu0 0.0
    %1508 = vmatpush1.msra.mxu0 0.0
    %1509 = vmatprep.subr.mxu0 0.0
    %1510 = vmatpush1.msra.mxu0 0.0
    %1511 = vmatprep.subr.mxu0 0.0
    %1512 = vmatpush1.msra.mxu0 0.0
    %1513 = vmatprep.subr.mxu0 0.0
    %1514 = vmatpush1.msra.mxu0 0.0
    %1515 = vmatprep.subr.mxu0 0.0
    %1516 = vmatpush1.msra.mxu0 0.0
    %1517 = vmatprep.subr.mxu0 0.0
    %1518 = vmatpush1.msra.mxu0 0.0
    %1519 = vmatprep.subr.mxu0 0.0
    %1520 = vmatpush1.msra.mxu0 0.0
    %1521 = vmatprep.subr.mxu0 0.0
    %1522 = vmatpush1.msra.mxu0 0.0
    %1523 = vmatprep.subr.mxu0 0.0
    %1524 = vmatpush1.msra.mxu0 0.0
    %1525 = vmatprep.mubr.f32.mxu0 0.0
    %1526 = vmatmul.mubr.f32.gmra.mrb[0].mxu0 %v1387
    %v1527 = vpop.f32.mrb[0].mxu0
    %v1528 = vadd.f32 0.0, %v1527
    %v1529 = vpop.f32.mrb[0].mxu0
    %v1530 = vadd.f32 0.0, %v1529
    %1531 = vdwg.mxu0
    %1532 = vmatprep.subr.mxu0 %v1400
    %1533 = vmatpush1.msra.mxu0 %v1399
    %1534 = vmatprep.subr.mxu0 %v1404
    %1535 = vmatpush1.msra.mxu0 %v1403
    %1536 = vmatprep.subr.mxu0 %v1408
    %1537 = vmatpush1.msra.mxu0 %v1407
    %1538 = vmatprep.subr.mxu0 %v1412
    %1539 = vmatpush1.msra.mxu0 %v1411
    %1540 = vmatprep.subr.mxu0 %v1416
    %1541 = vmatpush1.msra.mxu0 %v1415
    %1542 = vmatprep.subr.mxu0 %v1420
    %1543 = vmatpush1.msra.mxu0 %v1419
    %1544 = vmatprep.subr.mxu0 %v1424
    %1545 = vmatpush1.msra.mxu0 %v1423
    %1546 = vmatprep.subr.mxu0 %v1428
    %1547 = vmatpush1.msra.mxu0 %v1427
    %1548 = vmatprep.subr.mxu0 %v1432
    %1549 = vmatpush1.msra.mxu0 %v1431
    %1550 = vmatprep.subr.mxu0 %v1436
    %1551 = vmatpush1.msra.mxu0 %v1435
    %1552 = vmatprep.subr.mxu0 %v1440
    %1553 = vmatpush1.msra.mxu0 %v1439
    %1554 = vmatprep.subr.mxu0 %v1444
    %1555 = vmatpush1.msra.mxu0 %v1443
    %1556 = vmatprep.subr.mxu0 %v1448
    %1557 = vmatpush1.msra.mxu0 %v1447
    %1558 = vmatprep.subr.mxu0 %v1452
    %1559 = vmatpush1.msra.mxu0 %v1451
    %1560 = vmatprep.subr.mxu0 %v1456
    %1561 = vmatpush1.msra.mxu0 %v1455
    %1562 = vmatprep.subr.mxu0 %v1460
    %1563 = vmatpush1.msra.mxu0 %v1459
    %1564 = vmatprep.subr.mxu0 0.0
    %1565 = vmatpush1.msra.mxu0 0.0
    %1566 = vmatprep.subr.mxu0 0.0
    %1567 = vmatpush1.msra.mxu0 0.0
    %1568 = vmatprep.subr.mxu0 0.0
    %1569 = vmatpush1.msra.mxu0 0.0
    %1570 = vmatprep.subr.mxu0 0.0
    %1571 = vmatpush1.msra.mxu0 0.0
    %1572 = vmatprep.subr.mxu0 0.0
    %1573 = vmatpush1.msra.mxu0 0.0
    %1574 = vmatprep.subr.mxu0 0.0
    %1575 = vmatpush1.msra.mxu0 0.0
    %1576 = vmatprep.subr.mxu0 0.0
    %1577 = vmatpush1.msra.mxu0 0.0
    %1578 = vmatprep.subr.mxu0 0.0
    %1579 = vmatpush1.msra.mxu0 0.0
    %1580 = vmatprep.subr.mxu0 0.0
    %1581 = vmatpush1.msra.mxu0 0.0
    %1582 = vmatprep.subr.mxu0 0.0
    %1583 = vmatpush1.msra.mxu0 0.0
    %1584 = vmatprep.subr.mxu0 0.0
    %1585 = vmatpush1.msra.mxu0 0.0
    %1586 = vmatprep.subr.mxu0 0.0
    %1587 = vmatpush1.msra.mxu0 0.0
    %1588 = vmatprep.subr.mxu0 0.0
    %1589 = vmatpush1.msra.mxu0 0.0
    %1590 = vmatprep.subr.mxu0 0.0
    %1591 = vmatpush1.msra.mxu0 0.0
    %1592 = vmatprep.subr.mxu0 0.0
    %1593 = vmatpush1.msra.mxu0 0.0
    %1594 = vmatprep.subr.mxu0 0.0
    %1595 = vmatpush1.msra.mxu0 0.0
    %1596 = vmatprep.mubr.f32.mxu0 0.0
    %1597 = vmatmul.mubr.f32.gmra.mrb[0].mxu0 %v1387
    %v1598 = vpop.f32.mrb[0].mxu0
    %v1599 = vadd.f32 0.0, %v1598
    %v1600 = vpop.f32.mrb[0].mxu0
    %v1601 = vadd.f32 0.0, %v1600
    %1602 = vdwg.mxu0
    %v1603 = vadd.f32 %v1393, %v1528
    %v1604 = vadd.f32 %v1394, %v1530
    %v1605 = vadd.f32 %v1395, %v1599
    %v1606 = vadd.f32 %v1396, %v1601
    %v1607 = vmul.f32 %v1603, 0.5
    %v1608 = vtanh.pop %v1607
    %v1609 = vmul.f32 %v1608, 0.5
    %v1610 = vadd.f32 %v1609, 0.5
    %v1611 = vmul.f32 %v1604, 0.5
    %v1612 = vtanh.pop %v1611
    %v1613 = vmul.f32 %v1612, 0.5
    %v1614 = vadd.f32 %v1613, 0.5
    %v1615 = vtanh.pop %v1605
    %v1616 = vmul.f32 %v1606, 0.5
    %v1617 = vtanh.pop %v1616
    %v1618 = vmul.f32 %v1617, 0.5
    %v1619 = vadd.f32 %v1618, 0.5
    %v1620 = vmul.f32 %v1614, %v1385
    %v1621 = vmul.f32 %v1610, %v1615
    %v1622 = vadd.f32 %v1620, %v1621
    %v1623 = vtanh.pop %v1622
    %v1624 = vmul.f32 %v1619, %v1623
    %s1625 = scalar_lea.vmem [#allocation13], 32
    %1626 = vst [vmem:[%s1625] sm:$0xff] %v1624
    %s1627 = smul.u32 5, 4
    %s1628 = smul.addr %s1627, 8
    %s1629 = scalar_lea.vmem [#allocation4], %s1628
    %v1630 = vld [vmem:[%s1629] sm:$0xff]
    %v1631 = vld [vmem:[%s1629 + $0x8] sm:$0xff]
    %v1632 = vld [vmem:[%s1629 + $0x10] sm:$0xff]
    %v1633 = vld [vmem:[%s1629 + $0x18] sm:$0xff]
    %v1634 = vld [vmem:[#allocation10] sm:$0xff]
    %v1635 = vld [vmem:[#allocation10 + $0x8] sm:$0xff]
    %v1636 = vld [vmem:[#allocation10 + $0x10] sm:$0xff]
    %v1637 = vld [vmem:[#allocation10 + $0x18] sm:$0xff]
    %v1638 = vld [vmem:[#allocation10 + $0x20] sm:$0xff]
    %v1639 = vld [vmem:[#allocation10 + $0x28] sm:$0xff]
    %v1640 = vld [vmem:[#allocation10 + $0x30] sm:$0xff]
    %v1641 = vld [vmem:[#allocation10 + $0x38] sm:$0xff]
    %v1642 = vld [vmem:[#allocation10 + $0x40] sm:$0xff]
    %v1643 = vld [vmem:[#allocation10 + $0x48] sm:$0xff]
    %v1644 = vld [vmem:[#allocation10 + $0x50] sm:$0xff]
    %v1645 = vld [vmem:[#allocation10 + $0x58] sm:$0xff]
    %v1646 = vld [vmem:[#allocation10 + $0x60] sm:$0xff]
    %v1647 = vld [vmem:[#allocation10 + $0x68] sm:$0xff]
    %v1648 = vld [vmem:[#allocation10 + $0x70] sm:$0xff]
    %v1649 = vld [vmem:[#allocation10 + $0x78] sm:$0xff]
    %v1650 = vld [vmem:[#allocation10 + $0x80] sm:$0xff]
    %v1651 = vld [vmem:[#allocation10 + $0x88] sm:$0xff]
    %v1652 = vld [vmem:[#allocation10 + $0x90] sm:$0xff]
    %v1653 = vld [vmem:[#allocation10 + $0x98] sm:$0xff]
    %v1654 = vld [vmem:[#allocation10 + $0xa0] sm:$0xff]
    %v1655 = vld [vmem:[#allocation10 + $0xa8] sm:$0xff]
    %v1656 = vld [vmem:[#allocation10 + $0xb0] sm:$0xff]
    %v1657 = vld [vmem:[#allocation10 + $0xb8] sm:$0xff]
    %v1658 = vld [vmem:[#allocation10 + $0xc0] sm:$0xff]
    %v1659 = vld [vmem:[#allocation10 + $0xc8] sm:$0xff]
    %v1660 = vld [vmem:[#allocation10 + $0xd0] sm:$0xff]
    %v1661 = vld [vmem:[#allocation10 + $0xd8] sm:$0xff]
    %v1662 = vld [vmem:[#allocation10 + $0xe0] sm:$0xff]
    %v1663 = vld [vmem:[#allocation10 + $0xe8] sm:$0xff]
    %v1664 = vld [vmem:[#allocation10 + $0xf0] sm:$0xff]
    %v1665 = vld [vmem:[#allocation10 + $0xf8] sm:$0xff]
    %v1666 = vld [vmem:[#allocation10 + $0x100] sm:$0xff]
    %v1667 = vld [vmem:[#allocation10 + $0x108] sm:$0xff]
    %v1668 = vld [vmem:[#allocation10 + $0x110] sm:$0xff]
    %v1669 = vld [vmem:[#allocation10 + $0x118] sm:$0xff]
    %v1670 = vld [vmem:[#allocation10 + $0x120] sm:$0xff]
    %v1671 = vld [vmem:[#allocation10 + $0x128] sm:$0xff]
    %v1672 = vld [vmem:[#allocation10 + $0x130] sm:$0xff]
    %v1673 = vld [vmem:[#allocation10 + $0x138] sm:$0xff]
    %v1674 = vld [vmem:[#allocation10 + $0x140] sm:$0xff]
    %v1675 = vld [vmem:[#allocation10 + $0x148] sm:$0xff]
    %v1676 = vld [vmem:[#allocation10 + $0x150] sm:$0xff]
    %v1677 = vld [vmem:[#allocation10 + $0x158] sm:$0xff]
    %v1678 = vld [vmem:[#allocation10 + $0x160] sm:$0xff]
    %v1679 = vld [vmem:[#allocation10 + $0x168] sm:$0xff]
    %v1680 = vld [vmem:[#allocation10 + $0x170] sm:$0xff]
    %v1681 = vld [vmem:[#allocation10 + $0x178] sm:$0xff]
    %v1682 = vld [vmem:[#allocation10 + $0x180] sm:$0xff]
    %v1683 = vld [vmem:[#allocation10 + $0x188] sm:$0xff]
    %v1684 = vld [vmem:[#allocation10 + $0x190] sm:$0xff]
    %v1685 = vld [vmem:[#allocation10 + $0x198] sm:$0xff]
    %v1686 = vld [vmem:[#allocation10 + $0x1a0] sm:$0xff]
    %v1687 = vld [vmem:[#allocation10 + $0x1a8] sm:$0xff]
    %v1688 = vld [vmem:[#allocation10 + $0x1b0] sm:$0xff]
    %v1689 = vld [vmem:[#allocation10 + $0x1b8] sm:$0xff]
    %v1690 = vld [vmem:[#allocation10 + $0x1c0] sm:$0xff]
    %v1691 = vld [vmem:[#allocation10 + $0x1c8] sm:$0xff]
    %v1692 = vld [vmem:[#allocation10 + $0x1d0] sm:$0xff]
    %v1693 = vld [vmem:[#allocation10 + $0x1d8] sm:$0xff]
    %v1694 = vld [vmem:[#allocation10 + $0x1e0] sm:$0xff]
    %v1695 = vld [vmem:[#allocation10 + $0x1e8] sm:$0xff]
    %v1696 = vld [vmem:[#allocation10 + $0x1f0] sm:$0xff]
    %v1697 = vld [vmem:[#allocation10 + $0x1f8] sm:$0xff]
    %1698 = vmatprep.subr.mxu0 %v1635
    %1699 = vmatpush1.msra.mxu0 %v1634
    %1700 = vmatprep.subr.mxu0 %v1639
    %1701 = vmatpush1.msra.mxu0 %v1638
    %1702 = vmatprep.subr.mxu0 %v1643
    %1703 = vmatpush1.msra.mxu0 %v1642
    %1704 = vmatprep.subr.mxu0 %v1647
    %1705 = vmatpush1.msra.mxu0 %v1646
    %1706 = vmatprep.subr.mxu0 %v1651
    %1707 = vmatpush1.msra.mxu0 %v1650
    %1708 = vmatprep.subr.mxu0 %v1655
    %1709 = vmatpush1.msra.mxu0 %v1654
    %1710 = vmatprep.subr.mxu0 %v1659
    %1711 = vmatpush1.msra.mxu0 %v1658
    %1712 = vmatprep.subr.mxu0 %v1663
    %1713 = vmatpush1.msra.mxu0 %v1662
    %1714 = vmatprep.subr.mxu0 %v1667
    %1715 = vmatpush1.msra.mxu0 %v1666
    %1716 = vmatprep.subr.mxu0 %v1671
    %1717 = vmatpush1.msra.mxu0 %v1670
    %1718 = vmatprep.subr.mxu0 %v1675
    %1719 = vmatpush1.msra.mxu0 %v1674
    %1720 = vmatprep.subr.mxu0 %v1679
    %1721 = vmatpush1.msra.mxu0 %v1678
    %1722 = vmatprep.subr.mxu0 %v1683
    %1723 = vmatpush1.msra.mxu0 %v1682
    %1724 = vmatprep.subr.mxu0 %v1687
    %1725 = vmatpush1.msra.mxu0 %v1686
    %1726 = vmatprep.subr.mxu0 %v1691
    %1727 = vmatpush1.msra.mxu0 %v1690
    %1728 = vmatprep.subr.mxu0 %v1695
    %1729 = vmatpush1.msra.mxu0 %v1694
    %1730 = vmatprep.subr.mxu0 0.0
    %1731 = vmatpush1.msra.mxu0 0.0
    %1732 = vmatprep.subr.mxu0 0.0
    %1733 = vmatpush1.msra.mxu0 0.0
    %1734 = vmatprep.subr.mxu0 0.0
    %1735 = vmatpush1.msra.mxu0 0.0
    %1736 = vmatprep.subr.mxu0 0.0
    %1737 = vmatpush1.msra.mxu0 0.0
    %1738 = vmatprep.subr.mxu0 0.0
    %1739 = vmatpush1.msra.mxu0 0.0
    %1740 = vmatprep.subr.mxu0 0.0
    %1741 = vmatpush1.msra.mxu0 0.0
    %1742 = vmatprep.subr.mxu0 0.0
    %1743 = vmatpush1.msra.mxu0 0.0
    %1744 = vmatprep.subr.mxu0 0.0
    %1745 = vmatpush1.msra.mxu0 0.0
    %1746 = vmatprep.subr.mxu0 0.0
    %1747 = vmatpush1.msra.mxu0 0.0
    %1748 = vmatprep.subr.mxu0 0.0
    %1749 = vmatpush1.msra.mxu0 0.0
    %1750 = vmatprep.subr.mxu0 0.0
    %1751 = vmatpush1.msra.mxu0 0.0
    %1752 = vmatprep.subr.mxu0 0.0
    %1753 = vmatpush1.msra.mxu0 0.0
    %1754 = vmatprep.subr.mxu0 0.0
    %1755 = vmatpush1.msra.mxu0 0.0
    %1756 = vmatprep.subr.mxu0 0.0
    %1757 = vmatpush1.msra.mxu0 0.0
    %1758 = vmatprep.subr.mxu0 0.0
    %1759 = vmatpush1.msra.mxu0 0.0
    %1760 = vmatprep.subr.mxu0 0.0
    %1761 = vmatpush1.msra.mxu0 0.0
    %1762 = vmatprep.mubr.f32.mxu0 0.0
    %1763 = vmatmul.mubr.f32.gmra.mrb[0].mxu0 %v1624
    %v1764 = vpop.f32.mrb[0].mxu0
    %v1765 = vadd.f32 0.0, %v1764
    %v1766 = vpop.f32.mrb[0].mxu0
    %v1767 = vadd.f32 0.0, %v1766
    %1768 = vdwg.mxu0
    %1769 = vmatprep.subr.mxu0 %v1637
    %1770 = vmatpush1.msra.mxu0 %v1636
    %1771 = vmatprep.subr.mxu0 %v1641
    %1772 = vmatpush1.msra.mxu0 %v1640
    %1773 = vmatprep.subr.mxu0 %v1645
    %1774 = vmatpush1.msra.mxu0 %v1644
    %1775 = vmatprep.subr.mxu0 %v1649
    %1776 = vmatpush1.msra.mxu0 %v1648
    %1777 = vmatprep.subr.mxu0 %v1653
    %1778 = vmatpush1.msra.mxu0 %v1652
    %1779 = vmatprep.subr.mxu0 %v1657
    %1780 = vmatpush1.msra.mxu0 %v1656
    %1781 = vmatprep.subr.mxu0 %v1661
    %1782 = vmatpush1.msra.mxu0 %v1660
    %1783 = vmatprep.subr.mxu0 %v1665
    %1784 = vmatpush1.msra.mxu0 %v1664
    %1785 = vmatprep.subr.mxu0 %v1669
    %1786 = vmatpush1.msra.mxu0 %v1668
    %1787 = vmatprep.subr.mxu0 %v1673
    %1788 = vmatpush1.msra.mxu0 %v1672
    %1789 = vmatprep.subr.mxu0 %v1677
    %1790 = vmatpush1.msra.mxu0 %v1676
    %1791 = vmatprep.subr.mxu0 %v1681
    %1792 = vmatpush1.msra.mxu0 %v1680
    %1793 = vmatprep.subr.mxu0 %v1685
    %1794 = vmatpush1.msra.mxu0 %v1684
    %1795 = vmatprep.subr.mxu0 %v1689
    %1796 = vmatpush1.msra.mxu0 %v1688
    %1797 = vmatprep.subr.mxu0 %v1693
    %1798 = vmatpush1.msra.mxu0 %v1692
    %1799 = vmatprep.subr.mxu0 %v1697
    %1800 = vmatpush1.msra.mxu0 %v1696
    %1801 = vmatprep.subr.mxu0 0.0
    %1802 = vmatpush1.msra.mxu0 0.0
    %1803 = vmatprep.subr.mxu0 0.0
    %1804 = vmatpush1.msra.mxu0 0.0
    %1805 = vmatprep.subr.mxu0 0.0
    %1806 = vmatpush1.msra.mxu0 0.0
    %1807 = vmatprep.subr.mxu0 0.0
    %1808 = vmatpush1.msra.mxu0 0.0
    %1809 = vmatprep.subr.mxu0 0.0
    %1810 = vmatpush1.msra.mxu0 0.0
    %1811 = vmatprep.subr.mxu0 0.0
    %1812 = vmatpush1.msra.mxu0 0.0
    %1813 = vmatprep.subr.mxu0 0.0
    %1814 = vmatpush1.msra.mxu0 0.0
    %1815 = vmatprep.subr.mxu0 0.0
    %1816 = vmatpush1.msra.mxu0 0.0
    %1817 = vmatprep.subr.mxu0 0.0
    %1818 = vmatpush1.msra.mxu0 0.0
    %1819 = vmatprep.subr.mxu0 0.0
    %1820 = vmatpush1.msra.mxu0 0.0
    %1821 = vmatprep.subr.mxu0 0.0
    %1822 = vmatpush1.msra.mxu0 0.0
    %1823 = vmatprep.subr.mxu0 0.0
    %1824 = vmatpush1.msra.mxu0 0.0
    %1825 = vmatprep.subr.mxu0 0.0
    %1826 = vmatpush1.msra.mxu0 0.0
    %1827 = vmatprep.subr.mxu0 0.0
    %1828 = vmatpush1.msra.mxu0 0.0
    %1829 = vmatprep.subr.mxu0 0.0
    %1830 = vmatpush1.msra.mxu0 0.0
    %1831 = vmatprep.subr.mxu0 0.0
    %1832 = vmatpush1.msra.mxu0 0.0
    %1833 = vmatprep.mubr.f32.mxu0 0.0
    %1834 = vmatmul.mubr.f32.gmra.mrb[0].mxu0 %v1624
    %v1835 = vpop.f32.mrb[0].mxu0
    %v1836 = vadd.f32 0.0, %v1835
    %v1837 = vpop.f32.mrb[0].mxu0
    %v1838 = vadd.f32 0.0, %v1837
    %1839 = vdwg.mxu0
    %v1840 = vadd.f32 %v1630, %v1765
    %v1841 = vadd.f32 %v1631, %v1767
    %v1842 = vadd.f32 %v1632, %v1836
    %v1843 = vadd.f32 %v1633, %v1838
    %v1844 = vmul.f32 %v1840, 0.5
    %v1845 = vtanh.pop %v1844
    %v1846 = vmul.f32 %v1845, 0.5
    %v1847 = vadd.f32 %v1846, 0.5
    %v1848 = vmul.f32 %v1841, 0.5
    %v1849 = vtanh.pop %v1848
    %v1850 = vmul.f32 %v1849, 0.5
    %v1851 = vadd.f32 %v1850, 0.5
    %v1852 = vtanh.pop %v1842
    %v1853 = vmul.f32 %v1843, 0.5
    %v1854 = vtanh.pop %v1853
    %v1855 = vmul.f32 %v1854, 0.5
    %v1856 = vadd.f32 %v1855, 0.5
    %v1857 = vmul.f32 %v1851, %v1622
    %v1858 = vmul.f32 %v1847, %v1852
    %v1859 = vadd.f32 %v1857, %v1858
    %v1860 = vtanh.pop %v1859
    %v1861 = vmul.f32 %v1856, %v1860
    %s1862 = scalar_lea.vmem [#allocation13], 40
    %1863 = vst [vmem:[%s1862] sm:$0xff] %v1861
    %s1864 = smul.u32 6, 4
    %s1865 = smul.addr %s1864, 8
    %s1866 = scalar_lea.vmem [#allocation4], %s1865
    %v1867 = vld [vmem:[%s1866] sm:$0xff]
    %v1868 = vld [vmem:[%s1866 + $0x8] sm:$0xff]
    %v1869 = vld [vmem:[%s1866 + $0x10] sm:$0xff]
    %v1870 = vld [vmem:[%s1866 + $0x18] sm:$0xff]
    %v1871 = vld [vmem:[#allocation10] sm:$0xff]
    %v1872 = vld [vmem:[#allocation10 + $0x8] sm:$0xff]
    %v1873 = vld [vmem:[#allocation10 + $0x10] sm:$0xff]
    %v1874 = vld [vmem:[#allocation10 + $0x18] sm:$0xff]
    %v1875 = vld [vmem:[#allocation10 + $0x20] sm:$0xff]
    %v1876 = vld [vmem:[#allocation10 + $0x28] sm:$0xff]
    %v1877 = vld [vmem:[#allocation10 + $0x30] sm:$0xff]
    %v1878 = vld [vmem:[#allocation10 + $0x38] sm:$0xff]
    %v1879 = vld [vmem:[#allocation10 + $0x40] sm:$0xff]
    %v1880 = vld [vmem:[#allocation10 + $0x48] sm:$0xff]
    %v1881 = vld [vmem:[#allocation10 + $0x50] sm:$0xff]
    %v1882 = vld [vmem:[#allocation10 + $0x58] sm:$0xff]
    %v1883 = vld [vmem:[#allocation10 + $0x60] sm:$0xff]
    %v1884 = vld [vmem:[#allocation10 + $0x68] sm:$0xff]
    %v1885 = vld [vmem:[#allocation10 + $0x70] sm:$0xff]
    %v1886 = vld [vmem:[#allocation10 + $0x78] sm:$0xff]
    %v1887 = vld [vmem:[#allocation10 + $0x80] sm:$0xff]
    %v1888 = vld [vmem:[#allocation10 + $0x88] sm:$0xff]
    %v1889 = vld [vmem:[#allocation10 + $0x90] sm:$0xff]
    %v1890 = vld [vmem:[#allocation10 + $0x98] sm:$0xff]
    %v1891 = vld [vmem:[#allocation10 + $0xa0] sm:$0xff]
    %v1892 = vld [vmem:[#allocation10 + $0xa8] sm:$0xff]
    %v1893 = vld [vmem:[#allocation10 + $0xb0] sm:$0xff]
    %v1894 = vld [vmem:[#allocation10 + $0xb8] sm:$0xff]
    %v1895 = vld [vmem:[#allocation10 + $0xc0] sm:$0xff]
    %v1896 = vld [vmem:[#allocation10 + $0xc8] sm:$0xff]
    %v1897 = vld [vmem:[#allocation10 + $0xd0] sm:$0xff]
    %v1898 = vld [vmem:[#allocation10 + $0xd8] sm:$0xff]
    %v1899 = vld [vmem:[#allocation10 + $0xe0] sm:$0xff]
    %v1900 = vld [vmem:[#allocation10 + $0xe8] sm:$0xff]
    %v1901 = vld [vmem:[#allocation10 + $0xf0] sm:$0xff]
    %v1902 = vld [vmem:[#allocation10 + $0xf8] sm:$0xff]
    %v1903 = vld [vmem:[#allocation10 + $0x100] sm:$0xff]
    %v1904 = vld [vmem:[#allocation10 + $0x108] sm:$0xff]
    %v1905 = vld [vmem:[#allocation10 + $0x110] sm:$0xff]
    %v1906 = vld [vmem:[#allocation10 + $0x118] sm:$0xff]
    %v1907 = vld [vmem:[#allocation10 + $0x120] sm:$0xff]
    %v1908 = vld [vmem:[#allocation10 + $0x128] sm:$0xff]
    %v1909 = vld [vmem:[#allocation10 + $0x130] sm:$0xff]
    %v1910 = vld [vmem:[#allocation10 + $0x138] sm:$0xff]
    %v1911 = vld [vmem:[#allocation10 + $0x140] sm:$0xff]
    %v1912 = vld [vmem:[#allocation10 + $0x148] sm:$0xff]
    %v1913 = vld [vmem:[#allocation10 + $0x150] sm:$0xff]
    %v1914 = vld [vmem:[#allocation10 + $0x158] sm:$0xff]
    %v1915 = vld [vmem:[#allocation10 + $0x160] sm:$0xff]
    %v1916 = vld [vmem:[#allocation10 + $0x168] sm:$0xff]
    %v1917 = vld [vmem:[#allocation10 + $0x170] sm:$0xff]
    %v1918 = vld [vmem:[#allocation10 + $0x178] sm:$0xff]
    %v1919 = vld [vmem:[#allocation10 + $0x180] sm:$0xff]
    %v1920 = vld [vmem:[#allocation10 + $0x188] sm:$0xff]
    %v1921 = vld [vmem:[#allocation10 + $0x190] sm:$0xff]
    %v1922 = vld [vmem:[#allocation10 + $0x198] sm:$0xff]
    %v1923 = vld [vmem:[#allocation10 + $0x1a0] sm:$0xff]
    %v1924 = vld [vmem:[#allocation10 + $0x1a8] sm:$0xff]
    %v1925 = vld [vmem:[#allocation10 + $0x1b0] sm:$0xff]
    %v1926 = vld [vmem:[#allocation10 + $0x1b8] sm:$0xff]
    %v1927 = vld [vmem:[#allocation10 + $0x1c0] sm:$0xff]
    %v1928 = vld [vmem:[#allocation10 + $0x1c8] sm:$0xff]
    %v1929 = vld [vmem:[#allocation10 + $0x1d0] sm:$0xff]
    %v1930 = vld [vmem:[#allocation10 + $0x1d8] sm:$0xff]
    %v1931 = vld [vmem:[#allocation10 + $0x1e0] sm:$0xff]
    %v1932 = vld [vmem:[#allocation10 + $0x1e8] sm:$0xff]
    %v1933 = vld [vmem:[#allocation10 + $0x1f0] sm:$0xff]
    %v1934 = vld [vmem:[#allocation10 + $0x1f8] sm:$0xff]
    %1935 = vmatprep.subr.mxu0 %v1872
    %1936 = vmatpush1.msra.mxu0 %v1871
    %1937 = vmatprep.subr.mxu0 %v1876
    %1938 = vmatpush1.msra.mxu0 %v1875
    %1939 = vmatprep.subr.mxu0 %v1880
    %1940 = vmatpush1.msra.mxu0 %v1879
    %1941 = vmatprep.subr.mxu0 %v1884
    %1942 = vmatpush1.msra.mxu0 %v1883
    %1943 = vmatprep.subr.mxu0 %v1888
    %1944 = vmatpush1.msra.mxu0 %v1887
    %1945 = vmatprep.subr.mxu0 %v1892
    %1946 = vmatpush1.msra.mxu0 %v1891
    %1947 = vmatprep.subr.mxu0 %v1896
    %1948 = vmatpush1.msra.mxu0 %v1895
    %1949 = vmatprep.subr.mxu0 %v1900
    %1950 = vmatpush1.msra.mxu0 %v1899
    %1951 = vmatprep.subr.mxu0 %v1904
    %1952 = vmatpush1.msra.mxu0 %v1903
    %1953 = vmatprep.subr.mxu0 %v1908
    %1954 = vmatpush1.msra.mxu0 %v1907
    %1955 = vmatprep.subr.mxu0 %v1912
    %1956 = vmatpush1.msra.mxu0 %v1911
    %1957 = vmatprep.subr.mxu0 %v1916
    %1958 = vmatpush1.msra.mxu0 %v1915
    %1959 = vmatprep.subr.mxu0 %v1920
    %1960 = vmatpush1.msra.mxu0 %v1919
    %1961 = vmatprep.subr.mxu0 %v1924
    %1962 = vmatpush1.msra.mxu0 %v1923
    %1963 = vmatprep.subr.mxu0 %v1928
    %1964 = vmatpush1.msra.mxu0 %v1927
    %1965 = vmatprep.subr.mxu0 %v1932
    %1966 = vmatpush1.msra.mxu0 %v1931
    %1967 = vmatprep.subr.mxu0 0.0
    %1968 = vmatpush1.msra.mxu0 0.0
    %1969 = vmatprep.subr.mxu0 0.0
    %1970 = vmatpush1.msra.mxu0 0.0
    %1971 = vmatprep.subr.mxu0 0.0
    %1972 = vmatpush1.msra.mxu0 0.0
    %1973 = vmatprep.subr.mxu0 0.0
    %1974 = vmatpush1.msra.mxu0 0.0
    %1975 = vmatprep.subr.mxu0 0.0
    %1976 = vmatpush1.msra.mxu0 0.0
    %1977 = vmatprep.subr.mxu0 0.0
    %1978 = vmatpush1.msra.mxu0 0.0
    %1979 = vmatprep.subr.mxu0 0.0
    %1980 = vmatpush1.msra.mxu0 0.0
    %1981 = vmatprep.subr.mxu0 0.0
    %1982 = vmatpush1.msra.mxu0 0.0
    %1983 = vmatprep.subr.mxu0 0.0
    %1984 = vmatpush1.msra.mxu0 0.0
    %1985 = vmatprep.subr.mxu0 0.0
    %1986 = vmatpush1.msra.mxu0 0.0
    %1987 = vmatprep.subr.mxu0 0.0
    %1988 = vmatpush1.msra.mxu0 0.0
    %1989 = vmatprep.subr.mxu0 0.0
    %1990 = vmatpush1.msra.mxu0 0.0
    %1991 = vmatprep.subr.mxu0 0.0
    %1992 = vmatpush1.msra.mxu0 0.0
    %1993 = vmatprep.subr.mxu0 0.0
    %1994 = vmatpush1.msra.mxu0 0.0
    %1995 = vmatprep.subr.mxu0 0.0
    %1996 = vmatpush1.msra.mxu0 0.0
    %1997 = vmatprep.subr.mxu0 0.0
    %1998 = vmatpush1.msra.mxu0 0.0
    %1999 = vmatprep.mubr.f32.mxu0 0.0
    %2000 = vmatmul.mubr.f32.gmra.mrb[0].mxu0 %v1861
    %v2001 = vpop.f32.mrb[0].mxu0
    %v2002 = vadd.f32 0.0, %v2001
    %v2003 = vpop.f32.mrb[0].mxu0
    %v2004 = vadd.f32 0.0, %v2003
    %2005 = vdwg.mxu0
    %2006 = vmatprep.subr.mxu0 %v1874
    %2007 = vmatpush1.msra.mxu0 %v1873
    %2008 = vmatprep.subr.mxu0 %v1878
    %2009 = vmatpush1.msra.mxu0 %v1877
    %2010 = vmatprep.subr.mxu0 %v1882
    %2011 = vmatpush1.msra.mxu0 %v1881
    %2012 = vmatprep.subr.mxu0 %v1886
    %2013 = vmatpush1.msra.mxu0 %v1885
    %2014 = vmatprep.subr.mxu0 %v1890
    %2015 = vmatpush1.msra.mxu0 %v1889
    %2016 = vmatprep.subr.mxu0 %v1894
    %2017 = vmatpush1.msra.mxu0 %v1893
    %2018 = vmatprep.subr.mxu0 %v1898
    %2019 = vmatpush1.msra.mxu0 %v1897
    %2020 = vmatprep.subr.mxu0 %v1902
    %2021 = vmatpush1.msra.mxu0 %v1901
    %2022 = vmatprep.subr.mxu0 %v1906
    %2023 = vmatpush1.msra.mxu0 %v1905
    %2024 = vmatprep.subr.mxu0 %v1910
    %2025 = vmatpush1.msra.mxu0 %v1909
    %2026 = vmatprep.subr.mxu0 %v1914
    %2027 = vmatpush1.msra.mxu0 %v1913
    %2028 = vmatprep.subr.mxu0 %v1918
    %2029 = vmatpush1.msra.mxu0 %v1917
    %2030 = vmatprep.subr.mxu0 %v1922
    %2031 = vmatpush1.msra.mxu0 %v1921
    %2032 = vmatprep.subr.mxu0 %v1926
    %2033 = vmatpush1.msra.mxu0 %v1925
    %2034 = vmatprep.subr.mxu0 %v1930
    %2035 = vmatpush1.msra.mxu0 %v1929
    %2036 = vmatprep.subr.mxu0 %v1934
    %2037 = vmatpush1.msra.mxu0 %v1933
    %2038 = vmatprep.subr.mxu0 0.0
    %2039 = vmatpush1.msra.mxu0 0.0
    %2040 = vmatprep.subr.mxu0 0.0
    %2041 = vmatpush1.msra.mxu0 0.0
    %2042 = vmatprep.subr.mxu0 0.0
    %2043 = vmatpush1.msra.mxu0 0.0
    %2044 = vmatprep.subr.mxu0 0.0
    %2045 = vmatpush1.msra.mxu0 0.0
    %2046 = vmatprep.subr.mxu0 0.0
    %2047 = vmatpush1.msra.mxu0 0.0
    %2048 = vmatprep.subr.mxu0 0.0
    %2049 = vmatpush1.msra.mxu0 0.0
    %2050 = vmatprep.subr.mxu0 0.0
    %2051 = vmatpush1.msra.mxu0 0.0
    %2052 = vmatprep.subr.mxu0 0.0
    %2053 = vmatpush1.msra.mxu0 0.0
    %2054 = vmatprep.subr.mxu0 0.0
    %2055 = vmatpush1.msra.mxu0 0.0
    %2056 = vmatprep.subr.mxu0 0.0
    %2057 = vmatpush1.msra.mxu0 0.0
    %2058 = vmatprep.subr.mxu0 0.0
    %2059 = vmatpush1.msra.mxu0 0.0
    %2060 = vmatprep.subr.mxu0 0.0
    %2061 = vmatpush1.msra.mxu0 0.0
    %2062 = vmatprep.subr.mxu0 0.0
    %2063 = vmatpush1.msra.mxu0 0.0
    %2064 = vmatprep.subr.mxu0 0.0
    %2065 = vmatpush1.msra.mxu0 0.0
    %2066 = vmatprep.subr.mxu0 0.0
    %2067 = vmatpush1.msra.mxu0 0.0
    %2068 = vmatprep.subr.mxu0 0.0
    %2069 = vmatpush1.msra.mxu0 0.0
    %2070 = vmatprep.mubr.f32.mxu0 0.0
    %2071 = vmatmul.mubr.f32.gmra.mrb[0].mxu0 %v1861
    %v2072 = vpop.f32.mrb[0].mxu0
    %v2073 = vadd.f32 0.0, %v2072
    %v2074 = vpop.f32.mrb[0].mxu0
    %v2075 = vadd.f32 0.0, %v2074
    %2076 = vdwg.mxu0
    %v2077 = vadd.f32 %v1867, %v2002
    %v2078 = vadd.f32 %v1868, %v2004
    %v2079 = vadd.f32 %v1869, %v2073
    %v2080 = vadd.f32 %v1870, %v2075
    %v2081 = vmul.f32 %v2077, 0.5
    %v2082 = vtanh.pop %v2081
    %v2083 = vmul.f32 %v2082, 0.5
    %v2084 = vadd.f32 %v2083, 0.5
    %v2085 = vmul.f32 %v2078, 0.5
    %v2086 = vtanh.pop %v2085
    %v2087 = vmul.f32 %v2086, 0.5
    %v2088 = vadd.f32 %v2087, 0.5
    %v2089 = vtanh.pop %v2079
    %v2090 = vmul.f32 %v2080, 0.5
    %v2091 = vtanh.pop %v2090
    %v2092 = vmul.f32 %v2091, 0.5
    %v2093 = vadd.f32 %v2092, 0.5
    %v2094 = vmul.f32 %v2088, %v1859
    %v2095 = vmul.f32 %v2084, %v2089
    %v2096 = vadd.f32 %v2094, %v2095
    %v2097 = vtanh.pop %v2096
    %v2098 = vmul.f32 %v2093, %v2097
    %s2099 = scalar_lea.vmem [#allocation13], 48
    %2100 = vst [vmem:[%s2099] sm:$0xff] %v2098
    %s2101 = smul.u32 7, 4
    %s2102 = smul.addr %s2101, 8
    %s2103 = scalar_lea.vmem [#allocation4], %s2102
    %v2104 = vld [vmem:[%s2103] sm:$0xff]
    %v2105 = vld [vmem:[%s2103 + $0x8] sm:$0xff]
    %v2106 = vld [vmem:[%s2103 + $0x10] sm:$0xff]
    %v2107 = vld [vmem:[%s2103 + $0x18] sm:$0xff]
    %v2108 = vld [vmem:[#allocation10] sm:$0xff]
    %v2109 = vld [vmem:[#allocation10 + $0x8] sm:$0xff]
    %v2110 = vld [vmem:[#allocation10 + $0x10] sm:$0xff]
    %v2111 = vld [vmem:[#allocation10 + $0x18] sm:$0xff]
    %v2112 = vld [vmem:[#allocation10 + $0x20] sm:$0xff]
    %v2113 = vld [vmem:[#allocation10 + $0x28] sm:$0xff]
    %v2114 = vld [vmem:[#allocation10 + $0x30] sm:$0xff]
    %v2115 = vld [vmem:[#allocation10 + $0x38] sm:$0xff]
    %v2116 = vld [vmem:[#allocation10 + $0x40] sm:$0xff]
    %v2117 = vld [vmem:[#allocation10 + $0x48] sm:$0xff]
    %v2118 = vld [vmem:[#allocation10 + $0x50] sm:$0xff]
    %v2119 = vld [vmem:[#allocation10 + $0x58] sm:$0xff]
    %v2120 = vld [vmem:[#allocation10 + $0x60] sm:$0xff]
    %v2121 = vld [vmem:[#allocation10 + $0x68] sm:$0xff]
    %v2122 = vld [vmem:[#allocation10 + $0x70] sm:$0xff]
    %v2123 = vld [vmem:[#allocation10 + $0x78] sm:$0xff]
    %v2124 = vld [vmem:[#allocation10 + $0x80] sm:$0xff]
    %v2125 = vld [vmem:[#allocation10 + $0x88] sm:$0xff]
    %v2126 = vld [vmem:[#allocation10 + $0x90] sm:$0xff]
    %v2127 = vld [vmem:[#allocation10 + $0x98] sm:$0xff]
    %v2128 = vld [vmem:[#allocation10 + $0xa0] sm:$0xff]
    %v2129 = vld [vmem:[#allocation10 + $0xa8] sm:$0xff]
    %v2130 = vld [vmem:[#allocation10 + $0xb0] sm:$0xff]
    %v2131 = vld [vmem:[#allocation10 + $0xb8] sm:$0xff]
    %v2132 = vld [vmem:[#allocation10 + $0xc0] sm:$0xff]
    %v2133 = vld [vmem:[#allocation10 + $0xc8] sm:$0xff]
    %v2134 = vld [vmem:[#allocation10 + $0xd0] sm:$0xff]
    %v2135 = vld [vmem:[#allocation10 + $0xd8] sm:$0xff]
    %v2136 = vld [vmem:[#allocation10 + $0xe0] sm:$0xff]
    %v2137 = vld [vmem:[#allocation10 + $0xe8] sm:$0xff]
    %v2138 = vld [vmem:[#allocation10 + $0xf0] sm:$0xff]
    %v2139 = vld [vmem:[#allocation10 + $0xf8] sm:$0xff]
    %v2140 = vld [vmem:[#allocation10 + $0x100] sm:$0xff]
    %v2141 = vld [vmem:[#allocation10 + $0x108] sm:$0xff]
    %v2142 = vld [vmem:[#allocation10 + $0x110] sm:$0xff]
    %v2143 = vld [vmem:[#allocation10 + $0x118] sm:$0xff]
    %v2144 = vld [vmem:[#allocation10 + $0x120] sm:$0xff]
    %v2145 = vld [vmem:[#allocation10 + $0x128] sm:$0xff]
    %v2146 = vld [vmem:[#allocation10 + $0x130] sm:$0xff]
    %v2147 = vld [vmem:[#allocation10 + $0x138] sm:$0xff]
    %v2148 = vld [vmem:[#allocation10 + $0x140] sm:$0xff]
    %v2149 = vld [vmem:[#allocation10 + $0x148] sm:$0xff]
    %v2150 = vld [vmem:[#allocation10 + $0x150] sm:$0xff]
    %v2151 = vld [vmem:[#allocation10 + $0x158] sm:$0xff]
    %v2152 = vld [vmem:[#allocation10 + $0x160] sm:$0xff]
    %v2153 = vld [vmem:[#allocation10 + $0x168] sm:$0xff]
    %v2154 = vld [vmem:[#allocation10 + $0x170] sm:$0xff]
    %v2155 = vld [vmem:[#allocation10 + $0x178] sm:$0xff]
    %v2156 = vld [vmem:[#allocation10 + $0x180] sm:$0xff]
    %v2157 = vld [vmem:[#allocation10 + $0x188] sm:$0xff]
    %v2158 = vld [vmem:[#allocation10 + $0x190] sm:$0xff]
    %v2159 = vld [vmem:[#allocation10 + $0x198] sm:$0xff]
    %v2160 = vld [vmem:[#allocation10 + $0x1a0] sm:$0xff]
    %v2161 = vld [vmem:[#allocation10 + $0x1a8] sm:$0xff]
    %v2162 = vld [vmem:[#allocation10 + $0x1b0] sm:$0xff]
    %v2163 = vld [vmem:[#allocation10 + $0x1b8] sm:$0xff]
    %v2164 = vld [vmem:[#allocation10 + $0x1c0] sm:$0xff]
    %v2165 = vld [vmem:[#allocation10 + $0x1c8] sm:$0xff]
    %v2166 = vld [vmem:[#allocation10 + $0x1d0] sm:$0xff]
    %v2167 = vld [vmem:[#allocation10 + $0x1d8] sm:$0xff]
    %v2168 = vld [vmem:[#allocation10 + $0x1e0] sm:$0xff]
    %v2169 = vld [vmem:[#allocation10 + $0x1e8] sm:$0xff]
    %v2170 = vld [vmem:[#allocation10 + $0x1f0] sm:$0xff]
    %v2171 = vld [vmem:[#allocation10 + $0x1f8] sm:$0xff]
    %2172 = vmatprep.subr.mxu0 %v2109
    %2173 = vmatpush1.msra.mxu0 %v2108
    %2174 = vmatprep.subr.mxu0 %v2113
    %2175 = vmatpush1.msra.mxu0 %v2112
    %2176 = vmatprep.subr.mxu0 %v2117
    %2177 = vmatpush1.msra.mxu0 %v2116
    %2178 = vmatprep.subr.mxu0 %v2121
    %2179 = vmatpush1.msra.mxu0 %v2120
    %2180 = vmatprep.subr.mxu0 %v2125
    %2181 = vmatpush1.msra.mxu0 %v2124
    %2182 = vmatprep.subr.mxu0 %v2129
    %2183 = vmatpush1.msra.mxu0 %v2128
    %2184 = vmatprep.subr.mxu0 %v2133
    %2185 = vmatpush1.msra.mxu0 %v2132
    %2186 = vmatprep.subr.mxu0 %v2137
    %2187 = vmatpush1.msra.mxu0 %v2136
    %2188 = vmatprep.subr.mxu0 %v2141
    %2189 = vmatpush1.msra.mxu0 %v2140
    %2190 = vmatprep.subr.mxu0 %v2145
    %2191 = vmatpush1.msra.mxu0 %v2144
    %2192 = vmatprep.subr.mxu0 %v2149
    %2193 = vmatpush1.msra.mxu0 %v2148
    %2194 = vmatprep.subr.mxu0 %v2153
    %2195 = vmatpush1.msra.mxu0 %v2152
    %2196 = vmatprep.subr.mxu0 %v2157
    %2197 = vmatpush1.msra.mxu0 %v2156
    %2198 = vmatprep.subr.mxu0 %v2161
    %2199 = vmatpush1.msra.mxu0 %v2160
    %2200 = vmatprep.subr.mxu0 %v2165
    %2201 = vmatpush1.msra.mxu0 %v2164
    %2202 = vmatprep.subr.mxu0 %v2169
    %2203 = vmatpush1.msra.mxu0 %v2168
    %2204 = vmatprep.subr.mxu0 0.0
    %2205 = vmatpush1.msra.mxu0 0.0
    %2206 = vmatprep.subr.mxu0 0.0
    %2207 = vmatpush1.msra.mxu0 0.0
    %2208 = vmatprep.subr.mxu0 0.0
    %2209 = vmatpush1.msra.mxu0 0.0
    %2210 = vmatprep.subr.mxu0 0.0
    %2211 = vmatpush1.msra.mxu0 0.0
    %2212 = vmatprep.subr.mxu0 0.0
    %2213 = vmatpush1.msra.mxu0 0.0
    %2214 = vmatprep.subr.mxu0 0.0
    %2215 = vmatpush1.msra.mxu0 0.0
    %2216 = vmatprep.subr.mxu0 0.0
    %2217 = vmatpush1.msra.mxu0 0.0
    %2218 = vmatprep.subr.mxu0 0.0
    %2219 = vmatpush1.msra.mxu0 0.0
    %2220 = vmatprep.subr.mxu0 0.0
    %2221 = vmatpush1.msra.mxu0 0.0
    %2222 = vmatprep.subr.mxu0 0.0
    %2223 = vmatpush1.msra.mxu0 0.0
    %2224 = vmatprep.subr.mxu0 0.0
    %2225 = vmatpush1.msra.mxu0 0.0
    %2226 = vmatprep.subr.mxu0 0.0
    %2227 = vmatpush1.msra.mxu0 0.0
    %2228 = vmatprep.subr.mxu0 0.0
    %2229 = vmatpush1.msra.mxu0 0.0
    %2230 = vmatprep.subr.mxu0 0.0
    %2231 = vmatpush1.msra.mxu0 0.0
    %2232 = vmatprep.subr.mxu0 0.0
    %2233 = vmatpush1.msra.mxu0 0.0
    %2234 = vmatprep.subr.mxu0 0.0
    %2235 = vmatpush1.msra.mxu0 0.0
    %2236 = vmatprep.mubr.f32.mxu0 0.0
    %2237 = vmatmul.mubr.f32.gmra.mrb[0].mxu0 %v2098
    %v2238 = vpop.f32.mrb[0].mxu0
    %v2239 = vadd.f32 0.0, %v2238
    %v2240 = vpop.f32.mrb[0].mxu0
    %v2241 = vadd.f32 0.0, %v2240
    %2242 = vdwg.mxu0
    %2243 = vmatprep.subr.mxu0 %v2111
    %2244 = vmatpush1.msra.mxu0 %v2110
    %2245 = vmatprep.subr.mxu0 %v2115
    %2246 = vmatpush1.msra.mxu0 %v2114
    %2247 = vmatprep.subr.mxu0 %v2119
    %2248 = vmatpush1.msra.mxu0 %v2118
    %2249 = vmatprep.subr.mxu0 %v2123
    %2250 = vmatpush1.msra.mxu0 %v2122
    %2251 = vmatprep.subr.mxu0 %v2127
    %2252 = vmatpush1.msra.mxu0 %v2126
    %2253 = vmatprep.subr.mxu0 %v2131
    %2254 = vmatpush1.msra.mxu0 %v2130
    %2255 = vmatprep.subr.mxu0 %v2135
    %2256 = vmatpush1.msra.mxu0 %v2134
    %2257 = vmatprep.subr.mxu0 %v2139
    %2258 = vmatpush1.msra.mxu0 %v2138
    %2259 = vmatprep.subr.mxu0 %v2143
    %2260 = vmatpush1.msra.mxu0 %v2142
    %2261 = vmatprep.subr.mxu0 %v2147
    %2262 = vmatpush1.msra.mxu0 %v2146
    %2263 = vmatprep.subr.mxu0 %v2151
    %2264 = vmatpush1.msra.mxu0 %v2150
    %2265 = vmatprep.subr.mxu0 %v2155
    %2266 = vmatpush1.msra.mxu0 %v2154
    %2267 = vmatprep.subr.mxu0 %v2159
    %2268 = vmatpush1.msra.mxu0 %v2158
    %2269 = vmatprep.subr.mxu0 %v2163
    %2270 = vmatpush1.msra.mxu0 %v2162
    %2271 = vmatprep.subr.mxu0 %v2167
    %2272 = vmatpush1.msra.mxu0 %v2166
    %2273 = vmatprep.subr.mxu0 %v2171
    %2274 = vmatpush1.msra.mxu0 %v2170
    %2275 = vmatprep.subr.mxu0 0.0
    %2276 = vmatpush1.msra.mxu0 0.0
    %2277 = vmatprep.subr.mxu0 0.0
    %2278 = vmatpush1.msra.mxu0 0.0
    %2279 = vmatprep.subr.mxu0 0.0
    %2280 = vmatpush1.msra.mxu0 0.0
    %2281 = vmatprep.subr.mxu0 0.0
    %2282 = vmatpush1.msra.mxu0 0.0
    %2283 = vmatprep.subr.mxu0 0.0
    %2284 = vmatpush1.msra.mxu0 0.0
    %2285 = vmatprep.subr.mxu0 0.0
    %2286 = vmatpush1.msra.mxu0 0.0
    %2287 = vmatprep.subr.mxu0 0.0
    %2288 = vmatpush1.msra.mxu0 0.0
    %2289 = vmatprep.subr.mxu0 0.0
    %2290 = vmatpush1.msra.mxu0 0.0
    %2291 = vmatprep.subr.mxu0 0.0
    %2292 = vmatpush1.msra.mxu0 0.0
    %2293 = vmatprep.subr.mxu0 0.0
    %2294 = vmatpush1.msra.mxu0 0.0
    %2295 = vmatprep.subr.mxu0 0.0
    %2296 = vmatpush1.msra.mxu0 0.0
    %2297 = vmatprep.subr.mxu0 0.0
    %2298 = vmatpush1.msra.mxu0 0.0
    %2299 = vmatprep.subr.mxu0 0.0
    %2300 = vmatpush1.msra.mxu0 0.0
    %2301 = vmatprep.subr.mxu0 0.0
    %2302 = vmatpush1.msra.mxu0 0.0
    %2303 = vmatprep.subr.mxu0 0.0
    %2304 = vmatpush1.msra.mxu0 0.0
    %2305 = vmatprep.subr.mxu0 0.0
    %2306 = vmatpush1.msra.mxu0 0.0
    %2307 = vmatprep.mubr.f32.mxu0 0.0
    %2308 = vmatmul.mubr.f32.gmra.mrb[0].mxu0 %v2098
    %v2309 = vpop.f32.mrb[0].mxu0
    %v2310 = vadd.f32 0.0, %v2309
    %v2311 = vpop.f32.mrb[0].mxu0
    %v2312 = vadd.f32 0.0, %v2311
    %2313 = vdwg.mxu0
    %v2314 = vadd.f32 %v2104, %v2239
    %v2315 = vadd.f32 %v2105, %v2241
    %v2316 = vadd.f32 %v2106, %v2310
    %v2317 = vadd.f32 %v2107, %v2312
    %v2318 = vmul.f32 %v2314, 0.5
    %v2319 = vtanh.pop %v2318
    %v2320 = vmul.f32 %v2319, 0.5
    %v2321 = vadd.f32 %v2320, 0.5
    %v2322 = vmul.f32 %v2315, 0.5
    %v2323 = vtanh.pop %v2322
    %v2324 = vmul.f32 %v2323, 0.5
    %v2325 = vadd.f32 %v2324, 0.5
    %v2326 = vtanh.pop %v2316
    %v2327 = vmul.f32 %v2317, 0.5
    %v2328 = vtanh.pop %v2327
    %v2329 = vmul.f32 %v2328, 0.5
    %v2330 = vadd.f32 %v2329, 0.5
    %v2331 = vmul.f32 %v2325, %v2096
    %v2332 = vmul.f32 %v2321, %v2326
    %v2333 = vadd.f32 %v2331, %v2332
    %v2334 = vtanh.pop %v2333
    %v2335 = vmul.f32 %v2330, %v2334
    %s2336 = scalar_lea.vmem [#allocation13], 56
    %2337 = vst [vmem:[%s2336] sm:$0xff] %v2335
    %2338 = vst [vmem:[#allocation2] sm:$0xff] %v2335
    %2339 = vst [vmem:[#allocation3] sm:$0xff] %v2333
    // Predicated region
    $region46: #{tpu_custom_call.1} parent=1 // pred_check
      %p2340 = pneg %p81
    $region47: #{tpu_custom_call.1} parent=1 // pred_check_branch
      %2342 = sbr.rel (%p2340) target = $region49
    $region48: #{tpu_custom_call.1} parent=1 // pred_region
      %2343 = vst [vmem:[#allocation14] sm:$0xff] %v2335
      %2344 = vst [vmem:[#allocation16] sm:$0xff] %v2333
    $region49: #{tpu_custom_call.1} parent=1 // pred_fallthru
      _
    // Predicated region
    $region50: #{tpu_custom_call.1} parent=1 // pred_check
      _
    $region51: #{tpu_custom_call.1} parent=1 // pred_check_branch
      %2346 = sbr.rel (0) target = $region53
    $region52: #{tpu_custom_call.1} parent=1 // pred_region
      %s2348 = ssub.s32 1024, 1024
      %2349 = vsyncadd [#allocation7], %s2348
      %s2350 = sshll.u32 [#allocation13], 4
      %s2351 = int_to_ptr.vmem [resolvable:$true] %s2350
      %2356 = dma.vmem_to_hbm [thread:$0]  %s2351, 1024, %s6, [#allocation7], 128, 128, 8
    $region53: #{tpu_custom_call.1} parent=1 // pred_fallthru
      _
    // Predicated region
    $region54: #{tpu_custom_call.1} parent=1 // pred_check
      _
    $region55: #{tpu_custom_call.1} parent=1 // pred_check_branch
      %2358 = sbr.rel (0) target = $region57
    $region56: #{tpu_custom_call.1} parent=1 // pred_region
      %s2360 = ssub.s32 128, 128
      %2361 = vsyncadd [#allocation15], %s2360
      %s2363 = sshll.u32 [#allocation14], 4
      %s2364 = int_to_ptr.vmem [resolvable:$true] %s2363
      %2366 = dma.vmem_to_hbm [thread:$0]  %s2364, 128, %s7, [#allocation15]
    $region57: #{tpu_custom_call.1} parent=1 // pred_fallthru
      _
    // Predicated region
    $region58: #{tpu_custom_call.1} parent=1 // pred_check
      _
    $region59: #{tpu_custom_call.1} parent=1 // pred_check_branch
      %2368 = sbr.rel (0) target = $region61
    $region60: #{tpu_custom_call.1} parent=1 // pred_region
      %s2370 = ssub.s32 128, 128
      %2371 = vsyncadd [#allocation15], %s2370
      %s2373 = sshll.u32 [#allocation16], 4
      %s2374 = int_to_ptr.vmem [resolvable:$true] %s2373
      %2376 = dma.vmem_to_hbm [thread:$0]  %s2374, 128, %s8, [#allocation15]
    $region61: #{tpu_custom_call.1} parent=1 // pred_fallthru
      _
    // Predicated region
    $region62: #{tpu_custom_call.1} parent=1 // pred_check
      _
    $region63: #{tpu_custom_call.1} parent=1 // pred_check_branch
      %2378 = sbr.rel (0) target = $region65
    $region64: #{tpu_custom_call.1} parent=1 // pred_region
      %2379 = dma.done [#allocation7], 1024
    $region65: #{tpu_custom_call.1} parent=1 // pred_fallthru
      _
    // Predicated region
    $region66: #{tpu_custom_call.1} parent=1 // pred_check
      _
    $region67: #{tpu_custom_call.1} parent=1 // pred_check_branch
      %2381 = sbr.rel (0) target = $region69
    $region68: #{tpu_custom_call.1} parent=1 // pred_region
      %2382 = dma.done [#allocation15], 128
    $region69: #{tpu_custom_call.1} parent=1 // pred_fallthru
      _
    // Predicated region
    $region70: #{tpu_custom_call.1} parent=1 // pred_check
      _
    $region71: #{tpu_custom_call.1} parent=1 // pred_check_branch
      %2384 = sbr.rel (0) target = $region73
    $region72: #{tpu_custom_call.1} parent=1 // pred_region
      %2385 = dma.done [#allocation15], 128
    $region73: #{tpu_custom_call.1} parent=1 // pred_fallthru
      _
    %2386 = vsyncpa [#allocation6], 1
    %2387 = vsyncpa [#allocation9], 1
    %2388 = vsyncpa [#allocation12], 1
    %2389 = vsyncpa [#allocation7], 1
    %2390 = vsyncpa [#allocation15], 1

</llo_original>
